<compile_context>
chip_gen: v7x
topology: tpu7x:2x2x1
jax: 0.10.0
libtpu: 0.0.40
codegen_flags: <defaults>
</compile_context>

<pallas_src>
import jax
import jax.numpy as jnp
import numpy as np
from jax.experimental import pallas as pl
from jax.experimental.pallas import tpu as pltpu

FEAT_NUMS = [3, 16, 32, 64]   # 3 conv blocks (reference default is 6)
METER_TYPE = 1                # != 2  ->  fc input = feat_nums[-1] * 2 * 2
H0, W0 = 16, 16               # input spatial size -> 2x2 after 3 pools
BN_EPS = 1e-5


# -----------------------------------------------------------------------------
# In-kernel building blocks
# -----------------------------------------------------------------------------
def _conv_bn_relu_pool_block(act, pad_ref, wb_ref, bb_ref, re_ref, ro_ref,
                             ce_ref, co_ref, h, w, cin, cout):
    """One Conv3x3(pad=1) + folded-BN + ReLU + MaxPool2x2 block.

    act:     (h, w*cin) value, lanes packed as (x, c)
    pad_ref: (h+2, w*cin) f32 VMEM scratch (row-padded copy of act)
    wb_ref:  (3, w*cin, w*cout) bf16   per-dy block-Toeplitz conv weights
    bb_ref:  (1, w*cout) f32           folded-BN bias, tiled over x
    re/ro:   (h//2, h) f32             even/odd row selectors (H-pool)
    ce/co:   (w*cout, (w//2)*cout) f32 even/odd column-group selectors (W-pool)
    returns  (h//2, (w//2)*cout) f32
    """
    zrow = jnp.zeros((1, w * cin), jnp.float32)
    pad_ref[0:1, :] = zrow                      # top zero row (padding=1)
    pad_ref[h + 1:h + 2, :] = zrow              # bottom zero row
    pad_ref[1:h + 1, :] = act.astype(jnp.float32)

    # Conv: 3 Toeplitz matmuls (one per dy tap row), bf16 inputs, f32 accumulate.
    o = jnp.zeros((h, w * cout), jnp.float32)
    for dy in range(3):
        rows = pad_ref[dy:dy + h, :].astype(jnp.bfloat16)          # (h, w*cin)
        o = o + jnp.dot(rows, wb_ref[dy],
                        preferred_element_type=jnp.float32)        # (h, w*cout)

    # Folded BN bias + ReLU (f32, exact w.r.t. the folded parameters).
    o = jnp.maximum(o + bb_ref[...], 0.0)

    # 2x2 max-pool: H-pair max via row selectors, W-pair max via column-group
    # selectors (0/1 matrices -> exact copies, MXU has plenty of slack).
    hm = jnp.maximum(
        jnp.dot(re_ref[...], o, preferred_element_type=jnp.float32),
        jnp.dot(ro_ref[...], o, preferred_element_type=jnp.float32))
    pooled = jnp.maximum(
        jnp.dot(hm, ce_ref[...], preferred_element_type=jnp.float32),
        jnp.dot(hm, co_ref[...], preferred_element_type=jnp.float32))
    return pooled                                                   # (h/2, w/2*cout)


def _make_fused_kernel(dims):
    """Builds the fused kernel for per-layer dims [(h, w, cin, cout), ...]."""
    nl = len(dims)

    def kernel(*refs):
        x_ref = refs[0]
        const_refs = refs[1:1 + 6 * nl]
        wfc_ref = refs[1 + 6 * nl]          # (Hf, Wf*Clast, 2) permuted fc weight
        bfc_ref = refs[2 + 6 * nl]          # (1, 2)
        o_ref = refs[3 + 6 * nl]            # (1, 1, 2) output block
        pad_refs = refs[4 + 6 * nl:]        # one f32 scratch per conv layer

        act = x_ref[0]                      # (H0, W0*C0) bf16
        for li in range(nl):
            h, w, cin, cout = dims[li]
            wb, bb, re, ro, ce, co = const_refs[6 * li:6 * li + 6]
            act = _conv_bn_relu_pool_block(act, pad_refs[li], wb, bb, re, ro,
                                           ce, co, h, w, cin, cout)

        # fc (flatten already folded into wfc's row permutation) + L2 normalize.
        out = bfc_ref[...]                                          # (1, 2)
        for r in range(act.shape[0]):
            out = out + jnp.dot(act[r:r + 1, :], wfc_ref[r],
                                preferred_element_type=jnp.float32)
        ss = jnp.sum(out * out, axis=1, keepdims=True)
        # Reference divides by the raw L2 norm; the tiny eps only guards 0/0.
        o_ref[0] = out * jax.lax.rsqrt(ss + 1e-12)

    return kernel


# -----------------------------------------------------------------------------
# Host-side parameter construction
# -----------------------------------------------------------------------------
def init_torch_params(key, feat_nums, meter_type):
    """Synthetic, deterministic parameters in PyTorch-equivalent layouts, with
    eval-mode BatchNorm folded into the conv weights/bias.
    (Conv weights are generated directly in HWIO; from torch OIHW this would be
     w_hwio = w_torch.transpose(2, 3, 1, 0).)"""
    conv_params = []
    for i in range(len(feat_nums) - 1):
        cin, cout = feat_nums[i], feat_nums[i + 1]
        key, k1, k2, k3, k4, k5, k6 = jax.random.split(key, 7)
        w = 0.1 * jax.random.normal(k1, (3, 3, cin, cout), jnp.float32)
        b = 0.1 * jax.random.normal(k2, (cout,), jnp.float32)
        gamma = 1.0 + 0.1 * jax.random.normal(k3, (cout,), jnp.float32)
        beta = 0.1 * jax.random.normal(k4, (cout,), jnp.float32)
        rmean = 0.1 * jax.random.normal(k5, (cout,), jnp.float32)
        rvar = jnp.abs(1.0 + 0.1 * jax.random.normal(k6, (cout,), jnp.float32))
        # eval-mode BN fold: y = gamma * (conv + b - mean) / sqrt(var+eps) + beta
        s = gamma / jnp.sqrt(rvar + BN_EPS)
        conv_params.append((w * s[None, None, None, :], (b - rmean) * s + beta))
    fc_in = feat_nums[-1] * 2 * (4 if meter_type == 2 else 2)
    key, k1, k2 = jax.random.split(key, 3)
    w_fc = 0.1 * jax.random.normal(k1, (2, fc_in), jnp.float32)   # torch (out, in)
    b_fc = 0.1 * jax.random.normal(k2, (2,), jnp.float32)
    return conv_params, w_fc, b_fc


def prepare_kernel_params(conv_params, w_fc, b_fc, h0, w0):
    """Pack folded conv weights into per-dy block-Toeplitz matrices (bf16), tile
    biases, build the pooling selectors, and permute the fc weight rows so the
    kernel's packed NHWC layout feeds it directly (NCHW flatten folded in)."""
    dims, consts = [], []
    h, w = h0, w0
    for (w_fold, b_fold) in conv_params:
        w_np = np.asarray(w_fold, dtype=np.float32)        # (3, 3, cin, cout)
        cin, cout = w_np.shape[2], w_np.shape[3]
        dims.append((h, w, cin, cout))

        # Per-dy Toeplitz: out[y, xo*cout+co] += sum_xi,c in[y+dy-1, xi*cin+c] *
        #                  wd[dy, xi*cin+c, xo*cout+co]; column padding is
        #                  handled by simply omitting out-of-range taps.
        wd = np.zeros((3, w * cin, w * cout), np.float32)
        for dy in range(3):
            for xo in range(w):
                for dx in range(3):
                    xi = xo + dx - 1
                    if 0 <= xi < w:
                        wd[dy, xi * cin:(xi + 1) * cin,
                           xo * cout:(xo + 1) * cout] = w_np[dy, dx]
        b_tile = np.tile(np.asarray(b_fold, np.float32), w).reshape(1, w * cout)

        ho, wo = h // 2, w // 2
        re = np.zeros((ho, h), np.float32)
        ro = np.zeros((ho, h), np.float32)
        re[np.arange(ho), 2 * np.arange(ho)] = 1.0
        ro[np.arange(ho), 2 * np.arange(ho) + 1] = 1.0
        ce = np.zeros((w * cout, wo * cout), np.float32)
        co = np.zeros((w * cout, wo * cout), np.float32)
        eye = np.eye(cout, dtype=np.float32)
        for xo in range(wo):
            ce[(2 * xo) * cout:(2 * xo + 1) * cout, xo * cout:(xo + 1) * cout] = eye
            co[(2 * xo + 1) * cout:(2 * xo + 2) * cout, xo * cout:(xo + 1) * cout] = eye

        consts += [jnp.asarray(wd, jnp.bfloat16), jnp.asarray(b_tile),
                   jnp.asarray(re), jnp.asarray(ro),
                   jnp.asarray(ce), jnp.asarray(co)]
        h, w = ho, wo

    # fc: torch flattens NCHW -> index c*(h*w) + y*w + x ; our packed layout is
    # row y, lane x*c_last + c.  Permute the fc weight rows accordingly.
    c_last = int(np.asarray(conv_params[-1][0]).shape[-1])
    wfc_np = np.asarray(w_fc, np.float32)                  # (2, c_last*h*w)
    wk = np.zeros((h, w * c_last, 2), np.float32)
    for yy in range(h):
        for xx in range(w):
            for c in range(c_last):
                wk[yy, xx * c_last + c, :] = wfc_np[:, c * (h * w) + yy * w + xx]
    consts += [jnp.asarray(wk),
               jnp.asarray(np.asarray(b_fc, np.float32).reshape(1, 2))]
    return tuple(dims), tuple(consts)


# -----------------------------------------------------------------------------
# Forward wrapper (single fused pallas_call)
# -----------------------------------------------------------------------------
def build_forward(dims):
    h0, w0, c0 = dims[0][0], dims[0][1], dims[0][2]
    kernel = _make_fused_kernel(dims)
    scratch = [pltpu.VMEM((h + 2, w * cin), jnp.float32)
               for (h, w, cin, _) in dims]

    @jax.jit
    def forward(x_nchw, *consts):
        n = x_nchw.shape[0]
        # NCHW -> rows = H, lanes packed as (W, C); one bf16 cast (halves the DMA).
        xp = jnp.transpose(x_nchw, (0, 2, 3, 1)).reshape(
            n, h0, w0 * c0).astype(jnp.bfloat16)

        in_specs = [pl.BlockSpec((1, h0, w0 * c0), lambda i: (i, 0, 0))]
        for a in consts:   # constant operands: full-array blocks, never re-DMA'd
            nd = a.ndim
            in_specs.append(pl.BlockSpec(a.shape, lambda i, _nd=nd: (0,) * _nd))

        out = pl.pallas_call(
            kernel,
            out_shape=jax.ShapeDtypeStruct((n, 1, 2), jnp.float32),
            grid=(n,),
            in_specs=in_specs,
            out_specs=pl.BlockSpec((1, 1, 2), lambda i: (i, 0, 0)),
            scratch_shapes=scratch,
            compiler_params=pltpu.CompilerParams(
                dimension_semantics=("parallel",)),   # v7x: 2 TCs split the batch
        )(xp, *consts)
        return out.reshape(n, 2)

    return forward


if __name__ == "__main__":
    key = jax.random.PRNGKey(0)
    key, kp, kx = jax.random.split(key, 3)

    conv_params, w_fc, b_fc = init_torch_params(kp, FEAT_NUMS, METER_TYPE)
    dims, consts = prepare_kernel_params(conv_params, w_fc, b_fc, H0, W0)
    forward = build_forward(dims)

    # Input in PyTorch NCHW convention; 16x16 spatial -> 2x2 after 3 pools,
    # consistent with fc = Linear(feat_nums[-1]*2*2, 2) for meter_type != 2.
    x = jax.random.normal(kx, (2, FEAT_NUMS[0], H0, W0), jnp.float32)

    out = forward(x, *consts)
    out = jax.block_until_ready(out)
    assert out.shape == (2, 2)
    assert bool(jnp.all(jnp.isfinite(out)))
    print("KERNEL_OK")
</pallas_src>

<mosaic_0001>
module attributes {stable_mosaic.version = 11 : i64} {
  func.func @kernel(%arg0: i32, %arg1: memref<1x16x48xbf16, #tpu.memory_space<vmem>>, %arg2: memref<3x48x256xbf16, #tpu.memory_space<vmem>>, %arg3: memref<1x256xf32, #tpu.memory_space<vmem>>, %arg4: memref<8x16xf32, #tpu.memory_space<vmem>>, %arg5: memref<8x16xf32, #tpu.memory_space<vmem>>, %arg6: memref<256x128xf32, #tpu.memory_space<vmem>>, %arg7: memref<256x128xf32, #tpu.memory_space<vmem>>, %arg8: memref<3x128x256xbf16, #tpu.memory_space<vmem>>, %arg9: memref<1x256xf32, #tpu.memory_space<vmem>>, %arg10: memref<4x8xf32, #tpu.memory_space<vmem>>, %arg11: memref<4x8xf32, #tpu.memory_space<vmem>>, %arg12: memref<256x128xf32, #tpu.memory_space<vmem>>, %arg13: memref<256x128xf32, #tpu.memory_space<vmem>>, %arg14: memref<3x128x256xbf16, #tpu.memory_space<vmem>>, %arg15: memref<1x256xf32, #tpu.memory_space<vmem>>, %arg16: memref<2x4xf32, #tpu.memory_space<vmem>>, %arg17: memref<2x4xf32, #tpu.memory_space<vmem>>, %arg18: memref<256x128xf32, #tpu.memory_space<vmem>>, %arg19: memref<256x128xf32, #tpu.memory_space<vmem>>, %arg20: memref<2x128x2xf32, #tpu.memory_space<vmem>>, %arg21: memref<1x2xf32, #tpu.memory_space<vmem>>, %arg22: memref<1x1x2xf32, #tpu.memory_space<vmem>>, %arg23: memref<18x48xf32, #tpu.memory_space<vmem>>, %arg24: memref<10x128xf32, #tpu.memory_space<vmem>>, %arg25: memref<6x128xf32, #tpu.memory_space<vmem>>) attributes {dimension_semantics = [#tpu.dimension_semantics<parallel>], iteration_bounds = array<i64: 2>, scalar_prefetch = 0 : i64, scratch_operands = 3 : i64, tpu.core_type = #tpu.core_type<tc>, window_params = [{transform_indices = @transform_0, window_bounds = array<i64: 1, 16, 48>}, {pipeline_mode = #tpu.pipeline_mode<synchronous>, transform_indices = @transform_1, window_bounds = array<i64: 3, 48, 256>}, {pipeline_mode = #tpu.pipeline_mode<synchronous>, transform_indices = @transform_2, window_bounds = array<i64: 1, 256>}, {pipeline_mode = #tpu.pipeline_mode<synchronous>, transform_indices = @transform_3, window_bounds = array<i64: 8, 16>}, {pipeline_mode = #tpu.pipeline_mode<synchronous>, transform_indices = @transform_4, window_bounds = array<i64: 8, 16>}, {pipeline_mode = #tpu.pipeline_mode<synchronous>, transform_indices = @transform_5, window_bounds = array<i64: 256, 128>}, {pipeline_mode = #tpu.pipeline_mode<synchronous>, transform_indices = @transform_6, window_bounds = array<i64: 256, 128>}, {pipeline_mode = #tpu.pipeline_mode<synchronous>, transform_indices = @transform_7, window_bounds = array<i64: 3, 128, 256>}, {pipeline_mode = #tpu.pipeline_mode<synchronous>, transform_indices = @transform_8, window_bounds = array<i64: 1, 256>}, {pipeline_mode = #tpu.pipeline_mode<synchronous>, transform_indices = @transform_9, window_bounds = array<i64: 4, 8>}, {pipeline_mode = #tpu.pipeline_mode<synchronous>, transform_indices = @transform_10, window_bounds = array<i64: 4, 8>}, {pipeline_mode = #tpu.pipeline_mode<synchronous>, transform_indices = @transform_11, window_bounds = array<i64: 256, 128>}, {pipeline_mode = #tpu.pipeline_mode<synchronous>, transform_indices = @transform_12, window_bounds = array<i64: 256, 128>}, {pipeline_mode = #tpu.pipeline_mode<synchronous>, transform_indices = @transform_13, window_bounds = array<i64: 3, 128, 256>}, {pipeline_mode = #tpu.pipeline_mode<synchronous>, transform_indices = @transform_14, window_bounds = array<i64: 1, 256>}, {pipeline_mode = #tpu.pipeline_mode<synchronous>, transform_indices = @transform_15, window_bounds = array<i64: 2, 4>}, {pipeline_mode = #tpu.pipeline_mode<synchronous>, transform_indices = @transform_16, window_bounds = array<i64: 2, 4>}, {pipeline_mode = #tpu.pipeline_mode<synchronous>, transform_indices = @transform_17, window_bounds = array<i64: 256, 128>}, {pipeline_mode = #tpu.pipeline_mode<synchronous>, transform_indices = @transform_18, window_bounds = array<i64: 256, 128>}, {pipeline_mode = #tpu.pipeline_mode<synchronous>, transform_indices = @transform_19, window_bounds = array<i64: 2, 128, 2>}, {pipeline_mode = #tpu.pipeline_mode<synchronous>, transform_indices = @transform_20, window_bounds = array<i64: 1, 2>}, {transform_indices = @transform_21, window_bounds = array<i64: 1, 1, 2>}]} {
    %c0 = arith.constant 0 : index
    %c0_0 = arith.constant 0 : index
    %c0_1 = arith.constant 0 : index
    %0 = vector.load %arg1[%c0, %c0_0, %c0_1] : memref<1x16x48xbf16, #tpu.memory_space<vmem>>, vector<1x16x48xbf16>
    %1 = vector.shape_cast %0 : vector<1x16x48xbf16> to vector<16x48xbf16>
    %cst = arith.constant 0.000000e+00 : f32
    %2 = vector.broadcast %cst : f32 to vector<1x48xf32>
    %c0_2 = arith.constant 0 : index
    %c0_3 = arith.constant 0 : index
    %3 = vector.load %arg23[%c0_2, %c0_3] : memref<18x48xf32, #tpu.memory_space<vmem>>, vector<1x48xf32>
    tpu.vector_store %arg23[%c0_2, %c0_3], %2 {strides = array<i32>} : memref<18x48xf32, #tpu.memory_space<vmem>>, vector<1x48xf32>,
    %c17 = arith.constant 17 : index
    %c0_4 = arith.constant 0 : index
    %4 = vector.load %arg23[%c17, %c0_4] : memref<18x48xf32, #tpu.memory_space<vmem>>, vector<1x48xf32>
    tpu.vector_store %arg23[%c17, %c0_4], %2 {strides = array<i32>} : memref<18x48xf32, #tpu.memory_space<vmem>>, vector<1x48xf32>,
    %5 = arith.extf %1 : vector<16x48xbf16> to vector<16x48xf32>
    %c1 = arith.constant 1 : index
    %c0_5 = arith.constant 0 : index
    %6 = vector.load %arg23[%c1, %c0_5] : memref<18x48xf32, #tpu.memory_space<vmem>>, vector<16x48xf32>
    tpu.vector_store %arg23[%c1, %c0_5], %5 {strides = array<i32>} : memref<18x48xf32, #tpu.memory_space<vmem>>, vector<16x48xf32>,
    %cst_6 = arith.constant 0.000000e+00 : f32
    %7 = vector.broadcast %cst_6 : f32 to vector<16x256xf32>
    %c0_7 = arith.constant 0 : index
    %c0_8 = arith.constant 0 : index
    %8 = vector.load %arg23[%c0_7, %c0_8] : memref<18x48xf32, #tpu.memory_space<vmem>>, vector<16x48xf32>
    %9 = arith.truncf %8 : vector<16x48xf32> to vector<16x48xbf16>
    %c0_9 = arith.constant 0 : index
    %c0_10 = arith.constant 0 : index
    %c0_11 = arith.constant 0 : index
    %10 = vector.load %arg2[%c0_9, %c0_10, %c0_11] : memref<3x48x256xbf16, #tpu.memory_space<vmem>>, vector<1x48x256xbf16>
    %11 = vector.shape_cast %10 : vector<1x48x256xbf16> to vector<48x256xbf16>
    %cst_12 = arith.constant dense<0.000000e+00> : vector<16x256xf32>
    %12 = tpu.matmul %9, %11, %cst_12 {dimension_numbers = #tpu.dot_dimension_numbers<[1], [0], [0], [1], [0, 0, 1, 1], [], []>} : vector<16x48xbf16>, vector<48x256xbf16>, vector<16x256xf32> -> vector<16x256xf32>
    %13 = arith.addf %7, %12 : vector<16x256xf32>
    %c1_13 = arith.constant 1 : index
    %c0_14 = arith.constant 0 : index
    %14 = vector.load %arg23[%c1_13, %c0_14] : memref<18x48xf32, #tpu.memory_space<vmem>>, vector<16x48xf32>
    %15 = arith.truncf %14 : vector<16x48xf32> to vector<16x48xbf16>
    %c1_15 = arith.constant 1 : index
    %c0_16 = arith.constant 0 : index
    %c0_17 = arith.constant 0 : index
    %16 = vector.load %arg2[%c1_15, %c0_16, %c0_17] : memref<3x48x256xbf16, #tpu.memory_space<vmem>>, vector<1x48x256xbf16>
    %17 = vector.shape_cast %16 : vector<1x48x256xbf16> to vector<48x256xbf16>
    %cst_18 = arith.constant dense<0.000000e+00> : vector<16x256xf32>
    %18 = tpu.matmul %15, %17, %cst_18 {dimension_numbers = #tpu.dot_dimension_numbers<[1], [0], [0], [1], [0, 0, 1, 1], [], []>} : vector<16x48xbf16>, vector<48x256xbf16>, vector<16x256xf32> -> vector<16x256xf32>
    %19 = arith.addf %13, %18 : vector<16x256xf32>
    %c2 = arith.constant 2 : index
    %c0_19 = arith.constant 0 : index
    %20 = vector.load %arg23[%c2, %c0_19] : memref<18x48xf32, #tpu.memory_space<vmem>>, vector<16x48xf32>
    %21 = arith.truncf %20 : vector<16x48xf32> to vector<16x48xbf16>
    %c2_20 = arith.constant 2 : index
    %c0_21 = arith.constant 0 : index
    %c0_22 = arith.constant 0 : index
    %22 = vector.load %arg2[%c2_20, %c0_21, %c0_22] : memref<3x48x256xbf16, #tpu.memory_space<vmem>>, vector<1x48x256xbf16>
    %23 = vector.shape_cast %22 : vector<1x48x256xbf16> to vector<48x256xbf16>
    %cst_23 = arith.constant dense<0.000000e+00> : vector<16x256xf32>
    %24 = tpu.matmul %21, %23, %cst_23 {dimension_numbers = #tpu.dot_dimension_numbers<[1], [0], [0], [1], [0, 0, 1, 1], [], []>} : vector<16x48xbf16>, vector<48x256xbf16>, vector<16x256xf32> -> vector<16x256xf32>
    %25 = arith.addf %19, %24 : vector<16x256xf32>
    %c0_24 = arith.constant 0 : index
    %c0_25 = arith.constant 0 : index
    %26 = vector.load %arg3[%c0_24, %c0_25] : memref<1x256xf32, #tpu.memory_space<vmem>>, vector<1x256xf32>
    %27 = vector.broadcast %26 : vector<1x256xf32> to vector<16x256xf32>
    %28 = arith.addf %25, %27 : vector<16x256xf32>
    %cst_26 = arith.constant 0.000000e+00 : f32
    %29 = vector.broadcast %cst_26 : f32 to vector<16x256xf32>
    %30 = arith.maximumf %28, %29 : vector<16x256xf32>
    %c0_27 = arith.constant 0 : index
    %c0_28 = arith.constant 0 : index
    %31 = vector.load %arg4[%c0_27, %c0_28] : memref<8x16xf32, #tpu.memory_space<vmem>>, vector<8x16xf32>
    %cst_29 = arith.constant dense<0.000000e+00> : vector<8x256xf32>
    %32 = tpu.matmul %31, %30, %cst_29 {dimension_numbers = #tpu.dot_dimension_numbers<[1], [0], [0], [1], [0, 0, 1, 1], [], []>} : vector<8x16xf32>, vector<16x256xf32>, vector<8x256xf32> -> vector<8x256xf32>
    %c0_30 = arith.constant 0 : index
    %c0_31 = arith.constant 0 : index
    %33 = vector.load %arg5[%c0_30, %c0_31] : memref<8x16xf32, #tpu.memory_space<vmem>>, vector<8x16xf32>
    %cst_32 = arith.constant dense<0.000000e+00> : vector<8x256xf32>
    %34 = tpu.matmul %33, %30, %cst_32 {dimension_numbers = #tpu.dot_dimension_numbers<[1], [0], [0], [1], [0, 0, 1, 1], [], []>} : vector<8x16xf32>, vector<16x256xf32>, vector<8x256xf32> -> vector<8x256xf32>
    %35 = arith.maximumf %32, %34 : vector<8x256xf32>
    %c0_33 = arith.constant 0 : index
    %c0_34 = arith.constant 0 : index
    %36 = vector.load %arg6[%c0_33, %c0_34] : memref<256x128xf32, #tpu.memory_space<vmem>>, vector<256x128xf32>
    %cst_35 = arith.constant dense<0.000000e+00> : vector<8x128xf32>
    %37 = tpu.matmul %35, %36, %cst_35 {dimension_numbers = #tpu.dot_dimension_numbers<[1], [0], [0], [1], [0, 0, 1, 1], [], []>} : vector<8x256xf32>, vector<256x128xf32>, vector<8x128xf32> -> vector<8x128xf32>
    %c0_36 = arith.constant 0 : index
    %c0_37 = arith.constant 0 : index
    %38 = vector.load %arg7[%c0_36, %c0_37] : memref<256x128xf32, #tpu.memory_space<vmem>>, vector<256x128xf32>
    %cst_38 = arith.constant dense<0.000000e+00> : vector<8x128xf32>
    %39 = tpu.matmul %35, %38, %cst_38 {dimension_numbers = #tpu.dot_dimension_numbers<[1], [0], [0], [1], [0, 0, 1, 1], [], []>} : vector<8x256xf32>, vector<256x128xf32>, vector<8x128xf32> -> vector<8x128xf32>
    %40 = arith.maximumf %37, %39 : vector<8x128xf32>
    %cst_39 = arith.constant 0.000000e+00 : f32
    %41 = vector.broadcast %cst_39 : f32 to vector<1x128xf32>
    %c0_40 = arith.constant 0 : index
    %c0_41 = arith.constant 0 : index
    %42 = vector.load %arg24[%c0_40, %c0_41] : memref<10x128xf32, #tpu.memory_space<vmem>>, vector<1x128xf32>
    tpu.vector_store %arg24[%c0_40, %c0_41], %41 {strides = array<i32>} : memref<10x128xf32, #tpu.memory_space<vmem>>, vector<1x128xf32>,
    %c9 = arith.constant 9 : index
    %c0_42 = arith.constant 0 : index
    %43 = vector.load %arg24[%c9, %c0_42] : memref<10x128xf32, #tpu.memory_space<vmem>>, vector<1x128xf32>
    tpu.vector_store %arg24[%c9, %c0_42], %41 {strides = array<i32>} : memref<10x128xf32, #tpu.memory_space<vmem>>, vector<1x128xf32>,
    %c1_43 = arith.constant 1 : index
    %c0_44 = arith.constant 0 : index
    %44 = vector.load %arg24[%c1_43, %c0_44] : memref<10x128xf32, #tpu.memory_space<vmem>>, vector<8x128xf32>
    tpu.vector_store %arg24[%c1_43, %c0_44], %40 {strides = array<i32>} : memref<10x128xf32, #tpu.memory_space<vmem>>, vector<8x128xf32>,
    %cst_45 = arith.constant 0.000000e+00 : f32
    %45 = vector.broadcast %cst_45 : f32 to vector<8x256xf32>
    %c0_46 = arith.constant 0 : index
    %c0_47 = arith.constant 0 : index
    %46 = vector.load %arg24[%c0_46, %c0_47] : memref<10x128xf32, #tpu.memory_space<vmem>>, vector<8x128xf32>
    %47 = arith.truncf %46 : vector<8x128xf32> to vector<8x128xbf16>
    %c0_48 = arith.constant 0 : index
    %c0_49 = arith.constant 0 : index
    %c0_50 = arith.constant 0 : index
    %48 = vector.load %arg8[%c0_48, %c0_49, %c0_50] : memref<3x128x256xbf16, #tpu.memory_space<vmem>>, vector<1x128x256xbf16>
    %49 = vector.shape_cast %48 : vector<1x128x256xbf16> to vector<128x256xbf16>
    %cst_51 = arith.constant dense<0.000000e+00> : vector<8x256xf32>
    %50 = tpu.matmul %47, %49, %cst_51 {dimension_numbers = #tpu.dot_dimension_numbers<[1], [0], [0], [1], [0, 0, 1, 1], [], []>} : vector<8x128xbf16>, vector<128x256xbf16>, vector<8x256xf32> -> vector<8x256xf32>
    %51 = arith.addf %45, %50 : vector<8x256xf32>
    %c1_52 = arith.constant 1 : index
    %c0_53 = arith.constant 0 : index
    %52 = vector.load %arg24[%c1_52, %c0_53] : memref<10x128xf32, #tpu.memory_space<vmem>>, vector<8x128xf32>
    %53 = arith.truncf %52 : vector<8x128xf32> to vector<8x128xbf16>
    %c1_54 = arith.constant 1 : index
    %c0_55 = arith.constant 0 : index
    %c0_56 = arith.constant 0 : index
    %54 = vector.load %arg8[%c1_54, %c0_55, %c0_56] : memref<3x128x256xbf16, #tpu.memory_space<vmem>>, vector<1x128x256xbf16>
    %55 = vector.shape_cast %54 : vector<1x128x256xbf16> to vector<128x256xbf16>
    %cst_57 = arith.constant dense<0.000000e+00> : vector<8x256xf32>
    %56 = tpu.matmul %53, %55, %cst_57 {dimension_numbers = #tpu.dot_dimension_numbers<[1], [0], [0], [1], [0, 0, 1, 1], [], []>} : vector<8x128xbf16>, vector<128x256xbf16>, vector<8x256xf32> -> vector<8x256xf32>
    %57 = arith.addf %51, %56 : vector<8x256xf32>
    %c2_58 = arith.constant 2 : index
    %c0_59 = arith.constant 0 : index
    %58 = vector.load %arg24[%c2_58, %c0_59] : memref<10x128xf32, #tpu.memory_space<vmem>>, vector<8x128xf32>
    %59 = arith.truncf %58 : vector<8x128xf32> to vector<8x128xbf16>
    %c2_60 = arith.constant 2 : index
    %c0_61 = arith.constant 0 : index
    %c0_62 = arith.constant 0 : index
    %60 = vector.load %arg8[%c2_60, %c0_61, %c0_62] : memref<3x128x256xbf16, #tpu.memory_space<vmem>>, vector<1x128x256xbf16>
    %61 = vector.shape_cast %60 : vector<1x128x256xbf16> to vector<128x256xbf16>
    %cst_63 = arith.constant dense<0.000000e+00> : vector<8x256xf32>
    %62 = tpu.matmul %59, %61, %cst_63 {dimension_numbers = #tpu.dot_dimension_numbers<[1], [0], [0], [1], [0, 0, 1, 1], [], []>} : vector<8x128xbf16>, vector<128x256xbf16>, vector<8x256xf32> -> vector<8x256xf32>
    %63 = arith.addf %57, %62 : vector<8x256xf32>
    %c0_64 = arith.constant 0 : index
    %c0_65 = arith.constant 0 : index
    %64 = vector.load %arg9[%c0_64, %c0_65] : memref<1x256xf32, #tpu.memory_space<vmem>>, vector<1x256xf32>
    %65 = vector.broadcast %64 : vector<1x256xf32> to vector<8x256xf32>
    %66 = arith.addf %63, %65 : vector<8x256xf32>
    %cst_66 = arith.constant 0.000000e+00 : f32
    %67 = vector.broadcast %cst_66 : f32 to vector<8x256xf32>
    %68 = arith.maximumf %66, %67 : vector<8x256xf32>
    %c0_67 = arith.constant 0 : index
    %c0_68 = arith.constant 0 : index
    %69 = vector.load %arg10[%c0_67, %c0_68] : memref<4x8xf32, #tpu.memory_space<vmem>>, vector<4x8xf32>
    %cst_69 = arith.constant dense<0.000000e+00> : vector<4x256xf32>
    %70 = tpu.matmul %69, %68, %cst_69 {dimension_numbers = #tpu.dot_dimension_numbers<[1], [0], [0], [1], [0, 0, 1, 1], [], []>} : vector<4x8xf32>, vector<8x256xf32>, vector<4x256xf32> -> vector<4x256xf32>
    %c0_70 = arith.constant 0 : index
    %c0_71 = arith.constant 0 : index
    %71 = vector.load %arg11[%c0_70, %c0_71] : memref<4x8xf32, #tpu.memory_space<vmem>>, vector<4x8xf32>
    %cst_72 = arith.constant dense<0.000000e+00> : vector<4x256xf32>
    %72 = tpu.matmul %71, %68, %cst_72 {dimension_numbers = #tpu.dot_dimension_numbers<[1], [0], [0], [1], [0, 0, 1, 1], [], []>} : vector<4x8xf32>, vector<8x256xf32>, vector<4x256xf32> -> vector<4x256xf32>
    %73 = arith.maximumf %70, %72 : vector<4x256xf32>
    %c0_73 = arith.constant 0 : index
    %c0_74 = arith.constant 0 : index
    %74 = vector.load %arg12[%c0_73, %c0_74] : memref<256x128xf32, #tpu.memory_space<vmem>>, vector<256x128xf32>
    %cst_75 = arith.constant dense<0.000000e+00> : vector<4x128xf32>
    %75 = tpu.matmul %73, %74, %cst_75 {dimension_numbers = #tpu.dot_dimension_numbers<[1], [0], [0], [1], [0, 0, 1, 1], [], []>} : vector<4x256xf32>, vector<256x128xf32>, vector<4x128xf32> -> vector<4x128xf32>
    %c0_76 = arith.constant 0 : index
    %c0_77 = arith.constant 0 : index
    %76 = vector.load %arg13[%c0_76, %c0_77] : memref<256x128xf32, #tpu.memory_space<vmem>>, vector<256x128xf32>
    %cst_78 = arith.constant dense<0.000000e+00> : vector<4x128xf32>
    %77 = tpu.matmul %73, %76, %cst_78 {dimension_numbers = #tpu.dot_dimension_numbers<[1], [0], [0], [1], [0, 0, 1, 1], [], []>} : vector<4x256xf32>, vector<256x128xf32>, vector<4x128xf32> -> vector<4x128xf32>
    %78 = arith.maximumf %75, %77 : vector<4x128xf32>
    %cst_79 = arith.constant 0.000000e+00 : f32
    %79 = vector.broadcast %cst_79 : f32 to vector<1x128xf32>
    %c0_80 = arith.constant 0 : index
    %c0_81 = arith.constant 0 : index
    %80 = vector.load %arg25[%c0_80, %c0_81] : memref<6x128xf32, #tpu.memory_space<vmem>>, vector<1x128xf32>
    tpu.vector_store %arg25[%c0_80, %c0_81], %79 {strides = array<i32>} : memref<6x128xf32, #tpu.memory_space<vmem>>, vector<1x128xf32>,
    %c5 = arith.constant 5 : index
    %c0_82 = arith.constant 0 : index
    %81 = vector.load %arg25[%c5, %c0_82] : memref<6x128xf32, #tpu.memory_space<vmem>>, vector<1x128xf32>
    tpu.vector_store %arg25[%c5, %c0_82], %79 {strides = array<i32>} : memref<6x128xf32, #tpu.memory_space<vmem>>, vector<1x128xf32>,
    %c1_83 = arith.constant 1 : index
    %c0_84 = arith.constant 0 : index
    %82 = vector.load %arg25[%c1_83, %c0_84] : memref<6x128xf32, #tpu.memory_space<vmem>>, vector<4x128xf32>
    tpu.vector_store %arg25[%c1_83, %c0_84], %78 {strides = array<i32>} : memref<6x128xf32, #tpu.memory_space<vmem>>, vector<4x128xf32>,
    %cst_85 = arith.constant 0.000000e+00 : f32
    %83 = vector.broadcast %cst_85 : f32 to vector<4x256xf32>
    %c0_86 = arith.constant 0 : index
    %c0_87 = arith.constant 0 : index
    %84 = vector.load %arg25[%c0_86, %c0_87] : memref<6x128xf32, #tpu.memory_space<vmem>>, vector<4x128xf32>
    %85 = arith.truncf %84 : vector<4x128xf32> to vector<4x128xbf16>
    %c0_88 = arith.constant 0 : index
    %c0_89 = arith.constant 0 : index
    %c0_90 = arith.constant 0 : index
    %86 = vector.load %arg14[%c0_88, %c0_89, %c0_90] : memref<3x128x256xbf16, #tpu.memory_space<vmem>>, vector<1x128x256xbf16>
    %87 = vector.shape_cast %86 : vector<1x128x256xbf16> to vector<128x256xbf16>
    %cst_91 = arith.constant dense<0.000000e+00> : vector<4x256xf32>
    %88 = tpu.matmul %85, %87, %cst_91 {dimension_numbers = #tpu.dot_dimension_numbers<[1], [0], [0], [1], [0, 0, 1, 1], [], []>} : vector<4x128xbf16>, vector<128x256xbf16>, vector<4x256xf32> -> vector<4x256xf32>
    %89 = arith.addf %83, %88 : vector<4x256xf32>
    %c1_92 = arith.constant 1 : index
    %c0_93 = arith.constant 0 : index
    %90 = vector.load %arg25[%c1_92, %c0_93] : memref<6x128xf32, #tpu.memory_space<vmem>>, vector<4x128xf32>
    %91 = arith.truncf %90 : vector<4x128xf32> to vector<4x128xbf16>
    %c1_94 = arith.constant 1 : index
    %c0_95 = arith.constant 0 : index
    %c0_96 = arith.constant 0 : index
    %92 = vector.load %arg14[%c1_94, %c0_95, %c0_96] : memref<3x128x256xbf16, #tpu.memory_space<vmem>>, vector<1x128x256xbf16>
    %93 = vector.shape_cast %92 : vector<1x128x256xbf16> to vector<128x256xbf16>
    %cst_97 = arith.constant dense<0.000000e+00> : vector<4x256xf32>
    %94 = tpu.matmul %91, %93, %cst_97 {dimension_numbers = #tpu.dot_dimension_numbers<[1], [0], [0], [1], [0, 0, 1, 1], [], []>} : vector<4x128xbf16>, vector<128x256xbf16>, vector<4x256xf32> -> vector<4x256xf32>
    %95 = arith.addf %89, %94 : vector<4x256xf32>
    %c2_98 = arith.constant 2 : index
    %c0_99 = arith.constant 0 : index
    %96 = vector.load %arg25[%c2_98, %c0_99] : memref<6x128xf32, #tpu.memory_space<vmem>>, vector<4x128xf32>
    %97 = arith.truncf %96 : vector<4x128xf32> to vector<4x128xbf16>
    %c2_100 = arith.constant 2 : index
    %c0_101 = arith.constant 0 : index
    %c0_102 = arith.constant 0 : index
    %98 = vector.load %arg14[%c2_100, %c0_101, %c0_102] : memref<3x128x256xbf16, #tpu.memory_space<vmem>>, vector<1x128x256xbf16>
    %99 = vector.shape_cast %98 : vector<1x128x256xbf16> to vector<128x256xbf16>
    %cst_103 = arith.constant dense<0.000000e+00> : vector<4x256xf32>
    %100 = tpu.matmul %97, %99, %cst_103 {dimension_numbers = #tpu.dot_dimension_numbers<[1], [0], [0], [1], [0, 0, 1, 1], [], []>} : vector<4x128xbf16>, vector<128x256xbf16>, vector<4x256xf32> -> vector<4x256xf32>
    %101 = arith.addf %95, %100 : vector<4x256xf32>
    %c0_104 = arith.constant 0 : index
    %c0_105 = arith.constant 0 : index
    %102 = vector.load %arg15[%c0_104, %c0_105] : memref<1x256xf32, #tpu.memory_space<vmem>>, vector<1x256xf32>
    %103 = vector.broadcast %102 : vector<1x256xf32> to vector<4x256xf32>
    %104 = arith.addf %101, %103 : vector<4x256xf32>
    %cst_106 = arith.constant 0.000000e+00 : f32
    %105 = vector.broadcast %cst_106 : f32 to vector<4x256xf32>
    %106 = arith.maximumf %104, %105 : vector<4x256xf32>
    %c0_107 = arith.constant 0 : index
    %c0_108 = arith.constant 0 : index
    %107 = vector.load %arg16[%c0_107, %c0_108] : memref<2x4xf32, #tpu.memory_space<vmem>>, vector<2x4xf32>
    %cst_109 = arith.constant dense<0.000000e+00> : vector<2x256xf32>
    %108 = tpu.matmul %107, %106, %cst_109 {dimension_numbers = #tpu.dot_dimension_numbers<[1], [0], [0], [1], [0, 0, 1, 1], [], []>} : vector<2x4xf32>, vector<4x256xf32>, vector<2x256xf32> -> vector<2x256xf32>
    %c0_110 = arith.constant 0 : index
    %c0_111 = arith.constant 0 : index
    %109 = vector.load %arg17[%c0_110, %c0_111] : memref<2x4xf32, #tpu.memory_space<vmem>>, vector<2x4xf32>
    %cst_112 = arith.constant dense<0.000000e+00> : vector<2x256xf32>
    %110 = tpu.matmul %109, %106, %cst_112 {dimension_numbers = #tpu.dot_dimension_numbers<[1], [0], [0], [1], [0, 0, 1, 1], [], []>} : vector<2x4xf32>, vector<4x256xf32>, vector<2x256xf32> -> vector<2x256xf32>
    %111 = arith.maximumf %108, %110 : vector<2x256xf32>
    %c0_113 = arith.constant 0 : index
    %c0_114 = arith.constant 0 : index
    %112 = vector.load %arg18[%c0_113, %c0_114] : memref<256x128xf32, #tpu.memory_space<vmem>>, vector<256x128xf32>
    %cst_115 = arith.constant dense<0.000000e+00> : vector<2x128xf32>
    %113 = tpu.matmul %111, %112, %cst_115 {dimension_numbers = #tpu.dot_dimension_numbers<[1], [0], [0], [1], [0, 0, 1, 1], [], []>} : vector<2x256xf32>, vector<256x128xf32>, vector<2x128xf32> -> vector<2x128xf32>
    %c0_116 = arith.constant 0 : index
    %c0_117 = arith.constant 0 : index
    %114 = vector.load %arg19[%c0_116, %c0_117] : memref<256x128xf32, #tpu.memory_space<vmem>>, vector<256x128xf32>
    %cst_118 = arith.constant dense<0.000000e+00> : vector<2x128xf32>
    %115 = tpu.matmul %111, %114, %cst_118 {dimension_numbers = #tpu.dot_dimension_numbers<[1], [0], [0], [1], [0, 0, 1, 1], [], []>} : vector<2x256xf32>, vector<256x128xf32>, vector<2x128xf32> -> vector<2x128xf32>
    %116 = arith.maximumf %113, %115 : vector<2x128xf32>
    %c0_119 = arith.constant 0 : index
    %c0_120 = arith.constant 0 : index
    %117 = vector.load %arg21[%c0_119, %c0_120] : memref<1x2xf32, #tpu.memory_space<vmem>>, vector<1x2xf32>
    %118 = vector.extract_strided_slice %116 {offsets = [0, 0], sizes = [1, 128], strides = [1, 1]} : vector<2x128xf32> to vector<1x128xf32>
    %c0_121 = arith.constant 0 : index
    %c0_122 = arith.constant 0 : index
    %c0_123 = arith.constant 0 : index
    %119 = vector.load %arg20[%c0_121, %c0_122, %c0_123] : memref<2x128x2xf32, #tpu.memory_space<vmem>>, vector<1x128x2xf32>
    %120 = vector.shape_cast %119 : vector<1x128x2xf32> to vector<128x2xf32>
    %cst_124 = arith.constant dense<0.000000e+00> : vector<1x2xf32>
    %121 = tpu.matmul %118, %120, %cst_124 {dimension_numbers = #tpu.dot_dimension_numbers<[1], [0], [0], [1], [0, 0, 1, 1], [], []>} : vector<1x128xf32>, vector<128x2xf32>, vector<1x2xf32> -> vector<1x2xf32>
    %122 = arith.addf %117, %121 : vector<1x2xf32>
    %123 = vector.extract_strided_slice %116 {offsets = [1, 0], sizes = [1, 128], strides = [1, 1]} : vector<2x128xf32> to vector<1x128xf32>
    %c1_125 = arith.constant 1 : index
    %c0_126 = arith.constant 0 : index
    %c0_127 = arith.constant 0 : index
    %124 = vector.load %arg20[%c1_125, %c0_126, %c0_127] : memref<2x128x2xf32, #tpu.memory_space<vmem>>, vector<1x128x2xf32>
    %125 = vector.shape_cast %124 : vector<1x128x2xf32> to vector<128x2xf32>
    %cst_128 = arith.constant dense<0.000000e+00> : vector<1x2xf32>
    %126 = tpu.matmul %123, %125, %cst_128 {dimension_numbers = #tpu.dot_dimension_numbers<[1], [0], [0], [1], [0, 0, 1, 1], [], []>} : vector<1x128xf32>, vector<128x2xf32>, vector<1x2xf32> -> vector<1x2xf32>
    %127 = arith.addf %122, %126 : vector<1x2xf32>
    %128 = arith.mulf %127, %127 : vector<1x2xf32>
    %cst_129 = arith.constant dense<0.000000e+00> : vector<1xf32>
    %129 = vector.multi_reduction <add>, %128, %cst_129 [1] : vector<1x2xf32> to vector<1xf32>
    %130 = vector.shape_cast %129 : vector<1xf32> to vector<1x1xf32>
    %cst_130 = arith.constant 9.99999996E-13 : f32
    %131 = vector.broadcast %cst_130 : f32 to vector<1x1xf32>
    %132 = arith.addf %130, %131 : vector<1x1xf32>
    %133 = math.rsqrt %132 : vector<1x1xf32>
    %134 = vector.broadcast %133 : vector<1x1xf32> to vector<1x2xf32>
    %135 = arith.mulf %127, %134 : vector<1x2xf32>
    %c0_131 = arith.constant 0 : index
    %c0_132 = arith.constant 0 : index
    %c0_133 = arith.constant 0 : index
    %136 = vector.load %arg22[%c0_131, %c0_132, %c0_133] : memref<1x1x2xf32, #tpu.memory_space<vmem>>, vector<1x1x2xf32>
    %137 = vector.shape_cast %136 : vector<1x1x2xf32> to vector<1x2xf32>
    %138 = vector.shape_cast %135 : vector<1x2xf32> to vector<1x1x2xf32>
    tpu.vector_store %arg22[%c0_131, %c0_132, %c0_133], %138 {strides = array<i32>} : memref<1x1x2xf32, #tpu.memory_space<vmem>>, vector<1x1x2xf32>,
    return
  }
  func.func @transform_0(%arg0: i32) -> (i32, i32, i32) {
    %c0_i32 = arith.constant 0 : i32
    %c0_i32_0 = arith.constant 0 : i32
    %c0_i32_1 = arith.constant 0 : i32
    return %arg0, %c0_i32, %c0_i32_0 : i32, i32, i32
  }
  func.func @transform_1(%arg0: i32) -> (i32, i32, i32) {
    %c0_i32 = arith.constant 0 : i32
    %c0_i32_0 = arith.constant 0 : i32
    %c0_i32_1 = arith.constant 0 : i32
    %c0_i32_2 = arith.constant 0 : i32
    return %c0_i32, %c0_i32_0, %c0_i32_1 : i32, i32, i32
  }
  func.func @transform_2(%arg0: i32) -> (i32, i32) {
    %c0_i32 = arith.constant 0 : i32
    %c0_i32_0 = arith.constant 0 : i32
    %c0_i32_1 = arith.constant 0 : i32
    return %c0_i32, %c0_i32_0 : i32, i32
  }
  func.func @transform_3(%arg0: i32) -> (i32, i32) {
    %c0_i32 = arith.constant 0 : i32
    %c0_i32_0 = arith.constant 0 : i32
    %c0_i32_1 = arith.constant 0 : i32
    return %c0_i32, %c0_i32_0 : i32, i32
  }
  func.func @transform_4(%arg0: i32) -> (i32, i32) {
    %c0_i32 = arith.constant 0 : i32
    %c0_i32_0 = arith.constant 0 : i32
    %c0_i32_1 = arith.constant 0 : i32
    return %c0_i32, %c0_i32_0 : i32, i32
  }
  func.func @transform_5(%arg0: i32) -> (i32, i32) {
    %c0_i32 = arith.constant 0 : i32
    %c0_i32_0 = arith.constant 0 : i32
    %c0_i32_1 = arith.constant 0 : i32
    return %c0_i32, %c0_i32_0 : i32, i32
  }
  func.func @transform_6(%arg0: i32) -> (i32, i32) {
    %c0_i32 = arith.constant 0 : i32
    %c0_i32_0 = arith.constant 0 : i32
    %c0_i32_1 = arith.constant 0 : i32
    return %c0_i32, %c0_i32_0 : i32, i32
  }
  func.func @transform_7(%arg0: i32) -> (i32, i32, i32) {
    %c0_i32 = arith.constant 0 : i32
    %c0_i32_0 = arith.constant 0 : i32
    %c0_i32_1 = arith.constant 0 : i32
    %c0_i32_2 = arith.constant 0 : i32
    return %c0_i32, %c0_i32_0, %c0_i32_1 : i32, i32, i32
  }
  func.func @transform_8(%arg0: i32) -> (i32, i32) {
    %c0_i32 = arith.constant 0 : i32
    %c0_i32_0 = arith.constant 0 : i32
    %c0_i32_1 = arith.constant 0 : i32
    return %c0_i32, %c0_i32_0 : i32, i32
  }
  func.func @transform_9(%arg0: i32) -> (i32, i32) {
    %c0_i32 = arith.constant 0 : i32
    %c0_i32_0 = arith.constant 0 : i32
    %c0_i32_1 = arith.constant 0 : i32
    return %c0_i32, %c0_i32_0 : i32, i32
  }
  func.func @transform_10(%arg0: i32) -> (i32, i32) {
    %c0_i32 = arith.constant 0 : i32
    %c0_i32_0 = arith.constant 0 : i32
    %c0_i32_1 = arith.constant 0 : i32
    return %c0_i32, %c0_i32_0 : i32, i32
  }
  func.func @transform_11(%arg0: i32) -> (i32, i32) {
    %c0_i32 = arith.constant 0 : i32
    %c0_i32_0 = arith.constant 0 : i32
    %c0_i32_1 = arith.constant 0 : i32
    return %c0_i32, %c0_i32_0 : i32, i32
  }
  func.func @transform_12(%arg0: i32) -> (i32, i32) {
    %c0_i32 = arith.constant 0 : i32
    %c0_i32_0 = arith.constant 0 : i32
    %c0_i32_1 = arith.constant 0 : i32
    return %c0_i32, %c0_i32_0 : i32, i32
  }
  func.func @transform_13(%arg0: i32) -> (i32, i32, i32) {
    %c0_i32 = arith.constant 0 : i32
    %c0_i32_0 = arith.constant 0 : i32
    %c0_i32_1 = arith.constant 0 : i32
    %c0_i32_2 = arith.constant 0 : i32
    return %c0_i32, %c0_i32_0, %c0_i32_1 : i32, i32, i32
  }
  func.func @transform_14(%arg0: i32) -> (i32, i32) {
    %c0_i32 = arith.constant 0 : i32
    %c0_i32_0 = arith.constant 0 : i32
    %c0_i32_1 = arith.constant 0 : i32
    return %c0_i32, %c0_i32_0 : i32, i32
  }
  func.func @transform_15(%arg0: i32) -> (i32, i32) {
    %c0_i32 = arith.constant 0 : i32
    %c0_i32_0 = arith.constant 0 : i32
    %c0_i32_1 = arith.constant 0 : i32
    return %c0_i32, %c0_i32_0 : i32, i32
  }
  func.func @transform_16(%arg0: i32) -> (i32, i32) {
    %c0_i32 = arith.constant 0 : i32
    %c0_i32_0 = arith.constant 0 : i32
    %c0_i32_1 = arith.constant 0 : i32
    return %c0_i32, %c0_i32_0 : i32, i32
  }
  func.func @transform_17(%arg0: i32) -> (i32, i32) {
    %c0_i32 = arith.constant 0 : i32
    %c0_i32_0 = arith.constant 0 : i32
    %c0_i32_1 = arith.constant 0 : i32
    return %c0_i32, %c0_i32_0 : i32, i32
  }
  func.func @transform_18(%arg0: i32) -> (i32, i32) {
    %c0_i32 = arith.constant 0 : i32
    %c0_i32_0 = arith.constant 0 : i32
    %c0_i32_1 = arith.constant 0 : i32
    return %c0_i32, %c0_i32_0 : i32, i32
  }
  func.func @transform_19(%arg0: i32) -> (i32, i32, i32) {
    %c0_i32 = arith.constant 0 : i32
    %c0_i32_0 = arith.constant 0 : i32
    %c0_i32_1 = arith.constant 0 : i32
    %c0_i32_2 = arith.constant 0 : i32
    return %c0_i32, %c0_i32_0, %c0_i32_1 : i32, i32, i32
  }
  func.func @transform_20(%arg0: i32) -> (i32, i32) {
    %c0_i32 = arith.constant 0 : i32
    %c0_i32_0 = arith.constant 0 : i32
    %c0_i32_1 = arith.constant 0 : i32
    return %c0_i32, %c0_i32_0 : i32, i32
  }
  func.func @transform_21(%arg0: i32) -> (i32, i32, i32) {
    %c0_i32 = arith.constant 0 : i32
    %c0_i32_0 = arith.constant 0 : i32
    %c0_i32_1 = arith.constant 0 : i32
    return %arg0, %c0_i32, %c0_i32_0 : i32, i32, i32
  }
}

</mosaic_0001>

<llo_original>
// kernel: forward.1
$region0: #{forward.1}
  #allocation0 [shape = 'u32[]', space=smem, size = 0x4, offset = 0x4, fixed_abs, tag = 'smem constant byte address 0x4 - core index']
  #allocation1 [shape = 'u32[144,128]{1,0:T(1,128)}', space=vmem, size = 0x12000, scoped, tag = 'internal scratch']
  #allocation2 [shape = 'f32[18,48]{1,0:T(8,128)}', space=vmem, size = 0x3000, scoped, tag = 'scratch operand']
  #allocation3 [shape = 'f32[10,128]{1,0:T(8,128)}', space=vmem, size = 0x2000, scoped, tag = 'scratch operand']
  #allocation4 [shape = 'f32[6,128]{1,0:T(8,128)}', space=vmem, size = 0x1000, scoped, tag = 'scratch operand']
  %s0 = inlined_call_operand.vmem [shape: bf16[2,16,48], index: 0, kind: input, shape index: {}]
  %s1 = inlined_call_operand.vmem [shape: bf16[3,48,256], index: 1, kind: input, shape index: {}]
  %s2 = inlined_call_operand.vmem [shape: f32[1,256], index: 2, kind: input, shape index: {}]
  %s3 = inlined_call_operand.vmem [shape: f32[8,16], index: 3, kind: input, shape index: {}]
  %s4 = inlined_call_operand.vmem [shape: f32[8,16], index: 4, kind: input, shape index: {}]
  %s5 = inlined_call_operand.hbm [shape: f32[256,128], index: 5, kind: input, shape index: {}]
  %s6 = inlined_call_operand.hbm [shape: f32[256,128], index: 6, kind: input, shape index: {}]
  %s7 = inlined_call_operand.vmem [shape: bf16[3,128,256], index: 7, kind: input, shape index: {}]
  %s8 = inlined_call_operand.vmem [shape: f32[1,256], index: 8, kind: input, shape index: {}]
  %s9 = inlined_call_operand.vmem [shape: f32[4,8], index: 9, kind: input, shape index: {}]
  %s10 = inlined_call_operand.vmem [shape: f32[4,8], index: 10, kind: input, shape index: {}]
  %s11 = inlined_call_operand.hbm [shape: f32[256,128], index: 11, kind: input, shape index: {}]
  %s12 = inlined_call_operand.hbm [shape: f32[256,128], index: 12, kind: input, shape index: {}]
  %s13 = inlined_call_operand.hbm [shape: bf16[3,128,256], index: 13, kind: input, shape index: {}]
  %s14 = inlined_call_operand.vmem [shape: f32[1,256], index: 14, kind: input, shape index: {}]
  %s15 = inlined_call_operand.vmem [shape: f32[2,4], index: 15, kind: input, shape index: {}]
  %s16 = inlined_call_operand.vmem [shape: f32[2,4], index: 16, kind: input, shape index: {}]
  %s17 = inlined_call_operand.hbm [shape: f32[256,128], index: 17, kind: input, shape index: {}]
  %s18 = inlined_call_operand.hbm [shape: f32[256,128], index: 18, kind: input, shape index: {}]
  %s19 = inlined_call_operand.vmem [shape: f32[2,128,2], index: 19, kind: input, shape index: {}]
  %s20 = inlined_call_operand.vmem [shape: f32[1,2], index: 20, kind: input, shape index: {}]
  %s21 = inlined_call_operand.hbm [shape: f32[2,1,2], index: 21, kind: output, shape index: {}]
  %s22 = sld [smem:[#allocation0]]
  $region145: #{forward.1} parent=0
    _
  %s24 = ssub.s32 1, %s22
  %s25 = scalar_select 0, %s24, %s22
  $region1: #{forward.1} parent=0
    #allocation5 [shape = 'u8[131072]{0}', space=vmem, size = 0x20000, scoped, tag = 'input window, operand 5, single buffered']
    #allocation6 [shape = 's32[2]{0}', space=sflag, size = 0x8, scoped, tag = 'scoped memory for forward.1']
    #allocation7 [shape = 's32[2]{0}', space=sflag, size = 0x8, scoped, tag = 'scoped memory for forward.1']
    #allocation8 [shape = 'u8[131072]{0}', space=vmem, size = 0x20000, scoped, tag = 'input window, operand 6, single buffered']
    #allocation9 [shape = 's32[1]{0}', space=sflag, size = 0x4, scoped, tag = 'scoped memory for forward.1']
    #allocation10 [shape = 'u8[131072]{0}', space=vmem, size = 0x20000, scoped, tag = 'input window, operand 11, single buffered']
    #allocation11 [shape = 'u8[131072]{0}', space=vmem, size = 0x20000, scoped, tag = 'input window, operand 12, single buffered']
    #allocation12 [shape = 's32[1]{0}', space=sflag, size = 0x4, scoped, tag = 'scoped memory for forward.1']
    #allocation13 [shape = 'u8[196608]{0}', space=vmem, size = 0x30000, scoped, tag = 'input window, operand 13, single buffered']
    #allocation14 [shape = 'u8[131072]{0}', space=vmem, size = 0x20000, scoped, tag = 'input window, operand 17, single buffered']
    #allocation15 [shape = 's32[1]{0}', space=sflag, size = 0x4, scoped, tag = 'scoped memory for forward.1']
    #allocation16 [shape = 'u8[131072]{0}', space=vmem, size = 0x20000, scoped, tag = 'input window, operand 18, single buffered']
    #allocation17 [shape = 'u8[1024]{0}', space=vmem, size = 0x400, scoped, tag = 'output window, operand 0']
    %26 = vsyncpa [#allocation6], 0
    %27 = vsyncpa [#allocation9], 0
    %28 = vsyncpa [#allocation12], 0
    %29 = vsyncpa [#allocation15], 0
    %30 = vsyncpa [#allocation7], 0
    %s31 = scalar_lea.sflag [#allocation7], 1
    %32 = vsyncpa %s31, 0
    loop: start=0, step=1, limit=4
    $region2: #{forward.1} parent=1 // loop_pre_header
      _
    $region3: #{forward.1} parent=1 // loop_header
      %s34 = sphi 0, %s38
      %p35 = scmp.ge.s32.totalorder %s34, 4
      %s44 = sphi 0, %s46
      %s47 = sphi 0, %s44
      %s48 = sphi 0, %s47
      %s64 = sphi 0, %s48
      %s68 = sphi 0, %s68
      %s70 = sphi 0, %s68
      %s71 = sphi 0, %s70
      %s85 = sphi 0, %s71
      %s89 = sphi 0, %s89
      %s91 = sphi 0, %s89
      %s92 = sphi 0, %s91
      %s106 = sphi 0, %s92
      %s110 = sphi 0, %s110
      %s112 = sphi 0, %s110
      %s113 = sphi 0, %s112
      %s127 = sphi 0, %s113
      %s131 = sphi 0, %s131
      %s133 = sphi 0, %s131
      %s134 = sphi 0, %s133
      %s148 = sphi 0, %s134
      %s152 = sphi 0, %s152
      %s154 = sphi 0, %s152
      %s155 = sphi 0, %s154
      %s169 = sphi 0, %s155
      %s173 = sphi 0, %s173
      %s175 = sphi 0, %s173
      %s176 = sphi 0, %s175
      %s190 = sphi 0, %s176
      %s194 = sphi 0, %s194
      %s196 = sphi 0, %s194
      %s197 = sphi 0, %s196
      %s211 = sphi 0, %s197
      %s215 = sphi 0, %s215
      %s217 = sphi 0, %s215
      %s218 = sphi 0, %s217
      %s232 = sphi 0, %s218
      %s236 = sphi 0, %s236
      %s238 = sphi 0, %s236
      %s239 = sphi 0, %s238
      %s253 = sphi 0, %s239
      %s257 = sphi 0, %s257
      %s259 = sphi 0, %s257
      %s260 = sphi 0, %s259
      %s274 = sphi 0, %s260
      %s278 = sphi 0, %s278
      %s280 = sphi 0, %s278
      %s281 = sphi 0, %s280
      %s295 = sphi 0, %s281
      %s299 = sphi 0, %s299
      %s301 = sphi 0, %s299
      %s302 = sphi 0, %s301
      %s316 = sphi 0, %s302
      %s320 = sphi 0, %s320
      %s322 = sphi 0, %s320
      %s323 = sphi 0, %s322
      %s337 = sphi 0, %s323
      %s341 = sphi 0, %s341
      %s343 = sphi 0, %s341
      %s344 = sphi 0, %s343
      %s358 = sphi 0, %s344
      %s362 = sphi 0, %s362
      %s364 = sphi 0, %s362
      %s365 = sphi 0, %s364
      %s379 = sphi 0, %s365
      %s383 = sphi 0, %s383
      %s385 = sphi 0, %s383
      %s386 = sphi 0, %s385
      %s400 = sphi 0, %s386
      %s404 = sphi 0, %s404
      %s406 = sphi 0, %s404
      %s407 = sphi 0, %s406
      %s421 = sphi 0, %s407
      %s425 = sphi 0, %s425
      %s427 = sphi 0, %s425
      %s428 = sphi 0, %s427
      %s442 = sphi 0, %s428
      %s446 = sphi 0, %s446
      %s448 = sphi 0, %s446
      %s449 = sphi 0, %s448
      %s463 = sphi 0, %s449
      %s467 = sphi 0, %s467
      %s469 = sphi 0, %s467
      %s470 = sphi 0, %s469
      %s484 = sphi 0, %s470
      %s490 = sphi 0, %s492
      %s493 = sphi 0, %s490
      %s494 = sphi 0, %s493
      %s510 = sphi 0, %s494
    $region4: #{forward.1} parent=1 // loop_header_branch
      %37 = sbr.rel (%p35) target = $region8
    $region5: #{forward.1} parent=1 // loop_body
      %s39 = ssub.s32 %s34, 1
      %s40 = ssub.s32 %s34, 2
      %s41 = sadd.s32 %s34, 1
      %s42 = ssub.s32 %s34, %s41
      %p43 = scmp.eq.s32.totalorder %s42, 0
      %s45 = sadd.s32 %s44, 1
      %s46 = scalar_select %p43, %s44, %s45
      %p49 = pneg %p43
      %p50 = scmp.eq.s32.totalorder %s34, 1
      %p51 = por %p49, %p50
      %p52 = scmp.ne.s32.totalorder %s44, %s47
      %p53 = scmp.eq.s32.totalorder %s34, 0
      %p54 = por %p52, %p53
      %p55 = scmp.ne.s32.totalorder %s44, %s47
      %p56 = scmp.eq.s32.totalorder %s39, 1
      %p57 = por %p55, %p56
      %p58 = scmp.ne.s32.totalorder %s47, %s48
      %p59 = scmp.eq.s32.totalorder %s39, 0
      %p60 = por %p58, %p59
      %p61 = scmp.ne.s32.totalorder %s47, %s48
      %p62 = scmp.eq.s32.totalorder %s40, 1
      %p63 = por %p61, %p62
      %p65 = scmp.ne.s32.totalorder %s48, %s64
      %p66 = scmp.eq.s32.totalorder %s40, 0
      %p67 = por %p65, %p66
      %s69 = sadd.s32 %s68, 1
      %p72 = scmp.eq.s32.totalorder %s34, 1
      %p73 = scmp.ne.s32.totalorder %s68, %s70
      %p74 = scmp.eq.s32.totalorder %s34, 0
      %p75 = por %p73, %p74
      %p76 = scmp.ne.s32.totalorder %s68, %s70
      %p77 = scmp.eq.s32.totalorder %s39, 1
      %p78 = por %p76, %p77
      %p79 = scmp.ne.s32.totalorder %s70, %s71
      %p80 = scmp.eq.s32.totalorder %s39, 0
      %p81 = por %p79, %p80
      %p82 = scmp.ne.s32.totalorder %s70, %s71
      %p83 = scmp.eq.s32.totalorder %s40, 1
      %p84 = por %p82, %p83
      %p86 = scmp.ne.s32.totalorder %s71, %s85
      %p87 = scmp.eq.s32.totalorder %s40, 0
      %p88 = por %p86, %p87
      %s90 = sadd.s32 %s89, 1
      %p93 = scmp.eq.s32.totalorder %s34, 1
      %p94 = scmp.ne.s32.totalorder %s89, %s91
      %p95 = scmp.eq.s32.totalorder %s34, 0
      %p96 = por %p94, %p95
      %p97 = scmp.ne.s32.totalorder %s89, %s91
      %p98 = scmp.eq.s32.totalorder %s39, 1
      %p99 = por %p97, %p98
      %p100 = scmp.ne.s32.totalorder %s91, %s92
      %p101 = scmp.eq.s32.totalorder %s39, 0
      %p102 = por %p100, %p101
      %p103 = scmp.ne.s32.totalorder %s91, %s92
      %p104 = scmp.eq.s32.totalorder %s40, 1
      %p105 = por %p103, %p104
      %p107 = scmp.ne.s32.totalorder %s92, %s106
      %p108 = scmp.eq.s32.totalorder %s40, 0
      %p109 = por %p107, %p108
      %s111 = sadd.s32 %s110, 1
      %p114 = scmp.eq.s32.totalorder %s34, 1
      %p115 = scmp.ne.s32.totalorder %s110, %s112
      %p116 = scmp.eq.s32.totalorder %s34, 0
      %p117 = por %p115, %p116
      %p118 = scmp.ne.s32.totalorder %s110, %s112
      %p119 = scmp.eq.s32.totalorder %s39, 1
      %p120 = por %p118, %p119
      %p121 = scmp.ne.s32.totalorder %s112, %s113
      %p122 = scmp.eq.s32.totalorder %s39, 0
      %p123 = por %p121, %p122
      %p124 = scmp.ne.s32.totalorder %s112, %s113
      %p125 = scmp.eq.s32.totalorder %s40, 1
      %p126 = por %p124, %p125
      %p128 = scmp.ne.s32.totalorder %s113, %s127
      %p129 = scmp.eq.s32.totalorder %s40, 0
      %p130 = por %p128, %p129
      %s132 = sadd.s32 %s131, 1
      %p135 = scmp.eq.s32.totalorder %s34, 1
      %p136 = scmp.ne.s32.totalorder %s131, %s133
      %p137 = scmp.eq.s32.totalorder %s34, 0
      %p138 = por %p136, %p137
      %p139 = scmp.ne.s32.totalorder %s131, %s133
      %p140 = scmp.eq.s32.totalorder %s39, 1
      %p141 = por %p139, %p140
      %p142 = scmp.ne.s32.totalorder %s133, %s134
      %p143 = scmp.eq.s32.totalorder %s39, 0
      %p144 = por %p142, %p143
      %p145 = scmp.ne.s32.totalorder %s133, %s134
      %p146 = scmp.eq.s32.totalorder %s40, 1
      %p147 = por %p145, %p146
      %p149 = scmp.ne.s32.totalorder %s134, %s148
      %p150 = scmp.eq.s32.totalorder %s40, 0
      %p151 = por %p149, %p150
      %s153 = sadd.s32 %s152, 1
      %p156 = scmp.eq.s32.totalorder %s34, 1
      %p157 = scmp.ne.s32.totalorder %s152, %s154
      %p158 = scmp.eq.s32.totalorder %s34, 0
      %p159 = por %p157, %p158
      %p160 = scmp.ne.s32.totalorder %s152, %s154
      %p161 = scmp.eq.s32.totalorder %s39, 1
      %p162 = por %p160, %p161
      %p163 = scmp.ne.s32.totalorder %s154, %s155
      %p164 = scmp.eq.s32.totalorder %s39, 0
      %p165 = por %p163, %p164
      %p166 = scmp.ne.s32.totalorder %s154, %s155
      %p167 = scmp.eq.s32.totalorder %s40, 1
      %p168 = por %p166, %p167
      %p170 = scmp.ne.s32.totalorder %s155, %s169
      %p171 = scmp.eq.s32.totalorder %s40, 0
      %p172 = por %p170, %p171
      %s174 = sadd.s32 %s173, 1
      %p177 = scmp.eq.s32.totalorder %s34, 1
      %p178 = scmp.ne.s32.totalorder %s173, %s175
      %p179 = scmp.eq.s32.totalorder %s34, 0
      %p180 = por %p178, %p179
      %p181 = scmp.ne.s32.totalorder %s173, %s175
      %p182 = scmp.eq.s32.totalorder %s39, 1
      %p183 = por %p181, %p182
      %p184 = scmp.ne.s32.totalorder %s175, %s176
      %p185 = scmp.eq.s32.totalorder %s39, 0
      %p186 = por %p184, %p185
      %p187 = scmp.ne.s32.totalorder %s175, %s176
      %p188 = scmp.eq.s32.totalorder %s40, 1
      %p189 = por %p187, %p188
      %p191 = scmp.ne.s32.totalorder %s176, %s190
      %p192 = scmp.eq.s32.totalorder %s40, 0
      %p193 = por %p191, %p192
      %s195 = sadd.s32 %s194, 1
      %p198 = scmp.eq.s32.totalorder %s34, 1
      %p199 = scmp.ne.s32.totalorder %s194, %s196
      %p200 = scmp.eq.s32.totalorder %s34, 0
      %p201 = por %p199, %p200
      %p202 = scmp.ne.s32.totalorder %s194, %s196
      %p203 = scmp.eq.s32.totalorder %s39, 1
      %p204 = por %p202, %p203
      %p205 = scmp.ne.s32.totalorder %s196, %s197
      %p206 = scmp.eq.s32.totalorder %s39, 0
      %p207 = por %p205, %p206
      %p208 = scmp.ne.s32.totalorder %s196, %s197
      %p209 = scmp.eq.s32.totalorder %s40, 1
      %p210 = por %p208, %p209
      %p212 = scmp.ne.s32.totalorder %s197, %s211
      %p213 = scmp.eq.s32.totalorder %s40, 0
      %p214 = por %p212, %p213
      %s216 = sadd.s32 %s215, 1
      %p219 = scmp.eq.s32.totalorder %s34, 1
      %p220 = scmp.ne.s32.totalorder %s215, %s217
      %p221 = scmp.eq.s32.totalorder %s34, 0
      %p222 = por %p220, %p221
      %p223 = scmp.ne.s32.totalorder %s215, %s217
      %p224 = scmp.eq.s32.totalorder %s39, 1
      %p225 = por %p223, %p224
      %p226 = scmp.ne.s32.totalorder %s217, %s218
      %p227 = scmp.eq.s32.totalorder %s39, 0
      %p228 = por %p226, %p227
      %p229 = scmp.ne.s32.totalorder %s217, %s218
      %p230 = scmp.eq.s32.totalorder %s40, 1
      %p231 = por %p229, %p230
      %p233 = scmp.ne.s32.totalorder %s218, %s232
      %p234 = scmp.eq.s32.totalorder %s40, 0
      %p235 = por %p233, %p234
      %s237 = sadd.s32 %s236, 1
      %p240 = scmp.eq.s32.totalorder %s34, 1
      %p241 = scmp.ne.s32.totalorder %s236, %s238
      %p242 = scmp.eq.s32.totalorder %s34, 0
      %p243 = por %p241, %p242
      %p244 = scmp.ne.s32.totalorder %s236, %s238
      %p245 = scmp.eq.s32.totalorder %s39, 1
      %p246 = por %p244, %p245
      %p247 = scmp.ne.s32.totalorder %s238, %s239
      %p248 = scmp.eq.s32.totalorder %s39, 0
      %p249 = por %p247, %p248
      %p250 = scmp.ne.s32.totalorder %s238, %s239
      %p251 = scmp.eq.s32.totalorder %s40, 1
      %p252 = por %p250, %p251
      %p254 = scmp.ne.s32.totalorder %s239, %s253
      %p255 = scmp.eq.s32.totalorder %s40, 0
      %p256 = por %p254, %p255
      %s258 = sadd.s32 %s257, 1
      %p261 = scmp.eq.s32.totalorder %s34, 1
      %p262 = scmp.ne.s32.totalorder %s257, %s259
      %p263 = scmp.eq.s32.totalorder %s34, 0
      %p264 = por %p262, %p263
      %p265 = scmp.ne.s32.totalorder %s257, %s259
      %p266 = scmp.eq.s32.totalorder %s39, 1
      %p267 = por %p265, %p266
      %p268 = scmp.ne.s32.totalorder %s259, %s260
      %p269 = scmp.eq.s32.totalorder %s39, 0
      %p270 = por %p268, %p269
      %p271 = scmp.ne.s32.totalorder %s259, %s260
      %p272 = scmp.eq.s32.totalorder %s40, 1
      %p273 = por %p271, %p272
      %p275 = scmp.ne.s32.totalorder %s260, %s274
      %p276 = scmp.eq.s32.totalorder %s40, 0
      %p277 = por %p275, %p276
      %s279 = sadd.s32 %s278, 1
      %p282 = scmp.eq.s32.totalorder %s34, 1
      %p283 = scmp.ne.s32.totalorder %s278, %s280
      %p284 = scmp.eq.s32.totalorder %s34, 0
      %p285 = por %p283, %p284
      %p286 = scmp.ne.s32.totalorder %s278, %s280
      %p287 = scmp.eq.s32.totalorder %s39, 1
      %p288 = por %p286, %p287
      %p289 = scmp.ne.s32.totalorder %s280, %s281
      %p290 = scmp.eq.s32.totalorder %s39, 0
      %p291 = por %p289, %p290
      %p292 = scmp.ne.s32.totalorder %s280, %s281
      %p293 = scmp.eq.s32.totalorder %s40, 1
      %p294 = por %p292, %p293
      %p296 = scmp.ne.s32.totalorder %s281, %s295
      %p297 = scmp.eq.s32.totalorder %s40, 0
      %p298 = por %p296, %p297
      %s300 = sadd.s32 %s299, 1
      %p303 = scmp.eq.s32.totalorder %s34, 1
      %p304 = scmp.ne.s32.totalorder %s299, %s301
      %p305 = scmp.eq.s32.totalorder %s34, 0
      %p306 = por %p304, %p305
      %p307 = scmp.ne.s32.totalorder %s299, %s301
      %p308 = scmp.eq.s32.totalorder %s39, 1
      %p309 = por %p307, %p308
      %p310 = scmp.ne.s32.totalorder %s301, %s302
      %p311 = scmp.eq.s32.totalorder %s39, 0
      %p312 = por %p310, %p311
      %p313 = scmp.ne.s32.totalorder %s301, %s302
      %p314 = scmp.eq.s32.totalorder %s40, 1
      %p315 = por %p313, %p314
      %p317 = scmp.ne.s32.totalorder %s302, %s316
      %p318 = scmp.eq.s32.totalorder %s40, 0
      %p319 = por %p317, %p318
      %s321 = sadd.s32 %s320, 1
      %p324 = scmp.eq.s32.totalorder %s34, 1
      %p325 = scmp.ne.s32.totalorder %s320, %s322
      %p326 = scmp.eq.s32.totalorder %s34, 0
      %p327 = por %p325, %p326
      %p328 = scmp.ne.s32.totalorder %s320, %s322
      %p329 = scmp.eq.s32.totalorder %s39, 1
      %p330 = por %p328, %p329
      %p331 = scmp.ne.s32.totalorder %s322, %s323
      %p332 = scmp.eq.s32.totalorder %s39, 0
      %p333 = por %p331, %p332
      %p334 = scmp.ne.s32.totalorder %s322, %s323
      %p335 = scmp.eq.s32.totalorder %s40, 1
      %p336 = por %p334, %p335
      %p338 = scmp.ne.s32.totalorder %s323, %s337
      %p339 = scmp.eq.s32.totalorder %s40, 0
      %p340 = por %p338, %p339
      %s342 = sadd.s32 %s341, 1
      %p345 = scmp.eq.s32.totalorder %s34, 1
      %p346 = scmp.ne.s32.totalorder %s341, %s343
      %p347 = scmp.eq.s32.totalorder %s34, 0
      %p348 = por %p346, %p347
      %p349 = scmp.ne.s32.totalorder %s341, %s343
      %p350 = scmp.eq.s32.totalorder %s39, 1
      %p351 = por %p349, %p350
      %p352 = scmp.ne.s32.totalorder %s343, %s344
      %p353 = scmp.eq.s32.totalorder %s39, 0
      %p354 = por %p352, %p353
      %p355 = scmp.ne.s32.totalorder %s343, %s344
      %p356 = scmp.eq.s32.totalorder %s40, 1
      %p357 = por %p355, %p356
      %p359 = scmp.ne.s32.totalorder %s344, %s358
      %p360 = scmp.eq.s32.totalorder %s40, 0
      %p361 = por %p359, %p360
      %s363 = sadd.s32 %s362, 1
      %p366 = scmp.eq.s32.totalorder %s34, 1
      %p367 = scmp.ne.s32.totalorder %s362, %s364
      %p368 = scmp.eq.s32.totalorder %s34, 0
      %p369 = por %p367, %p368
      %p370 = scmp.ne.s32.totalorder %s362, %s364
      %p371 = scmp.eq.s32.totalorder %s39, 1
      %p372 = por %p370, %p371
      %p373 = scmp.ne.s32.totalorder %s364, %s365
      %p374 = scmp.eq.s32.totalorder %s39, 0
      %p375 = por %p373, %p374
      %p376 = scmp.ne.s32.totalorder %s364, %s365
      %p377 = scmp.eq.s32.totalorder %s40, 1
      %p378 = por %p376, %p377
      %p380 = scmp.ne.s32.totalorder %s365, %s379
      %p381 = scmp.eq.s32.totalorder %s40, 0
      %p382 = por %p380, %p381
      %s384 = sadd.s32 %s383, 1
      %p387 = scmp.eq.s32.totalorder %s34, 1
      %p388 = scmp.ne.s32.totalorder %s383, %s385
      %p389 = scmp.eq.s32.totalorder %s34, 0
      %p390 = por %p388, %p389
      %p391 = scmp.ne.s32.totalorder %s383, %s385
      %p392 = scmp.eq.s32.totalorder %s39, 1
      %p393 = por %p391, %p392
      %p394 = scmp.ne.s32.totalorder %s385, %s386
      %p395 = scmp.eq.s32.totalorder %s39, 0
      %p396 = por %p394, %p395
      %p397 = scmp.ne.s32.totalorder %s385, %s386
      %p398 = scmp.eq.s32.totalorder %s40, 1
      %p399 = por %p397, %p398
      %p401 = scmp.ne.s32.totalorder %s386, %s400
      %p402 = scmp.eq.s32.totalorder %s40, 0
      %p403 = por %p401, %p402
      %s405 = sadd.s32 %s404, 1
      %p408 = scmp.eq.s32.totalorder %s34, 1
      %p409 = scmp.ne.s32.totalorder %s404, %s406
      %p410 = scmp.eq.s32.totalorder %s34, 0
      %p411 = por %p409, %p410
      %p412 = scmp.ne.s32.totalorder %s404, %s406
      %p413 = scmp.eq.s32.totalorder %s39, 1
      %p414 = por %p412, %p413
      %p415 = scmp.ne.s32.totalorder %s406, %s407
      %p416 = scmp.eq.s32.totalorder %s39, 0
      %p417 = por %p415, %p416
      %p418 = scmp.ne.s32.totalorder %s406, %s407
      %p419 = scmp.eq.s32.totalorder %s40, 1
      %p420 = por %p418, %p419
      %p422 = scmp.ne.s32.totalorder %s407, %s421
      %p423 = scmp.eq.s32.totalorder %s40, 0
      %p424 = por %p422, %p423
      %s426 = sadd.s32 %s425, 1
      %p429 = scmp.eq.s32.totalorder %s34, 1
      %p430 = scmp.ne.s32.totalorder %s425, %s427
      %p431 = scmp.eq.s32.totalorder %s34, 0
      %p432 = por %p430, %p431
      %p433 = scmp.ne.s32.totalorder %s425, %s427
      %p434 = scmp.eq.s32.totalorder %s39, 1
      %p435 = por %p433, %p434
      %p436 = scmp.ne.s32.totalorder %s427, %s428
      %p437 = scmp.eq.s32.totalorder %s39, 0
      %p438 = por %p436, %p437
      %p439 = scmp.ne.s32.totalorder %s427, %s428
      %p440 = scmp.eq.s32.totalorder %s40, 1
      %p441 = por %p439, %p440
      %p443 = scmp.ne.s32.totalorder %s428, %s442
      %p444 = scmp.eq.s32.totalorder %s40, 0
      %p445 = por %p443, %p444
      %s447 = sadd.s32 %s446, 1
      %p450 = scmp.eq.s32.totalorder %s34, 1
      %p451 = scmp.ne.s32.totalorder %s446, %s448
      %p452 = scmp.eq.s32.totalorder %s34, 0
      %p453 = por %p451, %p452
      %p454 = scmp.ne.s32.totalorder %s446, %s448
      %p455 = scmp.eq.s32.totalorder %s39, 1
      %p456 = por %p454, %p455
      %p457 = scmp.ne.s32.totalorder %s448, %s449
      %p458 = scmp.eq.s32.totalorder %s39, 0
      %p459 = por %p457, %p458
      %p460 = scmp.ne.s32.totalorder %s448, %s449
      %p461 = scmp.eq.s32.totalorder %s40, 1
      %p462 = por %p460, %p461
      %p464 = scmp.ne.s32.totalorder %s449, %s463
      %p465 = scmp.eq.s32.totalorder %s40, 0
      %p466 = por %p464, %p465
      %s468 = sadd.s32 %s467, 1
      %p471 = scmp.eq.s32.totalorder %s34, 1
      %p472 = scmp.ne.s32.totalorder %s467, %s469
      %p473 = scmp.eq.s32.totalorder %s34, 0
      %p474 = por %p472, %p473
      %p475 = scmp.ne.s32.totalorder %s467, %s469
      %p476 = scmp.eq.s32.totalorder %s39, 1
      %p477 = por %p475, %p476
      %p478 = scmp.ne.s32.totalorder %s469, %s470
      %p479 = scmp.eq.s32.totalorder %s39, 0
      %p480 = por %p478, %p479
      %p481 = scmp.ne.s32.totalorder %s469, %s470
      %p482 = scmp.eq.s32.totalorder %s40, 1
      %p483 = por %p481, %p482
      %p485 = scmp.ne.s32.totalorder %s470, %s484
      %p486 = scmp.eq.s32.totalorder %s40, 0
      %p487 = por %p485, %p486
      %s488 = ssub.s32 %s34, %s41
      %p489 = scmp.eq.s32.totalorder %s488, 0
      %s491 = sadd.s32 %s490, 1
      %s492 = scalar_select %p489, %s490, %s491
      %p495 = pneg %p489
      %p496 = scmp.eq.s32.totalorder %s34, 1
      %p497 = por %p495, %p496
      %p498 = scmp.ne.s32.totalorder %s490, %s493
      %p499 = scmp.eq.s32.totalorder %s34, 0
      %p500 = por %p498, %p499
      %p501 = scmp.ne.s32.totalorder %s490, %s493
      %p502 = scmp.eq.s32.totalorder %s39, 1
      %p503 = por %p501, %p502
      %p504 = scmp.ne.s32.totalorder %s493, %s494
      %p505 = scmp.eq.s32.totalorder %s39, 0
      %p506 = por %p504, %p505
      %p507 = scmp.ne.s32.totalorder %s493, %s494
      %p508 = scmp.eq.s32.totalorder %s40, 1
      %p509 = por %p507, %p508
      %p511 = scmp.ne.s32.totalorder %s494, %s510
      %p512 = scmp.eq.s32.totalorder %s40, 0
      %p513 = por %p511, %p512
      %p514 = scmp.le.s32.totalorder 1, %s34
      %p515 = scmp.lt.s32.totalorder %s34, 3
      %p516 = pnand %p514, %p515
      %p517 = pneg %p516
      // Predicated region
      $region9: #{forward.1} parent=5 // pred_check
        _
      $region10: #{forward.1} parent=5 // pred_check_branch
        %519 = sbr.rel (%p516) target = $region12
      $region11: #{forward.1} parent=5 // pred_region
        %s520 = ssub.s32 %s34, 1
        // Predicated region
        $region13: #{forward.1} parent=11 // pred_check
          %p521 = pneg %p81
        $region14: #{forward.1} parent=11 // pred_check_branch
          %523 = sbr.rel (%p521) target = $region16
        $region15: #{forward.1} parent=11 // pred_region
          _
        $region16: #{forward.1} parent=11 // pred_fallthru
          _
        // Predicated region
        $region17: #{forward.1} parent=11 // pred_check
          %p524 = pneg %p102
        $region18: #{forward.1} parent=11 // pred_check_branch
          %526 = sbr.rel (%p524) target = $region20
        $region19: #{forward.1} parent=11 // pred_region
          _
        $region20: #{forward.1} parent=11 // pred_fallthru
          _
        // Predicated region
        $region21: #{forward.1} parent=11 // pred_check
          %p527 = pneg %p123
        $region22: #{forward.1} parent=11 // pred_check_branch
          %529 = sbr.rel (%p527) target = $region24
        $region23: #{forward.1} parent=11 // pred_region
          _
        $region24: #{forward.1} parent=11 // pred_fallthru
          _
        // Predicated region
        $region25: #{forward.1} parent=11 // pred_check
          %p530 = pneg %p144
        $region26: #{forward.1} parent=11 // pred_check_branch
          %532 = sbr.rel (%p530) target = $region28
        $region27: #{forward.1} parent=11 // pred_region
          _
        $region28: #{forward.1} parent=11 // pred_fallthru
          _
        // Predicated region
        $region29: #{forward.1} parent=11 // pred_check
          %p533 = pneg %p165
        $region30: #{forward.1} parent=11 // pred_check_branch
          %535 = sbr.rel (%p533) target = $region32
        $region31: #{forward.1} parent=11 // pred_region
          %s537 = ssub.s32 4096, 4096
          %538 = vsyncadd [#allocation6], %s537
          %s539 = sshll.u32 [#allocation5], 4
          %s540 = int_to_ptr.vmem [resolvable:$true] %s539
          %545 = dma.hbm_to_vmem [thread:$0]  %s5, 4096, %s540, [#allocation6], 128, 128, 8
        $region32: #{forward.1} parent=11 // pred_fallthru
          _
        // Predicated region
        $region33: #{forward.1} parent=11 // pred_check
          %p546 = pneg %p186
        $region34: #{forward.1} parent=11 // pred_check_branch
          %548 = sbr.rel (%p546) target = $region36
        $region35: #{forward.1} parent=11 // pred_region
          %s550 = ssub.s32 4096, 4096
          %551 = vsyncadd [#allocation9], %s550
          %s552 = sshll.u32 [#allocation8], 4
          %s553 = int_to_ptr.vmem [resolvable:$true] %s552
          %558 = dma.hbm_to_vmem [thread:$0]  %s6, 4096, %s553, [#allocation9], 128, 128, 8
        $region36: #{forward.1} parent=11 // pred_fallthru
          _
        // Predicated region
        $region37: #{forward.1} parent=11 // pred_check
          %p559 = pneg %p207
        $region38: #{forward.1} parent=11 // pred_check_branch
          %561 = sbr.rel (%p559) target = $region40
        $region39: #{forward.1} parent=11 // pred_region
          _
        $region40: #{forward.1} parent=11 // pred_fallthru
          _
        // Predicated region
        $region41: #{forward.1} parent=11 // pred_check
          %p562 = pneg %p228
        $region42: #{forward.1} parent=11 // pred_check_branch
          %564 = sbr.rel (%p562) target = $region44
        $region43: #{forward.1} parent=11 // pred_region
          _
        $region44: #{forward.1} parent=11 // pred_fallthru
          _
        // Predicated region
        $region45: #{forward.1} parent=11 // pred_check
          %p565 = pneg %p249
        $region46: #{forward.1} parent=11 // pred_check_branch
          %567 = sbr.rel (%p565) target = $region48
        $region47: #{forward.1} parent=11 // pred_region
          _
        $region48: #{forward.1} parent=11 // pred_fallthru
          _
        // Predicated region
        $region49: #{forward.1} parent=11 // pred_check
          %p568 = pneg %p270
        $region50: #{forward.1} parent=11 // pred_check_branch
          %570 = sbr.rel (%p568) target = $region52
        $region51: #{forward.1} parent=11 // pred_region
          _
        $region52: #{forward.1} parent=11 // pred_fallthru
          _
        // Predicated region
        $region53: #{forward.1} parent=11 // pred_check
          %p571 = pneg %p291
        $region54: #{forward.1} parent=11 // pred_check_branch
          %573 = sbr.rel (%p571) target = $region56
        $region55: #{forward.1} parent=11 // pred_region
          %s575 = ssub.s32 4096, 4096
          %576 = vsyncadd [#allocation9], %s575
          %s577 = sshll.u32 [#allocation10], 4
          %s578 = int_to_ptr.vmem [resolvable:$true] %s577
          %583 = dma.hbm_to_vmem [thread:$0]  %s11, 4096, %s578, [#allocation9], 128, 128, 8
        $region56: #{forward.1} parent=11 // pred_fallthru
          _
        // Predicated region
        $region57: #{forward.1} parent=11 // pred_check
          %p584 = pneg %p312
        $region58: #{forward.1} parent=11 // pred_check_branch
          %586 = sbr.rel (%p584) target = $region60
        $region59: #{forward.1} parent=11 // pred_region
          %s588 = ssub.s32 4096, 4096
          %589 = vsyncadd [#allocation12], %s588
          %s590 = sshll.u32 [#allocation11], 4
          %s591 = int_to_ptr.vmem [resolvable:$true] %s590
          %596 = dma.hbm_to_vmem [thread:$0]  %s12, 4096, %s591, [#allocation12], 128, 128, 8
        $region60: #{forward.1} parent=11 // pred_fallthru
          _
        // Predicated region
        $region61: #{forward.1} parent=11 // pred_check
          %p597 = pneg %p333
        $region62: #{forward.1} parent=11 // pred_check_branch
          %599 = sbr.rel (%p597) target = $region64
        $region63: #{forward.1} parent=11 // pred_region
          %s601 = ssub.s32 6144, 6144
          %602 = vsyncadd [#allocation12], %s601
          %s603 = sshll.u32 [#allocation13], 4
          %s604 = int_to_ptr.vmem [resolvable:$true] %s603
          %609 = dma.hbm_to_vmem [thread:$0]  %s13, 6144, %s604, [#allocation12], 128, 128, 8
        $region64: #{forward.1} parent=11 // pred_fallthru
          _
        // Predicated region
        $region65: #{forward.1} parent=11 // pred_check
          %p610 = pneg %p354
        $region66: #{forward.1} parent=11 // pred_check_branch
          %612 = sbr.rel (%p610) target = $region68
        $region67: #{forward.1} parent=11 // pred_region
          _
        $region68: #{forward.1} parent=11 // pred_fallthru
          _
        // Predicated region
        $region69: #{forward.1} parent=11 // pred_check
          %p613 = pneg %p375
        $region70: #{forward.1} parent=11 // pred_check_branch
          %615 = sbr.rel (%p613) target = $region72
        $region71: #{forward.1} parent=11 // pred_region
          _
        $region72: #{forward.1} parent=11 // pred_fallthru
          _
        // Predicated region
        $region73: #{forward.1} parent=11 // pred_check
          %p616 = pneg %p396
        $region74: #{forward.1} parent=11 // pred_check_branch
          %618 = sbr.rel (%p616) target = $region76
        $region75: #{forward.1} parent=11 // pred_region
          _
        $region76: #{forward.1} parent=11 // pred_fallthru
          _
        // Predicated region
        $region77: #{forward.1} parent=11 // pred_check
          %p619 = pneg %p417
        $region78: #{forward.1} parent=11 // pred_check_branch
          %621 = sbr.rel (%p619) target = $region80
        $region79: #{forward.1} parent=11 // pred_region
          %s623 = ssub.s32 4096, 4096
          %624 = vsyncadd [#allocation15], %s623
          %s625 = sshll.u32 [#allocation14], 4
          %s626 = int_to_ptr.vmem [resolvable:$true] %s625
          %631 = dma.hbm_to_vmem [thread:$0]  %s17, 4096, %s626, [#allocation15], 128, 128, 8
        $region80: #{forward.1} parent=11 // pred_fallthru
          _
        // Predicated region
        $region81: #{forward.1} parent=11 // pred_check
          %p632 = pneg %p438
        $region82: #{forward.1} parent=11 // pred_check_branch
          %634 = sbr.rel (%p632) target = $region84
        $region83: #{forward.1} parent=11 // pred_region
          %s636 = ssub.s32 4096, 4096
          %637 = vsyncadd [#allocation15], %s636
          %s638 = sshll.u32 [#allocation16], 4
          %s639 = int_to_ptr.vmem [resolvable:$true] %s638
          %644 = dma.hbm_to_vmem [thread:$0]  %s18, 4096, %s639, [#allocation15], 128, 128, 8
        $region84: #{forward.1} parent=11 // pred_fallthru
          _
        // Predicated region
        $region85: #{forward.1} parent=11 // pred_check
          %p645 = pneg %p459
        $region86: #{forward.1} parent=11 // pred_check_branch
          %647 = sbr.rel (%p645) target = $region88
        $region87: #{forward.1} parent=11 // pred_region
          _
        $region88: #{forward.1} parent=11 // pred_fallthru
          _
        // Predicated region
        $region89: #{forward.1} parent=11 // pred_check
          %p648 = pneg %p480
        $region90: #{forward.1} parent=11 // pred_check_branch
          %650 = sbr.rel (%p648) target = $region92
        $region91: #{forward.1} parent=11 // pred_region
          _
        $region92: #{forward.1} parent=11 // pred_fallthru
          _
      $region12: #{forward.1} parent=5 // pred_fallthru
        _
      %p651 = scmp.lt.s32.totalorder %s34, 2
      // Predicated region
      $region93: #{forward.1} parent=5 // pred_check
        %p652 = pneg %p651
      $region94: #{forward.1} parent=5 // pred_check_branch
        %654 = sbr.rel (%p652) target = $region96
      $region95: #{forward.1} parent=5 // pred_region
        // Predicated region
        $region97: #{forward.1} parent=95 // pred_check
          %p655 = pneg %p54
        $region98: #{forward.1} parent=95 // pred_check_branch
          %657 = sbr.rel (%p655) target = $region100
        $region99: #{forward.1} parent=95 // pred_region
          %p658 = scmp.lt.s32.totalorder %s34, 1
          %s659 = scalar_select %p658, %s34, 1
          %s660 = smul.addr %s659, 2
          %s661 = smul.addr %s660, 4
          %s662 = scalar_lea.vmem %s0, %s661
        $region100: #{forward.1} parent=95 // pred_fallthru
          _
      $region96: #{forward.1} parent=5 // pred_fallthru
        _
      %p663 = scmp.le.s32.totalorder 1, %s34
      %p664 = scmp.lt.s32.totalorder %s34, 3
      %p665 = pnand %p663, %p664
      %p666 = pneg %p665
      // Predicated region
      $region101: #{forward.1} parent=5 // pred_check
        _
      $region102: #{forward.1} parent=5 // pred_check_branch
        %668 = sbr.rel (%p665) target = $region104
      $region103: #{forward.1} parent=5 // pred_region
        %s669 = ssub.s32 %s34, 1
        // Predicated region
        $region105: #{forward.1} parent=103 // pred_check
          %p670 = pneg %p165
        $region106: #{forward.1} parent=103 // pred_check_branch
          %672 = sbr.rel (%p670) target = $region108
        $region107: #{forward.1} parent=103 // pred_region
          %673 = dma.done [#allocation6], 4096
        $region108: #{forward.1} parent=103 // pred_fallthru
          _
        // Predicated region
        $region109: #{forward.1} parent=103 // pred_check
          %p674 = pneg %p186
        $region110: #{forward.1} parent=103 // pred_check_branch
          %676 = sbr.rel (%p674) target = $region112
        $region111: #{forward.1} parent=103 // pred_region
          %677 = dma.done [#allocation9], 4096
        $region112: #{forward.1} parent=103 // pred_fallthru
          _
        // Predicated region
        $region113: #{forward.1} parent=103 // pred_check
          %p678 = pneg %p291
        $region114: #{forward.1} parent=103 // pred_check_branch
          %680 = sbr.rel (%p678) target = $region116
        $region115: #{forward.1} parent=103 // pred_region
          %681 = dma.done [#allocation9], 4096
        $region116: #{forward.1} parent=103 // pred_fallthru
          _
        // Predicated region
        $region117: #{forward.1} parent=103 // pred_check
          %p682 = pneg %p312
        $region118: #{forward.1} parent=103 // pred_check_branch
          %684 = sbr.rel (%p682) target = $region120
        $region119: #{forward.1} parent=103 // pred_region
          %685 = dma.done [#allocation12], 4096
        $region120: #{forward.1} parent=103 // pred_fallthru
          _
        // Predicated region
        $region121: #{forward.1} parent=103 // pred_check
          %p686 = pneg %p333
        $region122: #{forward.1} parent=103 // pred_check_branch
          %688 = sbr.rel (%p686) target = $region124
        $region123: #{forward.1} parent=103 // pred_region
          %689 = dma.done [#allocation12], 6144
        $region124: #{forward.1} parent=103 // pred_fallthru
          _
        // Predicated region
        $region125: #{forward.1} parent=103 // pred_check
          %p690 = pneg %p417
        $region126: #{forward.1} parent=103 // pred_check_branch
          %692 = sbr.rel (%p690) target = $region128
        $region127: #{forward.1} parent=103 // pred_region
          %693 = dma.done [#allocation15], 4096
        $region128: #{forward.1} parent=103 // pred_fallthru
          _
        // Predicated region
        $region129: #{forward.1} parent=103 // pred_check
          %p694 = pneg %p438
        $region130: #{forward.1} parent=103 // pred_check_branch
          %696 = sbr.rel (%p694) target = $region132
        $region131: #{forward.1} parent=103 // pred_region
          %697 = dma.done [#allocation15], 4096
        $region132: #{forward.1} parent=103 // pred_fallthru
          _
        %p698 = scmp.lt.s32.totalorder %s39, 1
        %s699 = scalar_select %p698, %s39, 1
        %s700 = smul.addr %s699, 2
        %s701 = smul.addr %s700, 4
        %s702 = scalar_lea.vmem %s0, %s701
        %p703 = pneg %p60
        %p704 = pneg %p57
        %p705 = pneg %p81
        %p706 = pneg %p78
        %p707 = pneg %p102
        %p708 = pneg %p99
        %p709 = pneg %p123
        %p710 = pneg %p120
        %p711 = pneg %p144
        %p712 = pneg %p141
        %p713 = pneg %p165
        %p714 = pneg %p162
        %p715 = pneg %p186
        %p716 = pneg %p183
        %p717 = pneg %p207
        %p718 = pneg %p204
        %p719 = pneg %p228
        %p720 = pneg %p225
        %p721 = pneg %p249
        %p722 = pneg %p246
        %p723 = pneg %p270
        %p724 = pneg %p267
        %p725 = pneg %p291
        %p726 = pneg %p288
        %p727 = pneg %p312
        %p728 = pneg %p309
        %p729 = pneg %p333
        %p730 = pneg %p330
        %p731 = pneg %p354
        %p732 = pneg %p351
        %p733 = pneg %p375
        %p734 = pneg %p372
        %p735 = pneg %p396
        %p736 = pneg %p393
        %p737 = pneg %p417
        %p738 = pneg %p414
        %p739 = pneg %p438
        %p740 = pneg %p435
        %p741 = pneg %p459
        %p742 = pneg %p456
        %p743 = pneg %p480
        %p744 = pneg %p477
        %p745 = pneg %p506
        %p746 = pneg %p503
        %s747 = sand.u32 %s493, 1
        %s748 = scalar_lea.sflag [#allocation7], %s747
        %s749 = sand.u32 %s493, 1
        %s750 = scalar_lea.vmem [#allocation17], %s749
        %p751 = scmp.lt.s32.totalorder %s39, 1
        %s752 = scalar_select %p751, %s39, 1
        %s753 = smul.addr %s752, 2
        %s754 = smul.addr %s753, 4
        %s755 = scalar_lea.vmem %s0, %s754
        %v757 = vld [vmem:[%s755] sm:$0xf]
        %v758 = vld [vmem:[%s755 + $0x4] sm:$0xf]
        %vm759 = vcmask 385024
        %760 = vst.msk [vmem:[#allocation2] sm:$0x1] %vm759, 0.0
        %761 = vst.msk [vmem:[#allocation2 + $0x11] sm:$0x1] %vm759, 0.0
        %v762 = vunpack.c.l.bf16 %v757
        %v763 = vunpack.c.l.bf16 %v758
        %vm764 = vcmask 392192
        %765 = vst.msk [vmem:[#allocation2 + $0x1] sm:$0xff] %vm764, %v762
        %766 = vst.msk [vmem:[#allocation2 + $0x9] sm:$0xff] %vm764, %v763
        %v767 = vld [vmem:[#allocation2] sm:$0xff]
        %v768 = vld [vmem:[#allocation2 + $0x8] sm:$0xff]
        %v769 = vpack.c.bf16 %v768, %v767
        %v770 = vld [vmem:[%s1] sm:$0xff]
        %v771 = vld [vmem:[%s1 + $0x8] sm:$0xff]
        %v772 = vld [vmem:[%s1 + $0x10] sm:$0xff]
        %v773 = vld [vmem:[%s1 + $0x18] sm:$0xff]
        %v774 = vld [vmem:[%s1 + $0x20] sm:$0xff]
        %v775 = vld [vmem:[%s1 + $0x28] sm:$0xff]
        %v776 = vld [vmem:[#allocation2 + $0x1] sm:$0xff]
        %v777 = vld [vmem:[#allocation2 + $0x9] sm:$0xff]
        %v778 = vpack.c.bf16 %v777, %v776
        %s779 = scalar_lea.vmem %s1, 48
        %v780 = vld [vmem:[%s779] sm:$0xff]
        %v781 = vld [vmem:[%s779 + $0x8] sm:$0xff]
        %v782 = vld [vmem:[%s779 + $0x10] sm:$0xff]
        %v783 = vld [vmem:[%s779 + $0x18] sm:$0xff]
        %v784 = vld [vmem:[%s779 + $0x20] sm:$0xff]
        %v785 = vld [vmem:[%s779 + $0x28] sm:$0xff]
        %v792 = vunpack.c.l.b16 %v780
        %v793 = vunpack.c.h.b16 %v780
        %v794 = vunpack.c.l.b16 %v781
        %v795 = vunpack.c.h.b16 %v781
        %v796 = vunpack.c.l.b16 %v782
        %v797 = vunpack.c.h.b16 %v782
        %v798 = vunpack.c.l.b16 %v783
        %v799 = vunpack.c.h.b16 %v783
        %v800 = vunpack.c.l.b16 %v784
        %v801 = vunpack.c.h.b16 %v784
        %v802 = vunpack.c.l.b16 %v785
        %v803 = vunpack.c.h.b16 %v785
        %v804 = vpack.c.b16 %v794, %v792
        %v805 = vpack.c.b16 %v795, %v793
        %v806 = vpack.c.b16 %v798, %v796
        %v807 = vpack.c.b16 %v799, %v797
        %v808 = vpack.c.b16 %v802, %v800
        %v809 = vpack.c.b16 %v803, %v801
        %v817 = vsel %vm764, %v778, 0
        %819 = vmatprep.subr.bf16.mxu0 %v805
        %820 = vmatpush1.bf16.msra.mxu0 %v804
        %821 = vmatprep.subr.bf16.mxu0 %v807
        %822 = vmatpush1.bf16.msra.mxu0 %v806
        %823 = vmatprep.subr.bf16.mxu0 %v809
        %824 = vmatpush1.bf16.msra.mxu0 %v808
        %825 = vmatprep.subr.bf16.mxu0 0
        %826 = vmatpush1.bf16.msra.mxu0 0
        %827 = vmatprep.subr.bf16.mxu0 0
        %828 = vmatpush1.bf16.msra.mxu0 0
        %829 = vmatprep.subr.bf16.mxu0 0
        %830 = vmatpush1.bf16.msra.mxu0 0
        %831 = vmatprep.subr.bf16.mxu0 0
        %832 = vmatpush1.bf16.msra.mxu0 0
        %833 = vmatprep.subr.bf16.mxu0 0
        %834 = vmatpush1.bf16.msra.mxu0 0
        %835 = vmatprep.subr.bf16.mxu0 0
        %836 = vmatpush1.bf16.msra.mxu0 0
        %837 = vmatprep.subr.bf16.mxu0 0
        %838 = vmatpush1.bf16.msra.mxu0 0
        %839 = vmatprep.subr.bf16.mxu0 0
        %840 = vmatpush1.bf16.msra.mxu0 0
        %841 = vmatprep.subr.bf16.mxu0 0
        %842 = vmatpush1.bf16.msra.mxu0 0
        %843 = vmatprep.subr.bf16.mxu0 0
        %844 = vmatpush1.bf16.msra.mxu0 0
        %845 = vmatprep.subr.bf16.mxu0 0
        %846 = vmatpush1.bf16.msra.mxu0 0
        %847 = vmatprep.subr.bf16.mxu0 0
        %848 = vmatpush1.bf16.msra.mxu0 0
        %849 = vmatprep.subr.bf16.mxu0 0
        %850 = vmatpush1.bf16.msra.mxu0 0
        %851 = vmatprep.mubr.bf16.mxu0 0
        %852 = vmatmul.mubr.bf16.gmra.mrb[0].mxu0 %v817
        %v853 = vpop.f32.mrb[0].mxu0
        %v854 = vadd.f32 0.0, %v853
        %v855 = vpop.f32.mrb[0].mxu0
        %v856 = vadd.f32 0.0, %v855
        %v857 = vpop.f32.mrb[0].mxu0
        %v858 = vadd.f32 0.0, %v857
        %v859 = vpop.f32.mrb[0].mxu0
        %v860 = vadd.f32 0.0, %v859
        %861 = vdwg.mxu0
        %v868 = vunpack.c.l.b16 %v770
        %v869 = vunpack.c.h.b16 %v770
        %v870 = vunpack.c.l.b16 %v771
        %v871 = vunpack.c.h.b16 %v771
        %v872 = vunpack.c.l.b16 %v772
        %v873 = vunpack.c.h.b16 %v772
        %v874 = vunpack.c.l.b16 %v773
        %v875 = vunpack.c.h.b16 %v773
        %v876 = vunpack.c.l.b16 %v774
        %v877 = vunpack.c.h.b16 %v774
        %v878 = vunpack.c.l.b16 %v775
        %v879 = vunpack.c.h.b16 %v775
        %v880 = vpack.c.b16 %v870, %v868
        %v881 = vpack.c.b16 %v871, %v869
        %v882 = vpack.c.b16 %v874, %v872
        %v883 = vpack.c.b16 %v875, %v873
        %v884 = vpack.c.b16 %v878, %v876
        %v885 = vpack.c.b16 %v879, %v877
        %v893 = vsel %vm764, %v769, 0
        %895 = vmatprep.subr.bf16.mxu0 %v881
        %896 = vmatpush1.bf16.msra.mxu0 %v880
        %897 = vmatprep.subr.bf16.mxu0 %v883
        %898 = vmatpush1.bf16.msra.mxu0 %v882
        %899 = vmatprep.subr.bf16.mxu0 %v885
        %900 = vmatpush1.bf16.msra.mxu0 %v884
        %901 = vmatprep.subr.bf16.mxu0 0
        %902 = vmatpush1.bf16.msra.mxu0 0
        %903 = vmatprep.subr.bf16.mxu0 0
        %904 = vmatpush1.bf16.msra.mxu0 0
        %905 = vmatprep.subr.bf16.mxu0 0
        %906 = vmatpush1.bf16.msra.mxu0 0
        %907 = vmatprep.subr.bf16.mxu0 0
        %908 = vmatpush1.bf16.msra.mxu0 0
        %909 = vmatprep.subr.bf16.mxu0 0
        %910 = vmatpush1.bf16.msra.mxu0 0
        %911 = vmatprep.subr.bf16.mxu0 0
        %912 = vmatpush1.bf16.msra.mxu0 0
        %913 = vmatprep.subr.bf16.mxu0 0
        %914 = vmatpush1.bf16.msra.mxu0 0
        %915 = vmatprep.subr.bf16.mxu0 0
        %916 = vmatpush1.bf16.msra.mxu0 0
        %917 = vmatprep.subr.bf16.mxu0 0
        %918 = vmatpush1.bf16.msra.mxu0 0
        %919 = vmatprep.subr.bf16.mxu0 0
        %920 = vmatpush1.bf16.msra.mxu0 0
        %921 = vmatprep.subr.bf16.mxu0 0
        %922 = vmatpush1.bf16.msra.mxu0 0
        %923 = vmatprep.subr.bf16.mxu0 0
        %924 = vmatpush1.bf16.msra.mxu0 0
        %925 = vmatprep.subr.bf16.mxu0 0
        %926 = vmatpush1.bf16.msra.mxu0 0
        %927 = vmatprep.mubr.bf16.mxu0 0
        %928 = vmatmul.mubr.bf16.gmra.mrb[0].mxu0 %v893
        %v929 = vpop.f32.mrb[0].mxu0
        %v930 = vadd.f32 %v854, %v929
        %v931 = vpop.f32.mrb[0].mxu0
        %v932 = vadd.f32 %v856, %v931
        %v933 = vpop.f32.mrb[0].mxu0
        %v934 = vadd.f32 %v858, %v933
        %v935 = vpop.f32.mrb[0].mxu0
        %v936 = vadd.f32 %v860, %v935
        %937 = vdwg.mxu0
        %v938 = vld [vmem:[#allocation2 + $0x2] sm:$0xff]
        %v939 = vld [vmem:[#allocation2 + $0xa] sm:$0xff]
        %v940 = vpack.c.bf16 %v939, %v938
        %s941 = scalar_lea.vmem %s1, 96
        %v942 = vld [vmem:[%s941] sm:$0xff]
        %v943 = vld [vmem:[%s941 + $0x8] sm:$0xff]
        %v944 = vld [vmem:[%s941 + $0x10] sm:$0xff]
        %v945 = vld [vmem:[%s941 + $0x18] sm:$0xff]
        %v946 = vld [vmem:[%s941 + $0x20] sm:$0xff]
        %v947 = vld [vmem:[%s941 + $0x28] sm:$0xff]
        %v954 = vunpack.c.l.b16 %v942
        %v955 = vunpack.c.h.b16 %v942
        %v956 = vunpack.c.l.b16 %v943
        %v957 = vunpack.c.h.b16 %v943
        %v958 = vunpack.c.l.b16 %v944
        %v959 = vunpack.c.h.b16 %v944
        %v960 = vunpack.c.l.b16 %v945
        %v961 = vunpack.c.h.b16 %v945
        %v962 = vunpack.c.l.b16 %v946
        %v963 = vunpack.c.h.b16 %v946
        %v964 = vunpack.c.l.b16 %v947
        %v965 = vunpack.c.h.b16 %v947
        %v966 = vpack.c.b16 %v956, %v954
        %v967 = vpack.c.b16 %v957, %v955
        %v968 = vpack.c.b16 %v960, %v958
        %v969 = vpack.c.b16 %v961, %v959
        %v970 = vpack.c.b16 %v964, %v962
        %v971 = vpack.c.b16 %v965, %v963
        %v979 = vsel %vm764, %v940, 0
        %981 = vmatprep.subr.bf16.mxu0 %v967
        %982 = vmatpush1.bf16.msra.mxu0 %v966
        %983 = vmatprep.subr.bf16.mxu0 %v969
        %984 = vmatpush1.bf16.msra.mxu0 %v968
        %985 = vmatprep.subr.bf16.mxu0 %v971
        %986 = vmatpush1.bf16.msra.mxu0 %v970
        %987 = vmatprep.subr.bf16.mxu0 0
        %988 = vmatpush1.bf16.msra.mxu0 0
        %989 = vmatprep.subr.bf16.mxu0 0
        %990 = vmatpush1.bf16.msra.mxu0 0
        %991 = vmatprep.subr.bf16.mxu0 0
        %992 = vmatpush1.bf16.msra.mxu0 0
        %993 = vmatprep.subr.bf16.mxu0 0
        %994 = vmatpush1.bf16.msra.mxu0 0
        %995 = vmatprep.subr.bf16.mxu0 0
        %996 = vmatpush1.bf16.msra.mxu0 0
        %997 = vmatprep.subr.bf16.mxu0 0
        %998 = vmatpush1.bf16.msra.mxu0 0
        %999 = vmatprep.subr.bf16.mxu0 0
        %1000 = vmatpush1.bf16.msra.mxu0 0
        %1001 = vmatprep.subr.bf16.mxu0 0
        %1002 = vmatpush1.bf16.msra.mxu0 0
        %1003 = vmatprep.subr.bf16.mxu0 0
        %1004 = vmatpush1.bf16.msra.mxu0 0
        %1005 = vmatprep.subr.bf16.mxu0 0
        %1006 = vmatpush1.bf16.msra.mxu0 0
        %1007 = vmatprep.subr.bf16.mxu0 0
        %1008 = vmatpush1.bf16.msra.mxu0 0
        %1009 = vmatprep.subr.bf16.mxu0 0
        %1010 = vmatpush1.bf16.msra.mxu0 0
        %1011 = vmatprep.subr.bf16.mxu0 0
        %1012 = vmatpush1.bf16.msra.mxu0 0
        %1013 = vmatprep.mubr.bf16.mxu0 0
        %1014 = vmatmul.mubr.bf16.gmra.mrb[0].mxu0 %v979
        %v1015 = vpop.f32.mrb[0].mxu0
        %v1016 = vadd.f32 0.0, %v1015
        %v1017 = vpop.f32.mrb[0].mxu0
        %v1018 = vadd.f32 0.0, %v1017
        %v1019 = vpop.f32.mrb[0].mxu0
        %v1020 = vadd.f32 0.0, %v1019
        %v1021 = vpop.f32.mrb[0].mxu0
        %v1022 = vadd.f32 0.0, %v1021
        %1023 = vdwg.mxu0
        %v1024 = vadd.f32 %v930, %v1016
        %v1025 = vadd.f32 %v932, %v1018
        %v1026 = vadd.f32 %v934, %v1020
        %v1027 = vadd.f32 %v936, %v1022
        %v1028 = vld [vmem:[%s2] sm:$0x3]
        %v1030 = vlaneseq
        %v1031 = vshrl.u32 %v1030, 7
        %v1032 = vsub.s32 0, %v1031
        %v1033 = vrot.slane %v1028, %v1032
        %v1034 = vlaneseq
        %v1035 = vshrl.u32 %v1034, 7
        %v1036 = vsub.s32 1, %v1035
        %v1037 = vrot.slane %v1028, %v1036
        %v1040 = vadd.f32 %v1024, %v1033
        %v1041 = vadd.f32 %v1025, %v1037
        %v1042 = vadd.f32 %v1026, %v1033
        %v1043 = vadd.f32 %v1027, %v1037
        %v1044 = vmax.f32 %v1040, 0.0
        %v1045 = vmax.f32 %v1041, 0.0
        %v1046 = vmax.f32 %v1042, 0.0
        %v1047 = vmax.f32 %v1043, 0.0
        %v1048 = vld [vmem:[%s3] sm:$0xff]
        %vm1049 = vcmask 130048
        %v1051 = vsel %vm1049, %v1048, 0
        %1053 = vmatprep.subr.mxu0 %v1045
        %1054 = vmatpush1.msra.mxu0 %v1044
        %1055 = vmatprep.subr.mxu0 %v1047
        %1056 = vmatpush1.msra.mxu0 %v1046
        %1057 = vmatprep.subr.mxu0 0.0
        %1058 = vmatpush1.msra.mxu0 0.0
        %1059 = vmatprep.subr.mxu0 0.0
        %1060 = vmatpush1.msra.mxu0 0.0
        %1061 = vmatprep.subr.mxu0 0.0
        %1062 = vmatpush1.msra.mxu0 0.0
        %1063 = vmatprep.subr.mxu0 0.0
        %1064 = vmatpush1.msra.mxu0 0.0
        %1065 = vmatprep.subr.mxu0 0.0
        %1066 = vmatpush1.msra.mxu0 0.0
        %1067 = vmatprep.subr.mxu0 0.0
        %1068 = vmatpush1.msra.mxu0 0.0
        %1069 = vmatprep.subr.mxu0 0.0
        %1070 = vmatpush1.msra.mxu0 0.0
        %1071 = vmatprep.subr.mxu0 0.0
        %1072 = vmatpush1.msra.mxu0 0.0
        %1073 = vmatprep.subr.mxu0 0.0
        %1074 = vmatpush1.msra.mxu0 0.0
        %1075 = vmatprep.subr.mxu0 0.0
        %1076 = vmatpush1.msra.mxu0 0.0
        %1077 = vmatprep.subr.mxu0 0.0
        %1078 = vmatpush1.msra.mxu0 0.0
        %1079 = vmatprep.subr.mxu0 0.0
        %1080 = vmatpush1.msra.mxu0 0.0
        %1081 = vmatprep.subr.mxu0 0.0
        %1082 = vmatpush1.msra.mxu0 0.0
        %1083 = vmatprep.subr.mxu0 0.0
        %1084 = vmatpush1.msra.mxu0 0.0
        %1085 = vmatprep.subr.mxu0 0.0
        %1086 = vmatpush1.msra.mxu0 0.0
        %1087 = vmatprep.subr.mxu0 0.0
        %1088 = vmatpush1.msra.mxu0 0.0
        %1089 = vmatprep.subr.mxu0 0.0
        %1090 = vmatpush1.msra.mxu0 0.0
        %1091 = vmatprep.subr.mxu0 0.0
        %1092 = vmatpush1.msra.mxu0 0.0
        %1093 = vmatprep.subr.mxu0 0.0
        %1094 = vmatpush1.msra.mxu0 0.0
        %1095 = vmatprep.subr.mxu0 0.0
        %1096 = vmatpush1.msra.mxu0 0.0
        %1097 = vmatprep.subr.mxu0 0.0
        %1098 = vmatpush1.msra.mxu0 0.0
        %1099 = vmatprep.subr.mxu0 0.0
        %1100 = vmatpush1.msra.mxu0 0.0
        %1101 = vmatprep.subr.mxu0 0.0
        %1102 = vmatpush1.msra.mxu0 0.0
        %1103 = vmatprep.subr.mxu0 0.0
        %1104 = vmatpush1.msra.mxu0 0.0
        %1105 = vmatprep.subr.mxu0 0.0
        %1106 = vmatpush1.msra.mxu0 0.0
        %1107 = vmatprep.subr.mxu0 0.0
        %1108 = vmatpush1.msra.mxu0 0.0
        %1109 = vmatprep.subr.mxu0 0.0
        %1110 = vmatpush1.msra.mxu0 0.0
        %1111 = vmatprep.subr.mxu0 0.0
        %1112 = vmatpush1.msra.mxu0 0.0
        %1113 = vmatprep.subr.mxu0 0.0
        %1114 = vmatpush1.msra.mxu0 0.0
        %1115 = vmatprep.subr.mxu0 0.0
        %1116 = vmatpush1.msra.mxu0 0.0
        %1117 = vmatprep.mubr.f32.mxu0 0.0
        %1118 = vmatmul.mubr.f32.gmra.mrb[0].mxu0 %v1051
        %v1119 = vpop.f32.mrb[0].mxu0
        %v1120 = vadd.f32 0.0, %v1119
        %v1121 = vpop.f32.mrb[0].mxu0
        %v1122 = vadd.f32 0.0, %v1121
        %1123 = vdwg.mxu0
        %v1124 = vld [vmem:[%s4] sm:$0xff]
        %v1126 = vsel %vm1049, %v1124, 0
        %1128 = vmatprep.subr.mxu0 %v1045
        %1129 = vmatpush1.msra.mxu0 %v1044
        %1130 = vmatprep.subr.mxu0 %v1047
        %1131 = vmatpush1.msra.mxu0 %v1046
        %1132 = vmatprep.subr.mxu0 0.0
        %1133 = vmatpush1.msra.mxu0 0.0
        %1134 = vmatprep.subr.mxu0 0.0
        %1135 = vmatpush1.msra.mxu0 0.0
        %1136 = vmatprep.subr.mxu0 0.0
        %1137 = vmatpush1.msra.mxu0 0.0
        %1138 = vmatprep.subr.mxu0 0.0
        %1139 = vmatpush1.msra.mxu0 0.0
        %1140 = vmatprep.subr.mxu0 0.0
        %1141 = vmatpush1.msra.mxu0 0.0
        %1142 = vmatprep.subr.mxu0 0.0
        %1143 = vmatpush1.msra.mxu0 0.0
        %1144 = vmatprep.subr.mxu0 0.0
        %1145 = vmatpush1.msra.mxu0 0.0
        %1146 = vmatprep.subr.mxu0 0.0
        %1147 = vmatpush1.msra.mxu0 0.0
        %1148 = vmatprep.subr.mxu0 0.0
        %1149 = vmatpush1.msra.mxu0 0.0
        %1150 = vmatprep.subr.mxu0 0.0
        %1151 = vmatpush1.msra.mxu0 0.0
        %1152 = vmatprep.subr.mxu0 0.0
        %1153 = vmatpush1.msra.mxu0 0.0
        %1154 = vmatprep.subr.mxu0 0.0
        %1155 = vmatpush1.msra.mxu0 0.0
        %1156 = vmatprep.subr.mxu0 0.0
        %1157 = vmatpush1.msra.mxu0 0.0
        %1158 = vmatprep.subr.mxu0 0.0
        %1159 = vmatpush1.msra.mxu0 0.0
        %1160 = vmatprep.subr.mxu0 0.0
        %1161 = vmatpush1.msra.mxu0 0.0
        %1162 = vmatprep.subr.mxu0 0.0
        %1163 = vmatpush1.msra.mxu0 0.0
        %1164 = vmatprep.subr.mxu0 0.0
        %1165 = vmatpush1.msra.mxu0 0.0
        %1166 = vmatprep.subr.mxu0 0.0
        %1167 = vmatpush1.msra.mxu0 0.0
        %1168 = vmatprep.subr.mxu0 0.0
        %1169 = vmatpush1.msra.mxu0 0.0
        %1170 = vmatprep.subr.mxu0 0.0
        %1171 = vmatpush1.msra.mxu0 0.0
        %1172 = vmatprep.subr.mxu0 0.0
        %1173 = vmatpush1.msra.mxu0 0.0
        %1174 = vmatprep.subr.mxu0 0.0
        %1175 = vmatpush1.msra.mxu0 0.0
        %1176 = vmatprep.subr.mxu0 0.0
        %1177 = vmatpush1.msra.mxu0 0.0
        %1178 = vmatprep.subr.mxu0 0.0
        %1179 = vmatpush1.msra.mxu0 0.0
        %1180 = vmatprep.subr.mxu0 0.0
        %1181 = vmatpush1.msra.mxu0 0.0
        %1182 = vmatprep.subr.mxu0 0.0
        %1183 = vmatpush1.msra.mxu0 0.0
        %1184 = vmatprep.subr.mxu0 0.0
        %1185 = vmatpush1.msra.mxu0 0.0
        %1186 = vmatprep.subr.mxu0 0.0
        %1187 = vmatpush1.msra.mxu0 0.0
        %1188 = vmatprep.subr.mxu0 0.0
        %1189 = vmatpush1.msra.mxu0 0.0
        %1190 = vmatprep.subr.mxu0 0.0
        %1191 = vmatpush1.msra.mxu0 0.0
        %1192 = vmatprep.mubr.f32.mxu0 0.0
        %1193 = vmatmul.mubr.f32.gmra.mrb[0].mxu0 %v1126
        %v1194 = vpop.f32.mrb[0].mxu0
        %v1195 = vadd.f32 0.0, %v1194
        %v1196 = vpop.f32.mrb[0].mxu0
        %v1197 = vadd.f32 0.0, %v1196
        %1198 = vdwg.mxu0
        %v1199 = vmax.f32 %v1120, %v1195
        %v1200 = vmax.f32 %v1122, %v1197
        %v1201 = vld [vmem:[#allocation5] sm:$0xff]
        %v1202 = vld [vmem:[#allocation5 + $0x8] sm:$0xff]
        %v1203 = vld [vmem:[#allocation5 + $0x10] sm:$0xff]
        %v1204 = vld [vmem:[#allocation5 + $0x18] sm:$0xff]
        %v1205 = vld [vmem:[#allocation5 + $0x20] sm:$0xff]
        %v1206 = vld [vmem:[#allocation5 + $0x28] sm:$0xff]
        %v1207 = vld [vmem:[#allocation5 + $0x30] sm:$0xff]
        %v1208 = vld [vmem:[#allocation5 + $0x38] sm:$0xff]
        %v1209 = vld [vmem:[#allocation5 + $0x40] sm:$0xff]
        %v1210 = vld [vmem:[#allocation5 + $0x48] sm:$0xff]
        %v1211 = vld [vmem:[#allocation5 + $0x50] sm:$0xff]
        %v1212 = vld [vmem:[#allocation5 + $0x58] sm:$0xff]
        %v1213 = vld [vmem:[#allocation5 + $0x60] sm:$0xff]
        %v1214 = vld [vmem:[#allocation5 + $0x68] sm:$0xff]
        %v1215 = vld [vmem:[#allocation5 + $0x70] sm:$0xff]
        %v1216 = vld [vmem:[#allocation5 + $0x78] sm:$0xff]
        %v1217 = vld [vmem:[#allocation5 + $0x80] sm:$0xff]
        %v1218 = vld [vmem:[#allocation5 + $0x88] sm:$0xff]
        %v1219 = vld [vmem:[#allocation5 + $0x90] sm:$0xff]
        %v1220 = vld [vmem:[#allocation5 + $0x98] sm:$0xff]
        %v1221 = vld [vmem:[#allocation5 + $0xa0] sm:$0xff]
        %v1222 = vld [vmem:[#allocation5 + $0xa8] sm:$0xff]
        %v1223 = vld [vmem:[#allocation5 + $0xb0] sm:$0xff]
        %v1224 = vld [vmem:[#allocation5 + $0xb8] sm:$0xff]
        %v1225 = vld [vmem:[#allocation5 + $0xc0] sm:$0xff]
        %v1226 = vld [vmem:[#allocation5 + $0xc8] sm:$0xff]
        %v1227 = vld [vmem:[#allocation5 + $0xd0] sm:$0xff]
        %v1228 = vld [vmem:[#allocation5 + $0xd8] sm:$0xff]
        %v1229 = vld [vmem:[#allocation5 + $0xe0] sm:$0xff]
        %v1230 = vld [vmem:[#allocation5 + $0xe8] sm:$0xff]
        %v1231 = vld [vmem:[#allocation5 + $0xf0] sm:$0xff]
        %v1232 = vld [vmem:[#allocation5 + $0xf8] sm:$0xff]
        %1233 = vmatprep.subr.mxu0 0.0
        %1234 = vmatpush1.msra.mxu0 %v1201
        %1235 = vmatprep.subr.mxu0 0.0
        %1236 = vmatpush1.msra.mxu0 %v1202
        %1237 = vmatprep.subr.mxu0 0.0
        %1238 = vmatpush1.msra.mxu0 %v1203
        %1239 = vmatprep.subr.mxu0 0.0
        %1240 = vmatpush1.msra.mxu0 %v1204
        %1241 = vmatprep.subr.mxu0 0.0
        %1242 = vmatpush1.msra.mxu0 %v1205
        %1243 = vmatprep.subr.mxu0 0.0
        %1244 = vmatpush1.msra.mxu0 %v1206
        %1245 = vmatprep.subr.mxu0 0.0
        %1246 = vmatpush1.msra.mxu0 %v1207
        %1247 = vmatprep.subr.mxu0 0.0
        %1248 = vmatpush1.msra.mxu0 %v1208
        %1249 = vmatprep.subr.mxu0 0.0
        %1250 = vmatpush1.msra.mxu0 %v1209
        %1251 = vmatprep.subr.mxu0 0.0
        %1252 = vmatpush1.msra.mxu0 %v1210
        %1253 = vmatprep.subr.mxu0 0.0
        %1254 = vmatpush1.msra.mxu0 %v1211
        %1255 = vmatprep.subr.mxu0 0.0
        %1256 = vmatpush1.msra.mxu0 %v1212
        %1257 = vmatprep.subr.mxu0 0.0
        %1258 = vmatpush1.msra.mxu0 %v1213
        %1259 = vmatprep.subr.mxu0 0.0
        %1260 = vmatpush1.msra.mxu0 %v1214
        %1261 = vmatprep.subr.mxu0 0.0
        %1262 = vmatpush1.msra.mxu0 %v1215
        %1263 = vmatprep.subr.mxu0 0.0
        %1264 = vmatpush1.msra.mxu0 %v1216
        %1265 = vmatprep.subr.mxu0 0.0
        %1266 = vmatpush1.msra.mxu0 %v1217
        %1267 = vmatprep.subr.mxu0 0.0
        %1268 = vmatpush1.msra.mxu0 %v1218
        %1269 = vmatprep.subr.mxu0 0.0
        %1270 = vmatpush1.msra.mxu0 %v1219
        %1271 = vmatprep.subr.mxu0 0.0
        %1272 = vmatpush1.msra.mxu0 %v1220
        %1273 = vmatprep.subr.mxu0 0.0
        %1274 = vmatpush1.msra.mxu0 %v1221
        %1275 = vmatprep.subr.mxu0 0.0
        %1276 = vmatpush1.msra.mxu0 %v1222
        %1277 = vmatprep.subr.mxu0 0.0
        %1278 = vmatpush1.msra.mxu0 %v1223
        %1279 = vmatprep.subr.mxu0 0.0
        %1280 = vmatpush1.msra.mxu0 %v1224
        %1281 = vmatprep.subr.mxu0 0.0
        %1282 = vmatpush1.msra.mxu0 %v1225
        %1283 = vmatprep.subr.mxu0 0.0
        %1284 = vmatpush1.msra.mxu0 %v1226
        %1285 = vmatprep.subr.mxu0 0.0
        %1286 = vmatpush1.msra.mxu0 %v1227
        %1287 = vmatprep.subr.mxu0 0.0
        %1288 = vmatpush1.msra.mxu0 %v1228
        %1289 = vmatprep.subr.mxu0 0.0
        %1290 = vmatpush1.msra.mxu0 %v1229
        %1291 = vmatprep.subr.mxu0 0.0
        %1292 = vmatpush1.msra.mxu0 %v1230
        %1293 = vmatprep.subr.mxu0 0.0
        %1294 = vmatpush1.msra.mxu0 %v1231
        %1295 = vmatprep.subr.mxu0 0.0
        %1296 = vmatpush1.msra.mxu0 %v1232
        %1297 = vmatprep.mubr.f32.mxu0 %v1200
        %1298 = vmatmul.mubr.f32.gmra.mrb[0].mxu0 %v1199
        %v1299 = vpop.f32.mrb[0].mxu0
        %v1300 = vadd.f32 0.0, %v1299
        %v1301 = vpop.f32.mrb[0].mxu0
        %1302 = vdwg.mxu0
        %v1303 = vld [vmem:[#allocation8] sm:$0xff]
        %v1304 = vld [vmem:[#allocation8 + $0x8] sm:$0xff]
        %v1305 = vld [vmem:[#allocation8 + $0x10] sm:$0xff]
        %v1306 = vld [vmem:[#allocation8 + $0x18] sm:$0xff]
        %v1307 = vld [vmem:[#allocation8 + $0x20] sm:$0xff]
        %v1308 = vld [vmem:[#allocation8 + $0x28] sm:$0xff]
        %v1309 = vld [vmem:[#allocation8 + $0x30] sm:$0xff]
        %v1310 = vld [vmem:[#allocation8 + $0x38] sm:$0xff]
        %v1311 = vld [vmem:[#allocation8 + $0x40] sm:$0xff]
        %v1312 = vld [vmem:[#allocation8 + $0x48] sm:$0xff]
        %v1313 = vld [vmem:[#allocation8 + $0x50] sm:$0xff]
        %v1314 = vld [vmem:[#allocation8 + $0x58] sm:$0xff]
        %v1315 = vld [vmem:[#allocation8 + $0x60] sm:$0xff]
        %v1316 = vld [vmem:[#allocation8 + $0x68] sm:$0xff]
        %v1317 = vld [vmem:[#allocation8 + $0x70] sm:$0xff]
        %v1318 = vld [vmem:[#allocation8 + $0x78] sm:$0xff]
        %v1319 = vld [vmem:[#allocation8 + $0x80] sm:$0xff]
        %v1320 = vld [vmem:[#allocation8 + $0x88] sm:$0xff]
        %v1321 = vld [vmem:[#allocation8 + $0x90] sm:$0xff]
        %v1322 = vld [vmem:[#allocation8 + $0x98] sm:$0xff]
        %v1323 = vld [vmem:[#allocation8 + $0xa0] sm:$0xff]
        %v1324 = vld [vmem:[#allocation8 + $0xa8] sm:$0xff]
        %v1325 = vld [vmem:[#allocation8 + $0xb0] sm:$0xff]
        %v1326 = vld [vmem:[#allocation8 + $0xb8] sm:$0xff]
        %v1327 = vld [vmem:[#allocation8 + $0xc0] sm:$0xff]
        %v1328 = vld [vmem:[#allocation8 + $0xc8] sm:$0xff]
        %v1329 = vld [vmem:[#allocation8 + $0xd0] sm:$0xff]
        %v1330 = vld [vmem:[#allocation8 + $0xd8] sm:$0xff]
        %v1331 = vld [vmem:[#allocation8 + $0xe0] sm:$0xff]
        %v1332 = vld [vmem:[#allocation8 + $0xe8] sm:$0xff]
        %v1333 = vld [vmem:[#allocation8 + $0xf0] sm:$0xff]
        %v1334 = vld [vmem:[#allocation8 + $0xf8] sm:$0xff]
        %1335 = vmatprep.subr.mxu0 0.0
        %1336 = vmatpush1.msra.mxu0 %v1303
        %1337 = vmatprep.subr.mxu0 0.0
        %1338 = vmatpush1.msra.mxu0 %v1304
        %1339 = vmatprep.subr.mxu0 0.0
        %1340 = vmatpush1.msra.mxu0 %v1305
        %1341 = vmatprep.subr.mxu0 0.0
        %1342 = vmatpush1.msra.mxu0 %v1306
        %1343 = vmatprep.subr.mxu0 0.0
        %1344 = vmatpush1.msra.mxu0 %v1307
        %1345 = vmatprep.subr.mxu0 0.0
        %1346 = vmatpush1.msra.mxu0 %v1308
        %1347 = vmatprep.subr.mxu0 0.0
        %1348 = vmatpush1.msra.mxu0 %v1309
        %1349 = vmatprep.subr.mxu0 0.0
        %1350 = vmatpush1.msra.mxu0 %v1310
        %1351 = vmatprep.subr.mxu0 0.0
        %1352 = vmatpush1.msra.mxu0 %v1311
        %1353 = vmatprep.subr.mxu0 0.0
        %1354 = vmatpush1.msra.mxu0 %v1312
        %1355 = vmatprep.subr.mxu0 0.0
        %1356 = vmatpush1.msra.mxu0 %v1313
        %1357 = vmatprep.subr.mxu0 0.0
        %1358 = vmatpush1.msra.mxu0 %v1314
        %1359 = vmatprep.subr.mxu0 0.0
        %1360 = vmatpush1.msra.mxu0 %v1315
        %1361 = vmatprep.subr.mxu0 0.0
        %1362 = vmatpush1.msra.mxu0 %v1316
        %1363 = vmatprep.subr.mxu0 0.0
        %1364 = vmatpush1.msra.mxu0 %v1317
        %1365 = vmatprep.subr.mxu0 0.0
        %1366 = vmatpush1.msra.mxu0 %v1318
        %1367 = vmatprep.subr.mxu0 0.0
        %1368 = vmatpush1.msra.mxu0 %v1319
        %1369 = vmatprep.subr.mxu0 0.0
        %1370 = vmatpush1.msra.mxu0 %v1320
        %1371 = vmatprep.subr.mxu0 0.0
        %1372 = vmatpush1.msra.mxu0 %v1321
        %1373 = vmatprep.subr.mxu0 0.0
        %1374 = vmatpush1.msra.mxu0 %v1322
        %1375 = vmatprep.subr.mxu0 0.0
        %1376 = vmatpush1.msra.mxu0 %v1323
        %1377 = vmatprep.subr.mxu0 0.0
        %1378 = vmatpush1.msra.mxu0 %v1324
        %1379 = vmatprep.subr.mxu0 0.0
        %1380 = vmatpush1.msra.mxu0 %v1325
        %1381 = vmatprep.subr.mxu0 0.0
        %1382 = vmatpush1.msra.mxu0 %v1326
        %1383 = vmatprep.subr.mxu0 0.0
        %1384 = vmatpush1.msra.mxu0 %v1327
        %1385 = vmatprep.subr.mxu0 0.0
        %1386 = vmatpush1.msra.mxu0 %v1328
        %1387 = vmatprep.subr.mxu0 0.0
        %1388 = vmatpush1.msra.mxu0 %v1329
        %1389 = vmatprep.subr.mxu0 0.0
        %1390 = vmatpush1.msra.mxu0 %v1330
        %1391 = vmatprep.subr.mxu0 0.0
        %1392 = vmatpush1.msra.mxu0 %v1331
        %1393 = vmatprep.subr.mxu0 0.0
        %1394 = vmatpush1.msra.mxu0 %v1332
        %1395 = vmatprep.subr.mxu0 0.0
        %1396 = vmatpush1.msra.mxu0 %v1333
        %1397 = vmatprep.subr.mxu0 0.0
        %1398 = vmatpush1.msra.mxu0 %v1334
        %1399 = vmatprep.mubr.f32.mxu0 %v1200
        %1400 = vmatmul.mubr.f32.gmra.mrb[0].mxu0 %v1199
        %v1401 = vpop.f32.mrb[0].mxu0
        %v1402 = vadd.f32 0.0, %v1401
        %v1403 = vpop.f32.mrb[0].mxu0
        %1404 = vdwg.mxu0
        %v1405 = vmax.f32 %v1300, %v1402
        %1406 = vst [vmem:[#allocation3] sm:$0x1] 0.0
        %1407 = vst [vmem:[#allocation3 + $0x9] sm:$0x1] 0.0
        %1408 = vst [vmem:[#allocation3 + $0x1] sm:$0xff] %v1405
        %v1409 = vld [vmem:[#allocation3] sm:$0xff]
        %v1410 = vpack.c.bf16 %v1409, %v1409
        %v1411 = vld [vmem:[%s7] sm:$0xff]
        %v1412 = vld [vmem:[%s7 + $0x8] sm:$0xff]
        %v1413 = vld [vmem:[%s7 + $0x10] sm:$0xff]
        %v1414 = vld [vmem:[%s7 + $0x18] sm:$0xff]
        %v1415 = vld [vmem:[%s7 + $0x20] sm:$0xff]
        %v1416 = vld [vmem:[%s7 + $0x28] sm:$0xff]
        %v1417 = vld [vmem:[%s7 + $0x30] sm:$0xff]
        %v1418 = vld [vmem:[%s7 + $0x38] sm:$0xff]
        %v1419 = vld [vmem:[%s7 + $0x40] sm:$0xff]
        %v1420 = vld [vmem:[%s7 + $0x48] sm:$0xff]
        %v1421 = vld [vmem:[%s7 + $0x50] sm:$0xff]
        %v1422 = vld [vmem:[%s7 + $0x58] sm:$0xff]
        %v1423 = vld [vmem:[%s7 + $0x60] sm:$0xff]
        %v1424 = vld [vmem:[%s7 + $0x68] sm:$0xff]
        %v1425 = vld [vmem:[%s7 + $0x70] sm:$0xff]
        %v1426 = vld [vmem:[%s7 + $0x78] sm:$0xff]
        %v1427 = vld [vmem:[#allocation3 + $0x1] sm:$0xff]
        %v1428 = vpack.c.bf16 %v1427, %v1427
        %s1429 = scalar_lea.vmem %s7, 128
        %v1430 = vld [vmem:[%s1429] sm:$0xff]
        %v1431 = vld [vmem:[%s1429 + $0x8] sm:$0xff]
        %v1432 = vld [vmem:[%s1429 + $0x10] sm:$0xff]
        %v1433 = vld [vmem:[%s1429 + $0x18] sm:$0xff]
        %v1434 = vld [vmem:[%s1429 + $0x20] sm:$0xff]
        %v1435 = vld [vmem:[%s1429 + $0x28] sm:$0xff]
        %v1436 = vld [vmem:[%s1429 + $0x30] sm:$0xff]
        %v1437 = vld [vmem:[%s1429 + $0x38] sm:$0xff]
        %v1438 = vld [vmem:[%s1429 + $0x40] sm:$0xff]
        %v1439 = vld [vmem:[%s1429 + $0x48] sm:$0xff]
        %v1440 = vld [vmem:[%s1429 + $0x50] sm:$0xff]
        %v1441 = vld [vmem:[%s1429 + $0x58] sm:$0xff]
        %v1442 = vld [vmem:[%s1429 + $0x60] sm:$0xff]
        %v1443 = vld [vmem:[%s1429 + $0x68] sm:$0xff]
        %v1444 = vld [vmem:[%s1429 + $0x70] sm:$0xff]
        %v1445 = vld [vmem:[%s1429 + $0x78] sm:$0xff]
        %v1462 = vunpack.c.l.b16 %v1430
        %v1463 = vunpack.c.h.b16 %v1430
        %v1464 = vunpack.c.l.b16 %v1431
        %v1465 = vunpack.c.h.b16 %v1431
        %v1466 = vunpack.c.l.b16 %v1432
        %v1467 = vunpack.c.h.b16 %v1432
        %v1468 = vunpack.c.l.b16 %v1433
        %v1469 = vunpack.c.h.b16 %v1433
        %v1470 = vunpack.c.l.b16 %v1434
        %v1471 = vunpack.c.h.b16 %v1434
        %v1472 = vunpack.c.l.b16 %v1435
        %v1473 = vunpack.c.h.b16 %v1435
        %v1474 = vunpack.c.l.b16 %v1436
        %v1475 = vunpack.c.h.b16 %v1436
        %v1476 = vunpack.c.l.b16 %v1437
        %v1477 = vunpack.c.h.b16 %v1437
        %v1478 = vunpack.c.l.b16 %v1438
        %v1479 = vunpack.c.h.b16 %v1438
        %v1480 = vunpack.c.l.b16 %v1439
        %v1481 = vunpack.c.h.b16 %v1439
        %v1482 = vunpack.c.l.b16 %v1440
        %v1483 = vunpack.c.h.b16 %v1440
        %v1484 = vunpack.c.l.b16 %v1441
        %v1485 = vunpack.c.h.b16 %v1441
        %v1486 = vunpack.c.l.b16 %v1442
        %v1487 = vunpack.c.h.b16 %v1442
        %v1488 = vunpack.c.l.b16 %v1443
        %v1489 = vunpack.c.h.b16 %v1443
        %v1490 = vunpack.c.l.b16 %v1444
        %v1491 = vunpack.c.h.b16 %v1444
        %v1492 = vunpack.c.l.b16 %v1445
        %v1493 = vunpack.c.h.b16 %v1445
        %v1494 = vpack.c.b16 %v1464, %v1462
        %v1495 = vpack.c.b16 %v1465, %v1463
        %v1496 = vpack.c.b16 %v1468, %v1466
        %v1497 = vpack.c.b16 %v1469, %v1467
        %v1498 = vpack.c.b16 %v1472, %v1470
        %v1499 = vpack.c.b16 %v1473, %v1471
        %v1500 = vpack.c.b16 %v1476, %v1474
        %v1501 = vpack.c.b16 %v1477, %v1475
        %v1502 = vpack.c.b16 %v1480, %v1478
        %v1503 = vpack.c.b16 %v1481, %v1479
        %v1504 = vpack.c.b16 %v1484, %v1482
        %v1505 = vpack.c.b16 %v1485, %v1483
        %v1506 = vpack.c.b16 %v1488, %v1486
        %v1507 = vpack.c.b16 %v1489, %v1487
        %v1508 = vpack.c.b16 %v1492, %v1490
        %v1509 = vpack.c.b16 %v1493, %v1491
        %1526 = vmatprep.subr.bf16.mxu0 %v1495
        %1527 = vmatpush1.bf16.msra.mxu0 %v1494
        %1528 = vmatprep.subr.bf16.mxu0 %v1497
        %1529 = vmatpush1.bf16.msra.mxu0 %v1496
        %1530 = vmatprep.subr.bf16.mxu0 %v1499
        %1531 = vmatpush1.bf16.msra.mxu0 %v1498
        %1532 = vmatprep.subr.bf16.mxu0 %v1501
        %1533 = vmatpush1.bf16.msra.mxu0 %v1500
        %1534 = vmatprep.subr.bf16.mxu0 %v1503
        %1535 = vmatpush1.bf16.msra.mxu0 %v1502
        %1536 = vmatprep.subr.bf16.mxu0 %v1505
        %1537 = vmatpush1.bf16.msra.mxu0 %v1504
        %1538 = vmatprep.subr.bf16.mxu0 %v1507
        %1539 = vmatpush1.bf16.msra.mxu0 %v1506
        %1540 = vmatprep.subr.bf16.mxu0 %v1509
        %1541 = vmatpush1.bf16.msra.mxu0 %v1508
        %1542 = vmatprep.subr.bf16.mxu0 0
        %1543 = vmatpush1.bf16.msra.mxu0 0
        %1544 = vmatprep.subr.bf16.mxu0 0
        %1545 = vmatpush1.bf16.msra.mxu0 0
        %1546 = vmatprep.subr.bf16.mxu0 0
        %1547 = vmatpush1.bf16.msra.mxu0 0
        %1548 = vmatprep.subr.bf16.mxu0 0
        %1549 = vmatpush1.bf16.msra.mxu0 0
        %1550 = vmatprep.subr.bf16.mxu0 0
        %1551 = vmatpush1.bf16.msra.mxu0 0
        %1552 = vmatprep.subr.bf16.mxu0 0
        %1553 = vmatpush1.bf16.msra.mxu0 0
        %1554 = vmatprep.subr.bf16.mxu0 0
        %1555 = vmatpush1.bf16.msra.mxu0 0
        %1556 = vmatprep.subr.bf16.mxu0 0
        %1557 = vmatpush1.bf16.msra.mxu0 0
        %1558 = vmatprep.mubr.bf16.mxu0 0
        %1559 = vmatmul.mubr.bf16.gmra.mrb[0].mxu0 %v1428
        %v1560 = vpop.f32.mrb[0].mxu0
        %v1561 = vadd.f32 0.0, %v1560
        %v1562 = vpop.f32.mrb[0].mxu0
        %v1563 = vadd.f32 0.0, %v1562
        %v1564 = vpop.f32.mrb[0].mxu0
        %v1565 = vpop.f32.mrb[0].mxu0
        %1566 = vdwg.mxu0
        %v1583 = vunpack.c.l.b16 %v1411
        %v1584 = vunpack.c.h.b16 %v1411
        %v1585 = vunpack.c.l.b16 %v1412
        %v1586 = vunpack.c.h.b16 %v1412
        %v1587 = vunpack.c.l.b16 %v1413
        %v1588 = vunpack.c.h.b16 %v1413
        %v1589 = vunpack.c.l.b16 %v1414
        %v1590 = vunpack.c.h.b16 %v1414
        %v1591 = vunpack.c.l.b16 %v1415
        %v1592 = vunpack.c.h.b16 %v1415
        %v1593 = vunpack.c.l.b16 %v1416
        %v1594 = vunpack.c.h.b16 %v1416
        %v1595 = vunpack.c.l.b16 %v1417
        %v1596 = vunpack.c.h.b16 %v1417
        %v1597 = vunpack.c.l.b16 %v1418
        %v1598 = vunpack.c.h.b16 %v1418
        %v1599 = vunpack.c.l.b16 %v1419
        %v1600 = vunpack.c.h.b16 %v1419
        %v1601 = vunpack.c.l.b16 %v1420
        %v1602 = vunpack.c.h.b16 %v1420
        %v1603 = vunpack.c.l.b16 %v1421
        %v1604 = vunpack.c.h.b16 %v1421
        %v1605 = vunpack.c.l.b16 %v1422
        %v1606 = vunpack.c.h.b16 %v1422
        %v1607 = vunpack.c.l.b16 %v1423
        %v1608 = vunpack.c.h.b16 %v1423
        %v1609 = vunpack.c.l.b16 %v1424
        %v1610 = vunpack.c.h.b16 %v1424
        %v1611 = vunpack.c.l.b16 %v1425
        %v1612 = vunpack.c.h.b16 %v1425
        %v1613 = vunpack.c.l.b16 %v1426
        %v1614 = vunpack.c.h.b16 %v1426
        %v1615 = vpack.c.b16 %v1585, %v1583
        %v1616 = vpack.c.b16 %v1586, %v1584
        %v1617 = vpack.c.b16 %v1589, %v1587
        %v1618 = vpack.c.b16 %v1590, %v1588
        %v1619 = vpack.c.b16 %v1593, %v1591
        %v1620 = vpack.c.b16 %v1594, %v1592
        %v1621 = vpack.c.b16 %v1597, %v1595
        %v1622 = vpack.c.b16 %v1598, %v1596
        %v1623 = vpack.c.b16 %v1601, %v1599
        %v1624 = vpack.c.b16 %v1602, %v1600
        %v1625 = vpack.c.b16 %v1605, %v1603
        %v1626 = vpack.c.b16 %v1606, %v1604
        %v1627 = vpack.c.b16 %v1609, %v1607
        %v1628 = vpack.c.b16 %v1610, %v1608
        %v1629 = vpack.c.b16 %v1613, %v1611
        %v1630 = vpack.c.b16 %v1614, %v1612
        %1647 = vmatprep.subr.bf16.mxu0 %v1616
        %1648 = vmatpush1.bf16.msra.mxu0 %v1615
        %1649 = vmatprep.subr.bf16.mxu0 %v1618
        %1650 = vmatpush1.bf16.msra.mxu0 %v1617
        %1651 = vmatprep.subr.bf16.mxu0 %v1620
        %1652 = vmatpush1.bf16.msra.mxu0 %v1619
        %1653 = vmatprep.subr.bf16.mxu0 %v1622
        %1654 = vmatpush1.bf16.msra.mxu0 %v1621
        %1655 = vmatprep.subr.bf16.mxu0 %v1624
        %1656 = vmatpush1.bf16.msra.mxu0 %v1623
        %1657 = vmatprep.subr.bf16.mxu0 %v1626
        %1658 = vmatpush1.bf16.msra.mxu0 %v1625
        %1659 = vmatprep.subr.bf16.mxu0 %v1628
        %1660 = vmatpush1.bf16.msra.mxu0 %v1627
        %1661 = vmatprep.subr.bf16.mxu0 %v1630
        %1662 = vmatpush1.bf16.msra.mxu0 %v1629
        %1663 = vmatprep.subr.bf16.mxu0 0
        %1664 = vmatpush1.bf16.msra.mxu0 0
        %1665 = vmatprep.subr.bf16.mxu0 0
        %1666 = vmatpush1.bf16.msra.mxu0 0
        %1667 = vmatprep.subr.bf16.mxu0 0
        %1668 = vmatpush1.bf16.msra.mxu0 0
        %1669 = vmatprep.subr.bf16.mxu0 0
        %1670 = vmatpush1.bf16.msra.mxu0 0
        %1671 = vmatprep.subr.bf16.mxu0 0
        %1672 = vmatpush1.bf16.msra.mxu0 0
        %1673 = vmatprep.subr.bf16.mxu0 0
        %1674 = vmatpush1.bf16.msra.mxu0 0
        %1675 = vmatprep.subr.bf16.mxu0 0
        %1676 = vmatpush1.bf16.msra.mxu0 0
        %1677 = vmatprep.subr.bf16.mxu0 0
        %1678 = vmatpush1.bf16.msra.mxu0 0
        %1679 = vmatprep.mubr.bf16.mxu0 0
        %1680 = vmatmul.mubr.bf16.gmra.mrb[0].mxu0 %v1410
        %v1681 = vpop.f32.mrb[0].mxu0
        %v1682 = vadd.f32 %v1561, %v1681
        %v1683 = vpop.f32.mrb[0].mxu0
        %v1684 = vadd.f32 %v1563, %v1683
        %v1685 = vpop.f32.mrb[0].mxu0
        %v1686 = vpop.f32.mrb[0].mxu0
        %1687 = vdwg.mxu0
        %v1688 = vld [vmem:[#allocation3 + $0x2] sm:$0xff]
        %v1689 = vpack.c.bf16 %v1688, %v1688
        %s1690 = scalar_lea.vmem %s7, 256
        %v1691 = vld [vmem:[%s1690] sm:$0xff]
        %v1692 = vld [vmem:[%s1690 + $0x8] sm:$0xff]
        %v1693 = vld [vmem:[%s1690 + $0x10] sm:$0xff]
        %v1694 = vld [vmem:[%s1690 + $0x18] sm:$0xff]
        %v1695 = vld [vmem:[%s1690 + $0x20] sm:$0xff]
        %v1696 = vld [vmem:[%s1690 + $0x28] sm:$0xff]
        %v1697 = vld [vmem:[%s1690 + $0x30] sm:$0xff]
        %v1698 = vld [vmem:[%s1690 + $0x38] sm:$0xff]
        %v1699 = vld [vmem:[%s1690 + $0x40] sm:$0xff]
        %v1700 = vld [vmem:[%s1690 + $0x48] sm:$0xff]
        %v1701 = vld [vmem:[%s1690 + $0x50] sm:$0xff]
        %v1702 = vld [vmem:[%s1690 + $0x58] sm:$0xff]
        %v1703 = vld [vmem:[%s1690 + $0x60] sm:$0xff]
        %v1704 = vld [vmem:[%s1690 + $0x68] sm:$0xff]
        %v1705 = vld [vmem:[%s1690 + $0x70] sm:$0xff]
        %v1706 = vld [vmem:[%s1690 + $0x78] sm:$0xff]
        %v1723 = vunpack.c.l.b16 %v1691
        %v1724 = vunpack.c.h.b16 %v1691
        %v1725 = vunpack.c.l.b16 %v1692
        %v1726 = vunpack.c.h.b16 %v1692
        %v1727 = vunpack.c.l.b16 %v1693
        %v1728 = vunpack.c.h.b16 %v1693
        %v1729 = vunpack.c.l.b16 %v1694
        %v1730 = vunpack.c.h.b16 %v1694
        %v1731 = vunpack.c.l.b16 %v1695
        %v1732 = vunpack.c.h.b16 %v1695
        %v1733 = vunpack.c.l.b16 %v1696
        %v1734 = vunpack.c.h.b16 %v1696
        %v1735 = vunpack.c.l.b16 %v1697
        %v1736 = vunpack.c.h.b16 %v1697
        %v1737 = vunpack.c.l.b16 %v1698
        %v1738 = vunpack.c.h.b16 %v1698
        %v1739 = vunpack.c.l.b16 %v1699
        %v1740 = vunpack.c.h.b16 %v1699
        %v1741 = vunpack.c.l.b16 %v1700
        %v1742 = vunpack.c.h.b16 %v1700
        %v1743 = vunpack.c.l.b16 %v1701
        %v1744 = vunpack.c.h.b16 %v1701
        %v1745 = vunpack.c.l.b16 %v1702
        %v1746 = vunpack.c.h.b16 %v1702
        %v1747 = vunpack.c.l.b16 %v1703
        %v1748 = vunpack.c.h.b16 %v1703
        %v1749 = vunpack.c.l.b16 %v1704
        %v1750 = vunpack.c.h.b16 %v1704
        %v1751 = vunpack.c.l.b16 %v1705
        %v1752 = vunpack.c.h.b16 %v1705
        %v1753 = vunpack.c.l.b16 %v1706
        %v1754 = vunpack.c.h.b16 %v1706
        %v1755 = vpack.c.b16 %v1725, %v1723
        %v1756 = vpack.c.b16 %v1726, %v1724
        %v1757 = vpack.c.b16 %v1729, %v1727
        %v1758 = vpack.c.b16 %v1730, %v1728
        %v1759 = vpack.c.b16 %v1733, %v1731
        %v1760 = vpack.c.b16 %v1734, %v1732
        %v1761 = vpack.c.b16 %v1737, %v1735
        %v1762 = vpack.c.b16 %v1738, %v1736
        %v1763 = vpack.c.b16 %v1741, %v1739
        %v1764 = vpack.c.b16 %v1742, %v1740
        %v1765 = vpack.c.b16 %v1745, %v1743
        %v1766 = vpack.c.b16 %v1746, %v1744
        %v1767 = vpack.c.b16 %v1749, %v1747
        %v1768 = vpack.c.b16 %v1750, %v1748
        %v1769 = vpack.c.b16 %v1753, %v1751
        %v1770 = vpack.c.b16 %v1754, %v1752
        %1787 = vmatprep.subr.bf16.mxu0 %v1756
        %1788 = vmatpush1.bf16.msra.mxu0 %v1755
        %1789 = vmatprep.subr.bf16.mxu0 %v1758
        %1790 = vmatpush1.bf16.msra.mxu0 %v1757
        %1791 = vmatprep.subr.bf16.mxu0 %v1760
        %1792 = vmatpush1.bf16.msra.mxu0 %v1759
        %1793 = vmatprep.subr.bf16.mxu0 %v1762
        %1794 = vmatpush1.bf16.msra.mxu0 %v1761
        %1795 = vmatprep.subr.bf16.mxu0 %v1764
        %1796 = vmatpush1.bf16.msra.mxu0 %v1763
        %1797 = vmatprep.subr.bf16.mxu0 %v1766
        %1798 = vmatpush1.bf16.msra.mxu0 %v1765
        %1799 = vmatprep.subr.bf16.mxu0 %v1768
        %1800 = vmatpush1.bf16.msra.mxu0 %v1767
        %1801 = vmatprep.subr.bf16.mxu0 %v1770
        %1802 = vmatpush1.bf16.msra.mxu0 %v1769
        %1803 = vmatprep.subr.bf16.mxu0 0
        %1804 = vmatpush1.bf16.msra.mxu0 0
        %1805 = vmatprep.subr.bf16.mxu0 0
        %1806 = vmatpush1.bf16.msra.mxu0 0
        %1807 = vmatprep.subr.bf16.mxu0 0
        %1808 = vmatpush1.bf16.msra.mxu0 0
        %1809 = vmatprep.subr.bf16.mxu0 0
        %1810 = vmatpush1.bf16.msra.mxu0 0
        %1811 = vmatprep.subr.bf16.mxu0 0
        %1812 = vmatpush1.bf16.msra.mxu0 0
        %1813 = vmatprep.subr.bf16.mxu0 0
        %1814 = vmatpush1.bf16.msra.mxu0 0
        %1815 = vmatprep.subr.bf16.mxu0 0
        %1816 = vmatpush1.bf16.msra.mxu0 0
        %1817 = vmatprep.subr.bf16.mxu0 0
        %1818 = vmatpush1.bf16.msra.mxu0 0
        %1819 = vmatprep.mubr.bf16.mxu0 0
        %1820 = vmatmul.mubr.bf16.gmra.mrb[0].mxu0 %v1689
        %v1821 = vpop.f32.mrb[0].mxu0
        %v1822 = vadd.f32 0.0, %v1821
        %v1823 = vpop.f32.mrb[0].mxu0
        %v1824 = vadd.f32 0.0, %v1823
        %v1825 = vpop.f32.mrb[0].mxu0
        %v1826 = vpop.f32.mrb[0].mxu0
        %1827 = vdwg.mxu0
        %v1828 = vadd.f32 %v1682, %v1822
        %v1829 = vadd.f32 %v1684, %v1824
        %v1830 = vld [vmem:[%s8] sm:$0x3]
        %v1832 = vlaneseq
        %v1833 = vshrl.u32 %v1832, 7
        %v1834 = vsub.s32 0, %v1833
        %v1835 = vrot.slane %v1830, %v1834
        %v1836 = vlaneseq
        %v1837 = vshrl.u32 %v1836, 7
        %v1838 = vsub.s32 1, %v1837
        %v1839 = vrot.slane %v1830, %v1838
        %v1842 = vadd.f32 %v1828, %v1835
        %v1843 = vadd.f32 %v1829, %v1839
        %v1844 = vmax.f32 %v1842, 0.0
        %v1845 = vmax.f32 %v1843, 0.0
        %v1846 = vld [vmem:[%s9] sm:$0xf]
        %vm1847 = vcmask 64512
        %v1849 = vsel %vm1847, %v1846, 0
        %1851 = vmatprep.subr.mxu0 %v1845
        %1852 = vmatpush1.msra.mxu0 %v1844
        %1853 = vmatprep.subr.mxu0 0.0
        %1854 = vmatpush1.msra.mxu0 0.0
        %1855 = vmatprep.subr.mxu0 0.0
        %1856 = vmatpush1.msra.mxu0 0.0
        %1857 = vmatprep.subr.mxu0 0.0
        %1858 = vmatpush1.msra.mxu0 0.0
        %1859 = vmatprep.subr.mxu0 0.0
        %1860 = vmatpush1.msra.mxu0 0.0
        %1861 = vmatprep.subr.mxu0 0.0
        %1862 = vmatpush1.msra.mxu0 0.0
        %1863 = vmatprep.subr.mxu0 0.0
        %1864 = vmatpush1.msra.mxu0 0.0
        %1865 = vmatprep.subr.mxu0 0.0
        %1866 = vmatpush1.msra.mxu0 0.0
        %1867 = vmatprep.subr.mxu0 0.0
        %1868 = vmatpush1.msra.mxu0 0.0
        %1869 = vmatprep.subr.mxu0 0.0
        %1870 = vmatpush1.msra.mxu0 0.0
        %1871 = vmatprep.subr.mxu0 0.0
        %1872 = vmatpush1.msra.mxu0 0.0
        %1873 = vmatprep.subr.mxu0 0.0
        %1874 = vmatpush1.msra.mxu0 0.0
        %1875 = vmatprep.subr.mxu0 0.0
        %1876 = vmatpush1.msra.mxu0 0.0
        %1877 = vmatprep.subr.mxu0 0.0
        %1878 = vmatpush1.msra.mxu0 0.0
        %1879 = vmatprep.subr.mxu0 0.0
        %1880 = vmatpush1.msra.mxu0 0.0
        %1881 = vmatprep.subr.mxu0 0.0
        %1882 = vmatpush1.msra.mxu0 0.0
        %1883 = vmatprep.subr.mxu0 0.0
        %1884 = vmatpush1.msra.mxu0 0.0
        %1885 = vmatprep.subr.mxu0 0.0
        %1886 = vmatpush1.msra.mxu0 0.0
        %1887 = vmatprep.subr.mxu0 0.0
        %1888 = vmatpush1.msra.mxu0 0.0
        %1889 = vmatprep.subr.mxu0 0.0
        %1890 = vmatpush1.msra.mxu0 0.0
        %1891 = vmatprep.subr.mxu0 0.0
        %1892 = vmatpush1.msra.mxu0 0.0
        %1893 = vmatprep.subr.mxu0 0.0
        %1894 = vmatpush1.msra.mxu0 0.0
        %1895 = vmatprep.subr.mxu0 0.0
        %1896 = vmatpush1.msra.mxu0 0.0
        %1897 = vmatprep.subr.mxu0 0.0
        %1898 = vmatpush1.msra.mxu0 0.0
        %1899 = vmatprep.subr.mxu0 0.0
        %1900 = vmatpush1.msra.mxu0 0.0
        %1901 = vmatprep.subr.mxu0 0.0
        %1902 = vmatpush1.msra.mxu0 0.0
        %1903 = vmatprep.subr.mxu0 0.0
        %1904 = vmatpush1.msra.mxu0 0.0
        %1905 = vmatprep.subr.mxu0 0.0
        %1906 = vmatpush1.msra.mxu0 0.0
        %1907 = vmatprep.subr.mxu0 0.0
        %1908 = vmatpush1.msra.mxu0 0.0
        %1909 = vmatprep.subr.mxu0 0.0
        %1910 = vmatpush1.msra.mxu0 0.0
        %1911 = vmatprep.subr.mxu0 0.0
        %1912 = vmatpush1.msra.mxu0 0.0
        %1913 = vmatprep.subr.mxu0 0.0
        %1914 = vmatpush1.msra.mxu0 0.0
        %1915 = vmatprep.mubr.f32.mxu0 0.0
        %1916 = vmatmul.mubr.f32.gmra.mrb[0].mxu0 %v1849
        %v1917 = vpop.f32.mrb[0].mxu0
        %v1918 = vadd.f32 0.0, %v1917
        %v1919 = vpop.f32.mrb[0].mxu0
        %v1920 = vadd.f32 0.0, %v1919
        %1921 = vdwg.mxu0
        %v1922 = vld [vmem:[%s10] sm:$0xf]
        %v1924 = vsel %vm1847, %v1922, 0
        %1926 = vmatprep.subr.mxu0 %v1845
        %1927 = vmatpush1.msra.mxu0 %v1844
        %1928 = vmatprep.subr.mxu0 0.0
        %1929 = vmatpush1.msra.mxu0 0.0
        %1930 = vmatprep.subr.mxu0 0.0
        %1931 = vmatpush1.msra.mxu0 0.0
        %1932 = vmatprep.subr.mxu0 0.0
        %1933 = vmatpush1.msra.mxu0 0.0
        %1934 = vmatprep.subr.mxu0 0.0
        %1935 = vmatpush1.msra.mxu0 0.0
        %1936 = vmatprep.subr.mxu0 0.0
        %1937 = vmatpush1.msra.mxu0 0.0
        %1938 = vmatprep.subr.mxu0 0.0
        %1939 = vmatpush1.msra.mxu0 0.0
        %1940 = vmatprep.subr.mxu0 0.0
        %1941 = vmatpush1.msra.mxu0 0.0
        %1942 = vmatprep.subr.mxu0 0.0
        %1943 = vmatpush1.msra.mxu0 0.0
        %1944 = vmatprep.subr.mxu0 0.0
        %1945 = vmatpush1.msra.mxu0 0.0
        %1946 = vmatprep.subr.mxu0 0.0
        %1947 = vmatpush1.msra.mxu0 0.0
        %1948 = vmatprep.subr.mxu0 0.0
        %1949 = vmatpush1.msra.mxu0 0.0
        %1950 = vmatprep.subr.mxu0 0.0
        %1951 = vmatpush1.msra.mxu0 0.0
        %1952 = vmatprep.subr.mxu0 0.0
        %1953 = vmatpush1.msra.mxu0 0.0
        %1954 = vmatprep.subr.mxu0 0.0
        %1955 = vmatpush1.msra.mxu0 0.0
        %1956 = vmatprep.subr.mxu0 0.0
        %1957 = vmatpush1.msra.mxu0 0.0
        %1958 = vmatprep.subr.mxu0 0.0
        %1959 = vmatpush1.msra.mxu0 0.0
        %1960 = vmatprep.subr.mxu0 0.0
        %1961 = vmatpush1.msra.mxu0 0.0
        %1962 = vmatprep.subr.mxu0 0.0
        %1963 = vmatpush1.msra.mxu0 0.0
        %1964 = vmatprep.subr.mxu0 0.0
        %1965 = vmatpush1.msra.mxu0 0.0
        %1966 = vmatprep.subr.mxu0 0.0
        %1967 = vmatpush1.msra.mxu0 0.0
        %1968 = vmatprep.subr.mxu0 0.0
        %1969 = vmatpush1.msra.mxu0 0.0
        %1970 = vmatprep.subr.mxu0 0.0
        %1971 = vmatpush1.msra.mxu0 0.0
        %1972 = vmatprep.subr.mxu0 0.0
        %1973 = vmatpush1.msra.mxu0 0.0
        %1974 = vmatprep.subr.mxu0 0.0
        %1975 = vmatpush1.msra.mxu0 0.0
        %1976 = vmatprep.subr.mxu0 0.0
        %1977 = vmatpush1.msra.mxu0 0.0
        %1978 = vmatprep.subr.mxu0 0.0
        %1979 = vmatpush1.msra.mxu0 0.0
        %1980 = vmatprep.subr.mxu0 0.0
        %1981 = vmatpush1.msra.mxu0 0.0
        %1982 = vmatprep.subr.mxu0 0.0
        %1983 = vmatpush1.msra.mxu0 0.0
        %1984 = vmatprep.subr.mxu0 0.0
        %1985 = vmatpush1.msra.mxu0 0.0
        %1986 = vmatprep.subr.mxu0 0.0
        %1987 = vmatpush1.msra.mxu0 0.0
        %1988 = vmatprep.subr.mxu0 0.0
        %1989 = vmatpush1.msra.mxu0 0.0
        %1990 = vmatprep.mubr.f32.mxu0 0.0
        %1991 = vmatmul.mubr.f32.gmra.mrb[0].mxu0 %v1924
        %v1992 = vpop.f32.mrb[0].mxu0
        %v1993 = vadd.f32 0.0, %v1992
        %v1994 = vpop.f32.mrb[0].mxu0
        %v1995 = vadd.f32 0.0, %v1994
        %1996 = vdwg.mxu0
        %v1997 = vmax.f32 %v1918, %v1993
        %v1998 = vmax.f32 %v1920, %v1995
        %v1999 = vld [vmem:[#allocation10] sm:$0xff]
        %v2000 = vld [vmem:[#allocation10 + $0x8] sm:$0xff]
        %v2001 = vld [vmem:[#allocation10 + $0x10] sm:$0xff]
        %v2002 = vld [vmem:[#allocation10 + $0x18] sm:$0xff]
        %v2003 = vld [vmem:[#allocation10 + $0x20] sm:$0xff]
        %v2004 = vld [vmem:[#allocation10 + $0x28] sm:$0xff]
        %v2005 = vld [vmem:[#allocation10 + $0x30] sm:$0xff]
        %v2006 = vld [vmem:[#allocation10 + $0x38] sm:$0xff]
        %v2007 = vld [vmem:[#allocation10 + $0x40] sm:$0xff]
        %v2008 = vld [vmem:[#allocation10 + $0x48] sm:$0xff]
        %v2009 = vld [vmem:[#allocation10 + $0x50] sm:$0xff]
        %v2010 = vld [vmem:[#allocation10 + $0x58] sm:$0xff]
        %v2011 = vld [vmem:[#allocation10 + $0x60] sm:$0xff]
        %v2012 = vld [vmem:[#allocation10 + $0x68] sm:$0xff]
        %v2013 = vld [vmem:[#allocation10 + $0x70] sm:$0xff]
        %v2014 = vld [vmem:[#allocation10 + $0x78] sm:$0xff]
        %v2015 = vld [vmem:[#allocation10 + $0x80] sm:$0xff]
        %v2016 = vld [vmem:[#allocation10 + $0x88] sm:$0xff]
        %v2017 = vld [vmem:[#allocation10 + $0x90] sm:$0xff]
        %v2018 = vld [vmem:[#allocation10 + $0x98] sm:$0xff]
        %v2019 = vld [vmem:[#allocation10 + $0xa0] sm:$0xff]
        %v2020 = vld [vmem:[#allocation10 + $0xa8] sm:$0xff]
        %v2021 = vld [vmem:[#allocation10 + $0xb0] sm:$0xff]
        %v2022 = vld [vmem:[#allocation10 + $0xb8] sm:$0xff]
        %v2023 = vld [vmem:[#allocation10 + $0xc0] sm:$0xff]
        %v2024 = vld [vmem:[#allocation10 + $0xc8] sm:$0xff]
        %v2025 = vld [vmem:[#allocation10 + $0xd0] sm:$0xff]
        %v2026 = vld [vmem:[#allocation10 + $0xd8] sm:$0xff]
        %v2027 = vld [vmem:[#allocation10 + $0xe0] sm:$0xff]
        %v2028 = vld [vmem:[#allocation10 + $0xe8] sm:$0xff]
        %v2029 = vld [vmem:[#allocation10 + $0xf0] sm:$0xff]
        %v2030 = vld [vmem:[#allocation10 + $0xf8] sm:$0xff]
        %2031 = vmatprep.subr.mxu0 0.0
        %2032 = vmatpush1.msra.mxu0 %v1999
        %2033 = vmatprep.subr.mxu0 0.0
        %2034 = vmatpush1.msra.mxu0 %v2000
        %2035 = vmatprep.subr.mxu0 0.0
        %2036 = vmatpush1.msra.mxu0 %v2001
        %2037 = vmatprep.subr.mxu0 0.0
        %2038 = vmatpush1.msra.mxu0 %v2002
        %2039 = vmatprep.subr.mxu0 0.0
        %2040 = vmatpush1.msra.mxu0 %v2003
        %2041 = vmatprep.subr.mxu0 0.0
        %2042 = vmatpush1.msra.mxu0 %v2004
        %2043 = vmatprep.subr.mxu0 0.0
        %2044 = vmatpush1.msra.mxu0 %v2005
        %2045 = vmatprep.subr.mxu0 0.0
        %2046 = vmatpush1.msra.mxu0 %v2006
        %2047 = vmatprep.subr.mxu0 0.0
        %2048 = vmatpush1.msra.mxu0 %v2007
        %2049 = vmatprep.subr.mxu0 0.0
        %2050 = vmatpush1.msra.mxu0 %v2008
        %2051 = vmatprep.subr.mxu0 0.0
        %2052 = vmatpush1.msra.mxu0 %v2009
        %2053 = vmatprep.subr.mxu0 0.0
        %2054 = vmatpush1.msra.mxu0 %v2010
        %2055 = vmatprep.subr.mxu0 0.0
        %2056 = vmatpush1.msra.mxu0 %v2011
        %2057 = vmatprep.subr.mxu0 0.0
        %2058 = vmatpush1.msra.mxu0 %v2012
        %2059 = vmatprep.subr.mxu0 0.0
        %2060 = vmatpush1.msra.mxu0 %v2013
        %2061 = vmatprep.subr.mxu0 0.0
        %2062 = vmatpush1.msra.mxu0 %v2014
        %2063 = vmatprep.subr.mxu0 0.0
        %2064 = vmatpush1.msra.mxu0 %v2015
        %2065 = vmatprep.subr.mxu0 0.0
        %2066 = vmatpush1.msra.mxu0 %v2016
        %2067 = vmatprep.subr.mxu0 0.0
        %2068 = vmatpush1.msra.mxu0 %v2017
        %2069 = vmatprep.subr.mxu0 0.0
        %2070 = vmatpush1.msra.mxu0 %v2018
        %2071 = vmatprep.subr.mxu0 0.0
        %2072 = vmatpush1.msra.mxu0 %v2019
        %2073 = vmatprep.subr.mxu0 0.0
        %2074 = vmatpush1.msra.mxu0 %v2020
        %2075 = vmatprep.subr.mxu0 0.0
        %2076 = vmatpush1.msra.mxu0 %v2021
        %2077 = vmatprep.subr.mxu0 0.0
        %2078 = vmatpush1.msra.mxu0 %v2022
        %2079 = vmatprep.subr.mxu0 0.0
        %2080 = vmatpush1.msra.mxu0 %v2023
        %2081 = vmatprep.subr.mxu0 0.0
        %2082 = vmatpush1.msra.mxu0 %v2024
        %2083 = vmatprep.subr.mxu0 0.0
        %2084 = vmatpush1.msra.mxu0 %v2025
        %2085 = vmatprep.subr.mxu0 0.0
        %2086 = vmatpush1.msra.mxu0 %v2026
        %2087 = vmatprep.subr.mxu0 0.0
        %2088 = vmatpush1.msra.mxu0 %v2027
        %2089 = vmatprep.subr.mxu0 0.0
        %2090 = vmatpush1.msra.mxu0 %v2028
        %2091 = vmatprep.subr.mxu0 0.0
        %2092 = vmatpush1.msra.mxu0 %v2029
        %2093 = vmatprep.subr.mxu0 0.0
        %2094 = vmatpush1.msra.mxu0 %v2030
        %2095 = vmatprep.mubr.f32.mxu0 %v1998
        %2096 = vmatmul.mubr.f32.gmra.mrb[0].mxu0 %v1997
        %v2097 = vpop.f32.mrb[0].mxu0
        %v2098 = vadd.f32 0.0, %v2097
        %v2099 = vpop.f32.mrb[0].mxu0
        %2100 = vdwg.mxu0
        %v2101 = vld [vmem:[#allocation11] sm:$0xff]
        %v2102 = vld [vmem:[#allocation11 + $0x8] sm:$0xff]
        %v2103 = vld [vmem:[#allocation11 + $0x10] sm:$0xff]
        %v2104 = vld [vmem:[#allocation11 + $0x18] sm:$0xff]
        %v2105 = vld [vmem:[#allocation11 + $0x20] sm:$0xff]
        %v2106 = vld [vmem:[#allocation11 + $0x28] sm:$0xff]
        %v2107 = vld [vmem:[#allocation11 + $0x30] sm:$0xff]
        %v2108 = vld [vmem:[#allocation11 + $0x38] sm:$0xff]
        %v2109 = vld [vmem:[#allocation11 + $0x40] sm:$0xff]
        %v2110 = vld [vmem:[#allocation11 + $0x48] sm:$0xff]
        %v2111 = vld [vmem:[#allocation11 + $0x50] sm:$0xff]
        %v2112 = vld [vmem:[#allocation11 + $0x58] sm:$0xff]
        %v2113 = vld [vmem:[#allocation11 + $0x60] sm:$0xff]
        %v2114 = vld [vmem:[#allocation11 + $0x68] sm:$0xff]
        %v2115 = vld [vmem:[#allocation11 + $0x70] sm:$0xff]
        %v2116 = vld [vmem:[#allocation11 + $0x78] sm:$0xff]
        %v2117 = vld [vmem:[#allocation11 + $0x80] sm:$0xff]
        %v2118 = vld [vmem:[#allocation11 + $0x88] sm:$0xff]
        %v2119 = vld [vmem:[#allocation11 + $0x90] sm:$0xff]
        %v2120 = vld [vmem:[#allocation11 + $0x98] sm:$0xff]
        %v2121 = vld [vmem:[#allocation11 + $0xa0] sm:$0xff]
        %v2122 = vld [vmem:[#allocation11 + $0xa8] sm:$0xff]
        %v2123 = vld [vmem:[#allocation11 + $0xb0] sm:$0xff]
        %v2124 = vld [vmem:[#allocation11 + $0xb8] sm:$0xff]
        %v2125 = vld [vmem:[#allocation11 + $0xc0] sm:$0xff]
        %v2126 = vld [vmem:[#allocation11 + $0xc8] sm:$0xff]
        %v2127 = vld [vmem:[#allocation11 + $0xd0] sm:$0xff]
        %v2128 = vld [vmem:[#allocation11 + $0xd8] sm:$0xff]
        %v2129 = vld [vmem:[#allocation11 + $0xe0] sm:$0xff]
        %v2130 = vld [vmem:[#allocation11 + $0xe8] sm:$0xff]
        %v2131 = vld [vmem:[#allocation11 + $0xf0] sm:$0xff]
        %v2132 = vld [vmem:[#allocation11 + $0xf8] sm:$0xff]
        %2133 = vmatprep.subr.mxu0 0.0
        %2134 = vmatpush1.msra.mxu0 %v2101
        %2135 = vmatprep.subr.mxu0 0.0
        %2136 = vmatpush1.msra.mxu0 %v2102
        %2137 = vmatprep.subr.mxu0 0.0
        %2138 = vmatpush1.msra.mxu0 %v2103
        %2139 = vmatprep.subr.mxu0 0.0
        %2140 = vmatpush1.msra.mxu0 %v2104
        %2141 = vmatprep.subr.mxu0 0.0
        %2142 = vmatpush1.msra.mxu0 %v2105
        %2143 = vmatprep.subr.mxu0 0.0
        %2144 = vmatpush1.msra.mxu0 %v2106
        %2145 = vmatprep.subr.mxu0 0.0
        %2146 = vmatpush1.msra.mxu0 %v2107
        %2147 = vmatprep.subr.mxu0 0.0
        %2148 = vmatpush1.msra.mxu0 %v2108
        %2149 = vmatprep.subr.mxu0 0.0
        %2150 = vmatpush1.msra.mxu0 %v2109
        %2151 = vmatprep.subr.mxu0 0.0
        %2152 = vmatpush1.msra.mxu0 %v2110
        %2153 = vmatprep.subr.mxu0 0.0
        %2154 = vmatpush1.msra.mxu0 %v2111
        %2155 = vmatprep.subr.mxu0 0.0
        %2156 = vmatpush1.msra.mxu0 %v2112
        %2157 = vmatprep.subr.mxu0 0.0
        %2158 = vmatpush1.msra.mxu0 %v2113
        %2159 = vmatprep.subr.mxu0 0.0
        %2160 = vmatpush1.msra.mxu0 %v2114
        %2161 = vmatprep.subr.mxu0 0.0
        %2162 = vmatpush1.msra.mxu0 %v2115
        %2163 = vmatprep.subr.mxu0 0.0
        %2164 = vmatpush1.msra.mxu0 %v2116
        %2165 = vmatprep.subr.mxu0 0.0
        %2166 = vmatpush1.msra.mxu0 %v2117
        %2167 = vmatprep.subr.mxu0 0.0
        %2168 = vmatpush1.msra.mxu0 %v2118
        %2169 = vmatprep.subr.mxu0 0.0
        %2170 = vmatpush1.msra.mxu0 %v2119
        %2171 = vmatprep.subr.mxu0 0.0
        %2172 = vmatpush1.msra.mxu0 %v2120
        %2173 = vmatprep.subr.mxu0 0.0
        %2174 = vmatpush1.msra.mxu0 %v2121
        %2175 = vmatprep.subr.mxu0 0.0
        %2176 = vmatpush1.msra.mxu0 %v2122
        %2177 = vmatprep.subr.mxu0 0.0
        %2178 = vmatpush1.msra.mxu0 %v2123
        %2179 = vmatprep.subr.mxu0 0.0
        %2180 = vmatpush1.msra.mxu0 %v2124
        %2181 = vmatprep.subr.mxu0 0.0
        %2182 = vmatpush1.msra.mxu0 %v2125
        %2183 = vmatprep.subr.mxu0 0.0
        %2184 = vmatpush1.msra.mxu0 %v2126
        %2185 = vmatprep.subr.mxu0 0.0
        %2186 = vmatpush1.msra.mxu0 %v2127
        %2187 = vmatprep.subr.mxu0 0.0
        %2188 = vmatpush1.msra.mxu0 %v2128
        %2189 = vmatprep.subr.mxu0 0.0
        %2190 = vmatpush1.msra.mxu0 %v2129
        %2191 = vmatprep.subr.mxu0 0.0
        %2192 = vmatpush1.msra.mxu0 %v2130
        %2193 = vmatprep.subr.mxu0 0.0
        %2194 = vmatpush1.msra.mxu0 %v2131
        %2195 = vmatprep.subr.mxu0 0.0
        %2196 = vmatpush1.msra.mxu0 %v2132
        %2197 = vmatprep.mubr.f32.mxu0 %v1998
        %2198 = vmatmul.mubr.f32.gmra.mrb[0].mxu0 %v1997
        %v2199 = vpop.f32.mrb[0].mxu0
        %v2200 = vadd.f32 0.0, %v2199
        %v2201 = vpop.f32.mrb[0].mxu0
        %2202 = vdwg.mxu0
        %v2203 = vmax.f32 %v2098, %v2200
        %2204 = vst [vmem:[#allocation4] sm:$0x1] 0.0
        %2205 = vst [vmem:[#allocation4 + $0x5] sm:$0x1] 0.0
        %2206 = vst [vmem:[#allocation4 + $0x1] sm:$0xf] %v2203
        %v2207 = vld [vmem:[#allocation4] sm:$0xf]
        %v2208 = vpack.c.bf16 %v2207, %v2207
        %v2209 = vld [vmem:[#allocation13] sm:$0xff]
        %v2210 = vld [vmem:[#allocation13 + $0x8] sm:$0xff]
        %v2211 = vld [vmem:[#allocation13 + $0x10] sm:$0xff]
        %v2212 = vld [vmem:[#allocation13 + $0x18] sm:$0xff]
        %v2213 = vld [vmem:[#allocation13 + $0x20] sm:$0xff]
        %v2214 = vld [vmem:[#allocation13 + $0x28] sm:$0xff]
        %v2215 = vld [vmem:[#allocation13 + $0x30] sm:$0xff]
        %v2216 = vld [vmem:[#allocation13 + $0x38] sm:$0xff]
        %v2217 = vld [vmem:[#allocation13 + $0x40] sm:$0xff]
        %v2218 = vld [vmem:[#allocation13 + $0x48] sm:$0xff]
        %v2219 = vld [vmem:[#allocation13 + $0x50] sm:$0xff]
        %v2220 = vld [vmem:[#allocation13 + $0x58] sm:$0xff]
        %v2221 = vld [vmem:[#allocation13 + $0x60] sm:$0xff]
        %v2222 = vld [vmem:[#allocation13 + $0x68] sm:$0xff]
        %v2223 = vld [vmem:[#allocation13 + $0x70] sm:$0xff]
        %v2224 = vld [vmem:[#allocation13 + $0x78] sm:$0xff]
        %v2225 = vld [vmem:[#allocation4 + $0x1] sm:$0xf]
        %v2226 = vpack.c.bf16 %v2225, %v2225
        %s2227 = scalar_lea.vmem [#allocation13], 128
        %v2228 = vld [vmem:[%s2227] sm:$0xff]
        %v2229 = vld [vmem:[%s2227 + $0x8] sm:$0xff]
        %v2230 = vld [vmem:[%s2227 + $0x10] sm:$0xff]
        %v2231 = vld [vmem:[%s2227 + $0x18] sm:$0xff]
        %v2232 = vld [vmem:[%s2227 + $0x20] sm:$0xff]
        %v2233 = vld [vmem:[%s2227 + $0x28] sm:$0xff]
        %v2234 = vld [vmem:[%s2227 + $0x30] sm:$0xff]
        %v2235 = vld [vmem:[%s2227 + $0x38] sm:$0xff]
        %v2236 = vld [vmem:[%s2227 + $0x40] sm:$0xff]
        %v2237 = vld [vmem:[%s2227 + $0x48] sm:$0xff]
        %v2238 = vld [vmem:[%s2227 + $0x50] sm:$0xff]
        %v2239 = vld [vmem:[%s2227 + $0x58] sm:$0xff]
        %v2240 = vld [vmem:[%s2227 + $0x60] sm:$0xff]
        %v2241 = vld [vmem:[%s2227 + $0x68] sm:$0xff]
        %v2242 = vld [vmem:[%s2227 + $0x70] sm:$0xff]
        %v2243 = vld [vmem:[%s2227 + $0x78] sm:$0xff]
        %v2260 = vunpack.c.l.b16 %v2228
        %v2261 = vunpack.c.h.b16 %v2228
        %v2262 = vunpack.c.l.b16 %v2229
        %v2263 = vunpack.c.h.b16 %v2229
        %v2264 = vunpack.c.l.b16 %v2230
        %v2265 = vunpack.c.h.b16 %v2230
        %v2266 = vunpack.c.l.b16 %v2231
        %v2267 = vunpack.c.h.b16 %v2231
        %v2268 = vunpack.c.l.b16 %v2232
        %v2269 = vunpack.c.h.b16 %v2232
        %v2270 = vunpack.c.l.b16 %v2233
        %v2271 = vunpack.c.h.b16 %v2233
        %v2272 = vunpack.c.l.b16 %v2234
        %v2273 = vunpack.c.h.b16 %v2234
        %v2274 = vunpack.c.l.b16 %v2235
        %v2275 = vunpack.c.h.b16 %v2235
        %v2276 = vunpack.c.l.b16 %v2236
        %v2277 = vunpack.c.h.b16 %v2236
        %v2278 = vunpack.c.l.b16 %v2237
        %v2279 = vunpack.c.h.b16 %v2237
        %v2280 = vunpack.c.l.b16 %v2238
        %v2281 = vunpack.c.h.b16 %v2238
        %v2282 = vunpack.c.l.b16 %v2239
        %v2283 = vunpack.c.h.b16 %v2239
        %v2284 = vunpack.c.l.b16 %v2240
        %v2285 = vunpack.c.h.b16 %v2240
        %v2286 = vunpack.c.l.b16 %v2241
        %v2287 = vunpack.c.h.b16 %v2241
        %v2288 = vunpack.c.l.b16 %v2242
        %v2289 = vunpack.c.h.b16 %v2242
        %v2290 = vunpack.c.l.b16 %v2243
        %v2291 = vunpack.c.h.b16 %v2243
        %v2292 = vpack.c.b16 %v2262, %v2260
        %v2293 = vpack.c.b16 %v2263, %v2261
        %v2294 = vpack.c.b16 %v2266, %v2264
        %v2295 = vpack.c.b16 %v2267, %v2265
        %v2296 = vpack.c.b16 %v2270, %v2268
        %v2297 = vpack.c.b16 %v2271, %v2269
        %v2298 = vpack.c.b16 %v2274, %v2272
        %v2299 = vpack.c.b16 %v2275, %v2273
        %v2300 = vpack.c.b16 %v2278, %v2276
        %v2301 = vpack.c.b16 %v2279, %v2277
        %v2302 = vpack.c.b16 %v2282, %v2280
        %v2303 = vpack.c.b16 %v2283, %v2281
        %v2304 = vpack.c.b16 %v2286, %v2284
        %v2305 = vpack.c.b16 %v2287, %v2285
        %v2306 = vpack.c.b16 %v2290, %v2288
        %v2307 = vpack.c.b16 %v2291, %v2289
        %2324 = vmatprep.subr.bf16.mxu0 %v2293
        %2325 = vmatpush1.bf16.msra.mxu0 %v2292
        %2326 = vmatprep.subr.bf16.mxu0 %v2295
        %2327 = vmatpush1.bf16.msra.mxu0 %v2294
        %2328 = vmatprep.subr.bf16.mxu0 %v2297
        %2329 = vmatpush1.bf16.msra.mxu0 %v2296
        %2330 = vmatprep.subr.bf16.mxu0 %v2299
        %2331 = vmatpush1.bf16.msra.mxu0 %v2298
        %2332 = vmatprep.subr.bf16.mxu0 %v2301
        %2333 = vmatpush1.bf16.msra.mxu0 %v2300
        %2334 = vmatprep.subr.bf16.mxu0 %v2303
        %2335 = vmatpush1.bf16.msra.mxu0 %v2302
        %2336 = vmatprep.subr.bf16.mxu0 %v2305
        %2337 = vmatpush1.bf16.msra.mxu0 %v2304
        %2338 = vmatprep.subr.bf16.mxu0 %v2307
        %2339 = vmatpush1.bf16.msra.mxu0 %v2306
        %2340 = vmatprep.subr.bf16.mxu0 0
        %2341 = vmatpush1.bf16.msra.mxu0 0
        %2342 = vmatprep.subr.bf16.mxu0 0
        %2343 = vmatpush1.bf16.msra.mxu0 0
        %2344 = vmatprep.subr.bf16.mxu0 0
        %2345 = vmatpush1.bf16.msra.mxu0 0
        %2346 = vmatprep.subr.bf16.mxu0 0
        %2347 = vmatpush1.bf16.msra.mxu0 0
        %2348 = vmatprep.subr.bf16.mxu0 0
        %2349 = vmatpush1.bf16.msra.mxu0 0
        %2350 = vmatprep.subr.bf16.mxu0 0
        %2351 = vmatpush1.bf16.msra.mxu0 0
        %2352 = vmatprep.subr.bf16.mxu0 0
        %2353 = vmatpush1.bf16.msra.mxu0 0
        %2354 = vmatprep.subr.bf16.mxu0 0
        %2355 = vmatpush1.bf16.msra.mxu0 0
        %2356 = vmatprep.mubr.bf16.mxu0 0
        %2357 = vmatmul.mubr.bf16.gmra.mrb[0].mxu0 %v2226
        %v2358 = vpop.f32.mrb[0].mxu0
        %v2359 = vadd.f32 0.0, %v2358
        %v2360 = vpop.f32.mrb[0].mxu0
        %v2361 = vadd.f32 0.0, %v2360
        %v2362 = vpop.f32.mrb[0].mxu0
        %v2363 = vpop.f32.mrb[0].mxu0
        %2364 = vdwg.mxu0
        %v2381 = vunpack.c.l.b16 %v2209
        %v2382 = vunpack.c.h.b16 %v2209
        %v2383 = vunpack.c.l.b16 %v2210
        %v2384 = vunpack.c.h.b16 %v2210
        %v2385 = vunpack.c.l.b16 %v2211
        %v2386 = vunpack.c.h.b16 %v2211
        %v2387 = vunpack.c.l.b16 %v2212
        %v2388 = vunpack.c.h.b16 %v2212
        %v2389 = vunpack.c.l.b16 %v2213
        %v2390 = vunpack.c.h.b16 %v2213
        %v2391 = vunpack.c.l.b16 %v2214
        %v2392 = vunpack.c.h.b16 %v2214
        %v2393 = vunpack.c.l.b16 %v2215
        %v2394 = vunpack.c.h.b16 %v2215
        %v2395 = vunpack.c.l.b16 %v2216
        %v2396 = vunpack.c.h.b16 %v2216
        %v2397 = vunpack.c.l.b16 %v2217
        %v2398 = vunpack.c.h.b16 %v2217
        %v2399 = vunpack.c.l.b16 %v2218
        %v2400 = vunpack.c.h.b16 %v2218
        %v2401 = vunpack.c.l.b16 %v2219
        %v2402 = vunpack.c.h.b16 %v2219
        %v2403 = vunpack.c.l.b16 %v2220
        %v2404 = vunpack.c.h.b16 %v2220
        %v2405 = vunpack.c.l.b16 %v2221
        %v2406 = vunpack.c.h.b16 %v2221
        %v2407 = vunpack.c.l.b16 %v2222
        %v2408 = vunpack.c.h.b16 %v2222
        %v2409 = vunpack.c.l.b16 %v2223
        %v2410 = vunpack.c.h.b16 %v2223
        %v2411 = vunpack.c.l.b16 %v2224
        %v2412 = vunpack.c.h.b16 %v2224
        %v2413 = vpack.c.b16 %v2383, %v2381
        %v2414 = vpack.c.b16 %v2384, %v2382
        %v2415 = vpack.c.b16 %v2387, %v2385
        %v2416 = vpack.c.b16 %v2388, %v2386
        %v2417 = vpack.c.b16 %v2391, %v2389
        %v2418 = vpack.c.b16 %v2392, %v2390
        %v2419 = vpack.c.b16 %v2395, %v2393
        %v2420 = vpack.c.b16 %v2396, %v2394
        %v2421 = vpack.c.b16 %v2399, %v2397
        %v2422 = vpack.c.b16 %v2400, %v2398
        %v2423 = vpack.c.b16 %v2403, %v2401
        %v2424 = vpack.c.b16 %v2404, %v2402
        %v2425 = vpack.c.b16 %v2407, %v2405
        %v2426 = vpack.c.b16 %v2408, %v2406
        %v2427 = vpack.c.b16 %v2411, %v2409
        %v2428 = vpack.c.b16 %v2412, %v2410
        %2445 = vmatprep.subr.bf16.mxu0 %v2414
        %2446 = vmatpush1.bf16.msra.mxu0 %v2413
        %2447 = vmatprep.subr.bf16.mxu0 %v2416
        %2448 = vmatpush1.bf16.msra.mxu0 %v2415
        %2449 = vmatprep.subr.bf16.mxu0 %v2418
        %2450 = vmatpush1.bf16.msra.mxu0 %v2417
        %2451 = vmatprep.subr.bf16.mxu0 %v2420
        %2452 = vmatpush1.bf16.msra.mxu0 %v2419
        %2453 = vmatprep.subr.bf16.mxu0 %v2422
        %2454 = vmatpush1.bf16.msra.mxu0 %v2421
        %2455 = vmatprep.subr.bf16.mxu0 %v2424
        %2456 = vmatpush1.bf16.msra.mxu0 %v2423
        %2457 = vmatprep.subr.bf16.mxu0 %v2426
        %2458 = vmatpush1.bf16.msra.mxu0 %v2425
        %2459 = vmatprep.subr.bf16.mxu0 %v2428
        %2460 = vmatpush1.bf16.msra.mxu0 %v2427
        %2461 = vmatprep.subr.bf16.mxu0 0
        %2462 = vmatpush1.bf16.msra.mxu0 0
        %2463 = vmatprep.subr.bf16.mxu0 0
        %2464 = vmatpush1.bf16.msra.mxu0 0
        %2465 = vmatprep.subr.bf16.mxu0 0
        %2466 = vmatpush1.bf16.msra.mxu0 0
        %2467 = vmatprep.subr.bf16.mxu0 0
        %2468 = vmatpush1.bf16.msra.mxu0 0
        %2469 = vmatprep.subr.bf16.mxu0 0
        %2470 = vmatpush1.bf16.msra.mxu0 0
        %2471 = vmatprep.subr.bf16.mxu0 0
        %2472 = vmatpush1.bf16.msra.mxu0 0
        %2473 = vmatprep.subr.bf16.mxu0 0
        %2474 = vmatpush1.bf16.msra.mxu0 0
        %2475 = vmatprep.subr.bf16.mxu0 0
        %2476 = vmatpush1.bf16.msra.mxu0 0
        %2477 = vmatprep.mubr.bf16.mxu0 0
        %2478 = vmatmul.mubr.bf16.gmra.mrb[0].mxu0 %v2208
        %v2479 = vpop.f32.mrb[0].mxu0
        %v2480 = vadd.f32 %v2359, %v2479
        %v2481 = vpop.f32.mrb[0].mxu0
        %v2482 = vadd.f32 %v2361, %v2481
        %v2483 = vpop.f32.mrb[0].mxu0
        %v2484 = vpop.f32.mrb[0].mxu0
        %2485 = vdwg.mxu0
        %v2486 = vld [vmem:[#allocation4 + $0x2] sm:$0xf]
        %v2487 = vpack.c.bf16 %v2486, %v2486
        %s2488 = scalar_lea.vmem [#allocation13], 256
        %v2489 = vld [vmem:[%s2488] sm:$0xff]
        %v2490 = vld [vmem:[%s2488 + $0x8] sm:$0xff]
        %v2491 = vld [vmem:[%s2488 + $0x10] sm:$0xff]
        %v2492 = vld [vmem:[%s2488 + $0x18] sm:$0xff]
        %v2493 = vld [vmem:[%s2488 + $0x20] sm:$0xff]
        %v2494 = vld [vmem:[%s2488 + $0x28] sm:$0xff]
        %v2495 = vld [vmem:[%s2488 + $0x30] sm:$0xff]
        %v2496 = vld [vmem:[%s2488 + $0x38] sm:$0xff]
        %v2497 = vld [vmem:[%s2488 + $0x40] sm:$0xff]
        %v2498 = vld [vmem:[%s2488 + $0x48] sm:$0xff]
        %v2499 = vld [vmem:[%s2488 + $0x50] sm:$0xff]
        %v2500 = vld [vmem:[%s2488 + $0x58] sm:$0xff]
        %v2501 = vld [vmem:[%s2488 + $0x60] sm:$0xff]
        %v2502 = vld [vmem:[%s2488 + $0x68] sm:$0xff]
        %v2503 = vld [vmem:[%s2488 + $0x70] sm:$0xff]
        %v2504 = vld [vmem:[%s2488 + $0x78] sm:$0xff]
        %v2521 = vunpack.c.l.b16 %v2489
        %v2522 = vunpack.c.h.b16 %v2489
        %v2523 = vunpack.c.l.b16 %v2490
        %v2524 = vunpack.c.h.b16 %v2490
        %v2525 = vunpack.c.l.b16 %v2491
        %v2526 = vunpack.c.h.b16 %v2491
        %v2527 = vunpack.c.l.b16 %v2492
        %v2528 = vunpack.c.h.b16 %v2492
        %v2529 = vunpack.c.l.b16 %v2493
        %v2530 = vunpack.c.h.b16 %v2493
        %v2531 = vunpack.c.l.b16 %v2494
        %v2532 = vunpack.c.h.b16 %v2494
        %v2533 = vunpack.c.l.b16 %v2495
        %v2534 = vunpack.c.h.b16 %v2495
        %v2535 = vunpack.c.l.b16 %v2496
        %v2536 = vunpack.c.h.b16 %v2496
        %v2537 = vunpack.c.l.b16 %v2497
        %v2538 = vunpack.c.h.b16 %v2497
        %v2539 = vunpack.c.l.b16 %v2498
        %v2540 = vunpack.c.h.b16 %v2498
        %v2541 = vunpack.c.l.b16 %v2499
        %v2542 = vunpack.c.h.b16 %v2499
        %v2543 = vunpack.c.l.b16 %v2500
        %v2544 = vunpack.c.h.b16 %v2500
        %v2545 = vunpack.c.l.b16 %v2501
        %v2546 = vunpack.c.h.b16 %v2501
        %v2547 = vunpack.c.l.b16 %v2502
        %v2548 = vunpack.c.h.b16 %v2502
        %v2549 = vunpack.c.l.b16 %v2503
        %v2550 = vunpack.c.h.b16 %v2503
        %v2551 = vunpack.c.l.b16 %v2504
        %v2552 = vunpack.c.h.b16 %v2504
        %v2553 = vpack.c.b16 %v2523, %v2521
        %v2554 = vpack.c.b16 %v2524, %v2522
        %v2555 = vpack.c.b16 %v2527, %v2525
        %v2556 = vpack.c.b16 %v2528, %v2526
        %v2557 = vpack.c.b16 %v2531, %v2529
        %v2558 = vpack.c.b16 %v2532, %v2530
        %v2559 = vpack.c.b16 %v2535, %v2533
        %v2560 = vpack.c.b16 %v2536, %v2534
        %v2561 = vpack.c.b16 %v2539, %v2537
        %v2562 = vpack.c.b16 %v2540, %v2538
        %v2563 = vpack.c.b16 %v2543, %v2541
        %v2564 = vpack.c.b16 %v2544, %v2542
        %v2565 = vpack.c.b16 %v2547, %v2545
        %v2566 = vpack.c.b16 %v2548, %v2546
        %v2567 = vpack.c.b16 %v2551, %v2549
        %v2568 = vpack.c.b16 %v2552, %v2550
        %2585 = vmatprep.subr.bf16.mxu0 %v2554
        %2586 = vmatpush1.bf16.msra.mxu0 %v2553
        %2587 = vmatprep.subr.bf16.mxu0 %v2556
        %2588 = vmatpush1.bf16.msra.mxu0 %v2555
        %2589 = vmatprep.subr.bf16.mxu0 %v2558
        %2590 = vmatpush1.bf16.msra.mxu0 %v2557
        %2591 = vmatprep.subr.bf16.mxu0 %v2560
        %2592 = vmatpush1.bf16.msra.mxu0 %v2559
        %2593 = vmatprep.subr.bf16.mxu0 %v2562
        %2594 = vmatpush1.bf16.msra.mxu0 %v2561
        %2595 = vmatprep.subr.bf16.mxu0 %v2564
        %2596 = vmatpush1.bf16.msra.mxu0 %v2563
        %2597 = vmatprep.subr.bf16.mxu0 %v2566
        %2598 = vmatpush1.bf16.msra.mxu0 %v2565
        %2599 = vmatprep.subr.bf16.mxu0 %v2568
        %2600 = vmatpush1.bf16.msra.mxu0 %v2567
        %2601 = vmatprep.subr.bf16.mxu0 0
        %2602 = vmatpush1.bf16.msra.mxu0 0
        %2603 = vmatprep.subr.bf16.mxu0 0
        %2604 = vmatpush1.bf16.msra.mxu0 0
        %2605 = vmatprep.subr.bf16.mxu0 0
        %2606 = vmatpush1.bf16.msra.mxu0 0
        %2607 = vmatprep.subr.bf16.mxu0 0
        %2608 = vmatpush1.bf16.msra.mxu0 0
        %2609 = vmatprep.subr.bf16.mxu0 0
        %2610 = vmatpush1.bf16.msra.mxu0 0
        %2611 = vmatprep.subr.bf16.mxu0 0
        %2612 = vmatpush1.bf16.msra.mxu0 0
        %2613 = vmatprep.subr.bf16.mxu0 0
        %2614 = vmatpush1.bf16.msra.mxu0 0
        %2615 = vmatprep.subr.bf16.mxu0 0
        %2616 = vmatpush1.bf16.msra.mxu0 0
        %2617 = vmatprep.mubr.bf16.mxu0 0
        %2618 = vmatmul.mubr.bf16.gmra.mrb[0].mxu0 %v2487
        %v2619 = vpop.f32.mrb[0].mxu0
        %v2620 = vadd.f32 0.0, %v2619
        %v2621 = vpop.f32.mrb[0].mxu0
        %v2622 = vadd.f32 0.0, %v2621
        %v2623 = vpop.f32.mrb[0].mxu0
        %v2624 = vpop.f32.mrb[0].mxu0
        %2625 = vdwg.mxu0
        %v2626 = vadd.f32 %v2480, %v2620
        %v2627 = vadd.f32 %v2482, %v2622
        %v2628 = vld [vmem:[%s14] sm:$0x3]
        %v2630 = vlaneseq
        %v2631 = vshrl.u32 %v2630, 7
        %v2632 = vsub.s32 0, %v2631
        %v2633 = vrot.slane %v2628, %v2632
        %v2634 = vlaneseq
        %v2635 = vshrl.u32 %v2634, 7
        %v2636 = vsub.s32 1, %v2635
        %v2637 = vrot.slane %v2628, %v2636
        %v2640 = vadd.f32 %v2626, %v2633
        %v2641 = vadd.f32 %v2627, %v2637
        %v2642 = vmax.f32 %v2640, 0.0
        %v2643 = vmax.f32 %v2641, 0.0
        %v2644 = vld [vmem:[%s15] sm:$0x3]
        %vm2645 = vcmask 31744
        %v2647 = vsel %vm2645, %v2644, 0
        %vm2649 = vcmask 1043456
        %v2651 = vsel %vm2649, %v2642, 0
        %v2654 = vsel %vm2649, %v2643, 0
        %2656 = vmatprep.subr.mxu0 %v2654
        %2657 = vmatpush1.msra.mxu0 %v2651
        %2658 = vmatprep.subr.mxu0 0.0
        %2659 = vmatpush1.msra.mxu0 0.0
        %2660 = vmatprep.subr.mxu0 0.0
        %2661 = vmatpush1.msra.mxu0 0.0
        %2662 = vmatprep.subr.mxu0 0.0
        %2663 = vmatpush1.msra.mxu0 0.0
        %2664 = vmatprep.subr.mxu0 0.0
        %2665 = vmatpush1.msra.mxu0 0.0
        %2666 = vmatprep.subr.mxu0 0.0
        %2667 = vmatpush1.msra.mxu0 0.0
        %2668 = vmatprep.subr.mxu0 0.0
        %2669 = vmatpush1.msra.mxu0 0.0
        %2670 = vmatprep.subr.mxu0 0.0
        %2671 = vmatpush1.msra.mxu0 0.0
        %2672 = vmatprep.subr.mxu0 0.0
        %2673 = vmatpush1.msra.mxu0 0.0
        %2674 = vmatprep.subr.mxu0 0.0
        %2675 = vmatpush1.msra.mxu0 0.0
        %2676 = vmatprep.subr.mxu0 0.0
        %2677 = vmatpush1.msra.mxu0 0.0
        %2678 = vmatprep.subr.mxu0 0.0
        %2679 = vmatpush1.msra.mxu0 0.0
        %2680 = vmatprep.subr.mxu0 0.0
        %2681 = vmatpush1.msra.mxu0 0.0
        %2682 = vmatprep.subr.mxu0 0.0
        %2683 = vmatpush1.msra.mxu0 0.0
        %2684 = vmatprep.subr.mxu0 0.0
        %2685 = vmatpush1.msra.mxu0 0.0
        %2686 = vmatprep.subr.mxu0 0.0
        %2687 = vmatpush1.msra.mxu0 0.0
        %2688 = vmatprep.subr.mxu0 0.0
        %2689 = vmatpush1.msra.mxu0 0.0
        %2690 = vmatprep.subr.mxu0 0.0
        %2691 = vmatpush1.msra.mxu0 0.0
        %2692 = vmatprep.subr.mxu0 0.0
        %2693 = vmatpush1.msra.mxu0 0.0
        %2694 = vmatprep.subr.mxu0 0.0
        %2695 = vmatpush1.msra.mxu0 0.0
        %2696 = vmatprep.subr.mxu0 0.0
        %2697 = vmatpush1.msra.mxu0 0.0
        %2698 = vmatprep.subr.mxu0 0.0
        %2699 = vmatpush1.msra.mxu0 0.0
        %2700 = vmatprep.subr.mxu0 0.0
        %2701 = vmatpush1.msra.mxu0 0.0
        %2702 = vmatprep.subr.mxu0 0.0
        %2703 = vmatpush1.msra.mxu0 0.0
        %2704 = vmatprep.subr.mxu0 0.0
        %2705 = vmatpush1.msra.mxu0 0.0
        %2706 = vmatprep.subr.mxu0 0.0
        %2707 = vmatpush1.msra.mxu0 0.0
        %2708 = vmatprep.subr.mxu0 0.0
        %2709 = vmatpush1.msra.mxu0 0.0
        %2710 = vmatprep.subr.mxu0 0.0
        %2711 = vmatpush1.msra.mxu0 0.0
        %2712 = vmatprep.subr.mxu0 0.0
        %2713 = vmatpush1.msra.mxu0 0.0
        %2714 = vmatprep.subr.mxu0 0.0
        %2715 = vmatpush1.msra.mxu0 0.0
        %2716 = vmatprep.subr.mxu0 0.0
        %2717 = vmatpush1.msra.mxu0 0.0
        %2718 = vmatprep.subr.mxu0 0.0
        %2719 = vmatpush1.msra.mxu0 0.0
        %2720 = vmatprep.mubr.f32.mxu0 0.0
        %2721 = vmatmul.mubr.f32.gmra.mrb[0].mxu0 %v2647
        %v2722 = vpop.f32.mrb[0].mxu0
        %v2723 = vadd.f32 0.0, %v2722
        %v2724 = vpop.f32.mrb[0].mxu0
        %v2725 = vadd.f32 0.0, %v2724
        %2726 = vdwg.mxu0
        %v2727 = vld [vmem:[%s16] sm:$0x3]
        %v2729 = vsel %vm2645, %v2727, 0
        %2731 = vmatprep.subr.mxu0 %v2654
        %2732 = vmatpush1.msra.mxu0 %v2651
        %2733 = vmatprep.subr.mxu0 0.0
        %2734 = vmatpush1.msra.mxu0 0.0
        %2735 = vmatprep.subr.mxu0 0.0
        %2736 = vmatpush1.msra.mxu0 0.0
        %2737 = vmatprep.subr.mxu0 0.0
        %2738 = vmatpush1.msra.mxu0 0.0
        %2739 = vmatprep.subr.mxu0 0.0
        %2740 = vmatpush1.msra.mxu0 0.0
        %2741 = vmatprep.subr.mxu0 0.0
        %2742 = vmatpush1.msra.mxu0 0.0
        %2743 = vmatprep.subr.mxu0 0.0
        %2744 = vmatpush1.msra.mxu0 0.0
        %2745 = vmatprep.subr.mxu0 0.0
        %2746 = vmatpush1.msra.mxu0 0.0
        %2747 = vmatprep.subr.mxu0 0.0
        %2748 = vmatpush1.msra.mxu0 0.0
        %2749 = vmatprep.subr.mxu0 0.0
        %2750 = vmatpush1.msra.mxu0 0.0
        %2751 = vmatprep.subr.mxu0 0.0
        %2752 = vmatpush1.msra.mxu0 0.0
        %2753 = vmatprep.subr.mxu0 0.0
        %2754 = vmatpush1.msra.mxu0 0.0
        %2755 = vmatprep.subr.mxu0 0.0
        %2756 = vmatpush1.msra.mxu0 0.0
        %2757 = vmatprep.subr.mxu0 0.0
        %2758 = vmatpush1.msra.mxu0 0.0
        %2759 = vmatprep.subr.mxu0 0.0
        %2760 = vmatpush1.msra.mxu0 0.0
        %2761 = vmatprep.subr.mxu0 0.0
        %2762 = vmatpush1.msra.mxu0 0.0
        %2763 = vmatprep.subr.mxu0 0.0
        %2764 = vmatpush1.msra.mxu0 0.0
        %2765 = vmatprep.subr.mxu0 0.0
        %2766 = vmatpush1.msra.mxu0 0.0
        %2767 = vmatprep.subr.mxu0 0.0
        %2768 = vmatpush1.msra.mxu0 0.0
        %2769 = vmatprep.subr.mxu0 0.0
        %2770 = vmatpush1.msra.mxu0 0.0
        %2771 = vmatprep.subr.mxu0 0.0
        %2772 = vmatpush1.msra.mxu0 0.0
        %2773 = vmatprep.subr.mxu0 0.0
        %2774 = vmatpush1.msra.mxu0 0.0
        %2775 = vmatprep.subr.mxu0 0.0
        %2776 = vmatpush1.msra.mxu0 0.0
        %2777 = vmatprep.subr.mxu0 0.0
        %2778 = vmatpush1.msra.mxu0 0.0
        %2779 = vmatprep.subr.mxu0 0.0
        %2780 = vmatpush1.msra.mxu0 0.0
        %2781 = vmatprep.subr.mxu0 0.0
        %2782 = vmatpush1.msra.mxu0 0.0
        %2783 = vmatprep.subr.mxu0 0.0
        %2784 = vmatpush1.msra.mxu0 0.0
        %2785 = vmatprep.subr.mxu0 0.0
        %2786 = vmatpush1.msra.mxu0 0.0
        %2787 = vmatprep.subr.mxu0 0.0
        %2788 = vmatpush1.msra.mxu0 0.0
        %2789 = vmatprep.subr.mxu0 0.0
        %2790 = vmatpush1.msra.mxu0 0.0
        %2791 = vmatprep.subr.mxu0 0.0
        %2792 = vmatpush1.msra.mxu0 0.0
        %2793 = vmatprep.subr.mxu0 0.0
        %2794 = vmatpush1.msra.mxu0 0.0
        %2795 = vmatprep.mubr.f32.mxu0 0.0
        %2796 = vmatmul.mubr.f32.gmra.mrb[0].mxu0 %v2729
        %v2797 = vpop.f32.mrb[0].mxu0
        %v2798 = vadd.f32 0.0, %v2797
        %v2799 = vpop.f32.mrb[0].mxu0
        %v2800 = vadd.f32 0.0, %v2799
        %2801 = vdwg.mxu0
        %v2802 = vmax.f32 %v2723, %v2798
        %v2803 = vmax.f32 %v2725, %v2800
        %v2804 = vld [vmem:[#allocation14] sm:$0xff]
        %v2805 = vld [vmem:[#allocation14 + $0x8] sm:$0xff]
        %v2806 = vld [vmem:[#allocation14 + $0x10] sm:$0xff]
        %v2807 = vld [vmem:[#allocation14 + $0x18] sm:$0xff]
        %v2808 = vld [vmem:[#allocation14 + $0x20] sm:$0xff]
        %v2809 = vld [vmem:[#allocation14 + $0x28] sm:$0xff]
        %v2810 = vld [vmem:[#allocation14 + $0x30] sm:$0xff]
        %v2811 = vld [vmem:[#allocation14 + $0x38] sm:$0xff]
        %v2812 = vld [vmem:[#allocation14 + $0x40] sm:$0xff]
        %v2813 = vld [vmem:[#allocation14 + $0x48] sm:$0xff]
        %v2814 = vld [vmem:[#allocation14 + $0x50] sm:$0xff]
        %v2815 = vld [vmem:[#allocation14 + $0x58] sm:$0xff]
        %v2816 = vld [vmem:[#allocation14 + $0x60] sm:$0xff]
        %v2817 = vld [vmem:[#allocation14 + $0x68] sm:$0xff]
        %v2818 = vld [vmem:[#allocation14 + $0x70] sm:$0xff]
        %v2819 = vld [vmem:[#allocation14 + $0x78] sm:$0xff]
        %v2820 = vld [vmem:[#allocation14 + $0x80] sm:$0xff]
        %v2821 = vld [vmem:[#allocation14 + $0x88] sm:$0xff]
        %v2822 = vld [vmem:[#allocation14 + $0x90] sm:$0xff]
        %v2823 = vld [vmem:[#allocation14 + $0x98] sm:$0xff]
        %v2824 = vld [vmem:[#allocation14 + $0xa0] sm:$0xff]
        %v2825 = vld [vmem:[#allocation14 + $0xa8] sm:$0xff]
        %v2826 = vld [vmem:[#allocation14 + $0xb0] sm:$0xff]
        %v2827 = vld [vmem:[#allocation14 + $0xb8] sm:$0xff]
        %v2828 = vld [vmem:[#allocation14 + $0xc0] sm:$0xff]
        %v2829 = vld [vmem:[#allocation14 + $0xc8] sm:$0xff]
        %v2830 = vld [vmem:[#allocation14 + $0xd0] sm:$0xff]
        %v2831 = vld [vmem:[#allocation14 + $0xd8] sm:$0xff]
        %v2832 = vld [vmem:[#allocation14 + $0xe0] sm:$0xff]
        %v2833 = vld [vmem:[#allocation14 + $0xe8] sm:$0xff]
        %v2834 = vld [vmem:[#allocation14 + $0xf0] sm:$0xff]
        %v2835 = vld [vmem:[#allocation14 + $0xf8] sm:$0xff]
        %2836 = vmatprep.subr.mxu0 0.0
        %2837 = vmatpush1.msra.mxu0 %v2804
        %2838 = vmatprep.subr.mxu0 0.0
        %2839 = vmatpush1.msra.mxu0 %v2805
        %2840 = vmatprep.subr.mxu0 0.0
        %2841 = vmatpush1.msra.mxu0 %v2806
        %2842 = vmatprep.subr.mxu0 0.0
        %2843 = vmatpush1.msra.mxu0 %v2807
        %2844 = vmatprep.subr.mxu0 0.0
        %2845 = vmatpush1.msra.mxu0 %v2808
        %2846 = vmatprep.subr.mxu0 0.0
        %2847 = vmatpush1.msra.mxu0 %v2809
        %2848 = vmatprep.subr.mxu0 0.0
        %2849 = vmatpush1.msra.mxu0 %v2810
        %2850 = vmatprep.subr.mxu0 0.0
        %2851 = vmatpush1.msra.mxu0 %v2811
        %2852 = vmatprep.subr.mxu0 0.0
        %2853 = vmatpush1.msra.mxu0 %v2812
        %2854 = vmatprep.subr.mxu0 0.0
        %2855 = vmatpush1.msra.mxu0 %v2813
        %2856 = vmatprep.subr.mxu0 0.0
        %2857 = vmatpush1.msra.mxu0 %v2814
        %2858 = vmatprep.subr.mxu0 0.0
        %2859 = vmatpush1.msra.mxu0 %v2815
        %2860 = vmatprep.subr.mxu0 0.0
        %2861 = vmatpush1.msra.mxu0 %v2816
        %2862 = vmatprep.subr.mxu0 0.0
        %2863 = vmatpush1.msra.mxu0 %v2817
        %2864 = vmatprep.subr.mxu0 0.0
        %2865 = vmatpush1.msra.mxu0 %v2818
        %2866 = vmatprep.subr.mxu0 0.0
        %2867 = vmatpush1.msra.mxu0 %v2819
        %2868 = vmatprep.subr.mxu0 0.0
        %2869 = vmatpush1.msra.mxu0 %v2820
        %2870 = vmatprep.subr.mxu0 0.0
        %2871 = vmatpush1.msra.mxu0 %v2821
        %2872 = vmatprep.subr.mxu0 0.0
        %2873 = vmatpush1.msra.mxu0 %v2822
        %2874 = vmatprep.subr.mxu0 0.0
        %2875 = vmatpush1.msra.mxu0 %v2823
        %2876 = vmatprep.subr.mxu0 0.0
        %2877 = vmatpush1.msra.mxu0 %v2824
        %2878 = vmatprep.subr.mxu0 0.0
        %2879 = vmatpush1.msra.mxu0 %v2825
        %2880 = vmatprep.subr.mxu0 0.0
        %2881 = vmatpush1.msra.mxu0 %v2826
        %2882 = vmatprep.subr.mxu0 0.0
        %2883 = vmatpush1.msra.mxu0 %v2827
        %2884 = vmatprep.subr.mxu0 0.0
        %2885 = vmatpush1.msra.mxu0 %v2828
        %2886 = vmatprep.subr.mxu0 0.0
        %2887 = vmatpush1.msra.mxu0 %v2829
        %2888 = vmatprep.subr.mxu0 0.0
        %2889 = vmatpush1.msra.mxu0 %v2830
        %2890 = vmatprep.subr.mxu0 0.0
        %2891 = vmatpush1.msra.mxu0 %v2831
        %2892 = vmatprep.subr.mxu0 0.0
        %2893 = vmatpush1.msra.mxu0 %v2832
        %2894 = vmatprep.subr.mxu0 0.0
        %2895 = vmatpush1.msra.mxu0 %v2833
        %2896 = vmatprep.subr.mxu0 0.0
        %2897 = vmatpush1.msra.mxu0 %v2834
        %2898 = vmatprep.subr.mxu0 0.0
        %2899 = vmatpush1.msra.mxu0 %v2835
        %2900 = vmatprep.mubr.f32.mxu0 %v2803
        %2901 = vmatmul.mubr.f32.gmra.mrb[0].mxu0 %v2802
        %v2902 = vpop.f32.mrb[0].mxu0
        %v2903 = vadd.f32 0.0, %v2902
        %v2904 = vpop.f32.mrb[0].mxu0
        %2905 = vdwg.mxu0
        %v2906 = vld [vmem:[#allocation16] sm:$0xff]
        %v2907 = vld [vmem:[#allocation16 + $0x8] sm:$0xff]
        %v2908 = vld [vmem:[#allocation16 + $0x10] sm:$0xff]
        %v2909 = vld [vmem:[#allocation16 + $0x18] sm:$0xff]
        %v2910 = vld [vmem:[#allocation16 + $0x20] sm:$0xff]
        %v2911 = vld [vmem:[#allocation16 + $0x28] sm:$0xff]
        %v2912 = vld [vmem:[#allocation16 + $0x30] sm:$0xff]
        %v2913 = vld [vmem:[#allocation16 + $0x38] sm:$0xff]
        %v2914 = vld [vmem:[#allocation16 + $0x40] sm:$0xff]
        %v2915 = vld [vmem:[#allocation16 + $0x48] sm:$0xff]
        %v2916 = vld [vmem:[#allocation16 + $0x50] sm:$0xff]
        %v2917 = vld [vmem:[#allocation16 + $0x58] sm:$0xff]
        %v2918 = vld [vmem:[#allocation16 + $0x60] sm:$0xff]
        %v2919 = vld [vmem:[#allocation16 + $0x68] sm:$0xff]
        %v2920 = vld [vmem:[#allocation16 + $0x70] sm:$0xff]
        %v2921 = vld [vmem:[#allocation16 + $0x78] sm:$0xff]
        %v2922 = vld [vmem:[#allocation16 + $0x80] sm:$0xff]
        %v2923 = vld [vmem:[#allocation16 + $0x88] sm:$0xff]
        %v2924 = vld [vmem:[#allocation16 + $0x90] sm:$0xff]
        %v2925 = vld [vmem:[#allocation16 + $0x98] sm:$0xff]
        %v2926 = vld [vmem:[#allocation16 + $0xa0] sm:$0xff]
        %v2927 = vld [vmem:[#allocation16 + $0xa8] sm:$0xff]
        %v2928 = vld [vmem:[#allocation16 + $0xb0] sm:$0xff]
        %v2929 = vld [vmem:[#allocation16 + $0xb8] sm:$0xff]
        %v2930 = vld [vmem:[#allocation16 + $0xc0] sm:$0xff]
        %v2931 = vld [vmem:[#allocation16 + $0xc8] sm:$0xff]
        %v2932 = vld [vmem:[#allocation16 + $0xd0] sm:$0xff]
        %v2933 = vld [vmem:[#allocation16 + $0xd8] sm:$0xff]
        %v2934 = vld [vmem:[#allocation16 + $0xe0] sm:$0xff]
        %v2935 = vld [vmem:[#allocation16 + $0xe8] sm:$0xff]
        %v2936 = vld [vmem:[#allocation16 + $0xf0] sm:$0xff]
        %v2937 = vld [vmem:[#allocation16 + $0xf8] sm:$0xff]
        %2938 = vmatprep.subr.mxu0 0.0
        %2939 = vmatpush1.msra.mxu0 %v2906
        %2940 = vmatprep.subr.mxu0 0.0
        %2941 = vmatpush1.msra.mxu0 %v2907
        %2942 = vmatprep.subr.mxu0 0.0
        %2943 = vmatpush1.msra.mxu0 %v2908
        %2944 = vmatprep.subr.mxu0 0.0
        %2945 = vmatpush1.msra.mxu0 %v2909
        %2946 = vmatprep.subr.mxu0 0.0
        %2947 = vmatpush1.msra.mxu0 %v2910
        %2948 = vmatprep.subr.mxu0 0.0
        %2949 = vmatpush1.msra.mxu0 %v2911
        %2950 = vmatprep.subr.mxu0 0.0
        %2951 = vmatpush1.msra.mxu0 %v2912
        %2952 = vmatprep.subr.mxu0 0.0
        %2953 = vmatpush1.msra.mxu0 %v2913
        %2954 = vmatprep.subr.mxu0 0.0
        %2955 = vmatpush1.msra.mxu0 %v2914
        %2956 = vmatprep.subr.mxu0 0.0
        %2957 = vmatpush1.msra.mxu0 %v2915
        %2958 = vmatprep.subr.mxu0 0.0
        %2959 = vmatpush1.msra.mxu0 %v2916
        %2960 = vmatprep.subr.mxu0 0.0
        %2961 = vmatpush1.msra.mxu0 %v2917
        %2962 = vmatprep.subr.mxu0 0.0
        %2963 = vmatpush1.msra.mxu0 %v2918
        %2964 = vmatprep.subr.mxu0 0.0
        %2965 = vmatpush1.msra.mxu0 %v2919
        %2966 = vmatprep.subr.mxu0 0.0
        %2967 = vmatpush1.msra.mxu0 %v2920
        %2968 = vmatprep.subr.mxu0 0.0
        %2969 = vmatpush1.msra.mxu0 %v2921
        %2970 = vmatprep.subr.mxu0 0.0
        %2971 = vmatpush1.msra.mxu0 %v2922
        %2972 = vmatprep.subr.mxu0 0.0
        %2973 = vmatpush1.msra.mxu0 %v2923
        %2974 = vmatprep.subr.mxu0 0.0
        %2975 = vmatpush1.msra.mxu0 %v2924
        %2976 = vmatprep.subr.mxu0 0.0
        %2977 = vmatpush1.msra.mxu0 %v2925
        %2978 = vmatprep.subr.mxu0 0.0
        %2979 = vmatpush1.msra.mxu0 %v2926
        %2980 = vmatprep.subr.mxu0 0.0
        %2981 = vmatpush1.msra.mxu0 %v2927
        %2982 = vmatprep.subr.mxu0 0.0
        %2983 = vmatpush1.msra.mxu0 %v2928
        %2984 = vmatprep.subr.mxu0 0.0
        %2985 = vmatpush1.msra.mxu0 %v2929
        %2986 = vmatprep.subr.mxu0 0.0
        %2987 = vmatpush1.msra.mxu0 %v2930
        %2988 = vmatprep.subr.mxu0 0.0
        %2989 = vmatpush1.msra.mxu0 %v2931
        %2990 = vmatprep.subr.mxu0 0.0
        %2991 = vmatpush1.msra.mxu0 %v2932
        %2992 = vmatprep.subr.mxu0 0.0
        %2993 = vmatpush1.msra.mxu0 %v2933
        %2994 = vmatprep.subr.mxu0 0.0
        %2995 = vmatpush1.msra.mxu0 %v2934
        %2996 = vmatprep.subr.mxu0 0.0
        %2997 = vmatpush1.msra.mxu0 %v2935
        %2998 = vmatprep.subr.mxu0 0.0
        %2999 = vmatpush1.msra.mxu0 %v2936
        %3000 = vmatprep.subr.mxu0 0.0
        %3001 = vmatpush1.msra.mxu0 %v2937
        %3002 = vmatprep.mubr.f32.mxu0 %v2803
        %3003 = vmatmul.mubr.f32.gmra.mrb[0].mxu0 %v2802
        %v3004 = vpop.f32.mrb[0].mxu0
        %v3005 = vadd.f32 0.0, %v3004
        %v3006 = vpop.f32.mrb[0].mxu0
        %3007 = vdwg.mxu0
        %v3008 = vmax.f32 %v2903, %v3005
        %v3009 = vld [vmem:[%s20] sm:$0x1]
        %v3010 = vld [vmem:[%s19] sm:$0xff]
        %v3011 = vld [vmem:[%s19 + $0x8] sm:$0xff]
        %v3012 = vld [vmem:[%s19 + $0x10] sm:$0xff]
        %v3013 = vld [vmem:[%s19 + $0x18] sm:$0xff]
        %v3014 = vld [vmem:[%s19 + $0x20] sm:$0xff]
        %v3015 = vld [vmem:[%s19 + $0x28] sm:$0xff]
        %v3016 = vld [vmem:[%s19 + $0x30] sm:$0xff]
        %v3017 = vld [vmem:[%s19 + $0x38] sm:$0xff]
        %v3018 = vld [vmem:[%s19 + $0x40] sm:$0xff]
        %v3019 = vld [vmem:[%s19 + $0x48] sm:$0xff]
        %v3020 = vld [vmem:[%s19 + $0x50] sm:$0xff]
        %v3021 = vld [vmem:[%s19 + $0x58] sm:$0xff]
        %v3022 = vld [vmem:[%s19 + $0x60] sm:$0xff]
        %v3023 = vld [vmem:[%s19 + $0x68] sm:$0xff]
        %v3024 = vld [vmem:[%s19 + $0x70] sm:$0xff]
        %v3025 = vld [vmem:[%s19 + $0x78] sm:$0xff]
        %3026 = vmatprep.subr.mxu0 0.0
        %3027 = vmatpush1.msra.mxu0 %v3010
        %3028 = vmatprep.subr.mxu0 0.0
        %3029 = vmatpush1.msra.mxu0 %v3011
        %3030 = vmatprep.subr.mxu0 0.0
        %3031 = vmatpush1.msra.mxu0 %v3012
        %3032 = vmatprep.subr.mxu0 0.0
        %3033 = vmatpush1.msra.mxu0 %v3013
        %3034 = vmatprep.subr.mxu0 0.0
        %3035 = vmatpush1.msra.mxu0 %v3014
        %3036 = vmatprep.subr.mxu0 0.0
        %3037 = vmatpush1.msra.mxu0 %v3015
        %3038 = vmatprep.subr.mxu0 0.0
        %3039 = vmatpush1.msra.mxu0 %v3016
        %3040 = vmatprep.subr.mxu0 0.0
        %3041 = vmatpush1.msra.mxu0 %v3017
        %3042 = vmatprep.subr.mxu0 0.0
        %3043 = vmatpush1.msra.mxu0 %v3018
        %3044 = vmatprep.subr.mxu0 0.0
        %3045 = vmatpush1.msra.mxu0 %v3019
        %3046 = vmatprep.subr.mxu0 0.0
        %3047 = vmatpush1.msra.mxu0 %v3020
        %3048 = vmatprep.subr.mxu0 0.0
        %3049 = vmatpush1.msra.mxu0 %v3021
        %3050 = vmatprep.subr.mxu0 0.0
        %3051 = vmatpush1.msra.mxu0 %v3022
        %3052 = vmatprep.subr.mxu0 0.0
        %3053 = vmatpush1.msra.mxu0 %v3023
        %3054 = vmatprep.subr.mxu0 0.0
        %3055 = vmatpush1.msra.mxu0 %v3024
        %3056 = vmatprep.subr.mxu0 0.0
        %3057 = vmatpush1.msra.mxu0 %v3025
        %3058 = vmatprep.subr.mxu0 0.0
        %3059 = vmatpush1.msra.mxu0 0.0
        %3060 = vmatprep.subr.mxu0 0.0
        %3061 = vmatpush1.msra.mxu0 0.0
        %3062 = vmatprep.subr.mxu0 0.0
        %3063 = vmatpush1.msra.mxu0 0.0
        %3064 = vmatprep.subr.mxu0 0.0
        %3065 = vmatpush1.msra.mxu0 0.0
        %3066 = vmatprep.subr.mxu0 0.0
        %3067 = vmatpush1.msra.mxu0 0.0
        %3068 = vmatprep.subr.mxu0 0.0
        %3069 = vmatpush1.msra.mxu0 0.0
        %3070 = vmatprep.subr.mxu0 0.0
        %3071 = vmatpush1.msra.mxu0 0.0
        %3072 = vmatprep.subr.mxu0 0.0
        %3073 = vmatpush1.msra.mxu0 0.0
        %3074 = vmatprep.subr.mxu0 0.0
        %3075 = vmatpush1.msra.mxu0 0.0
        %3076 = vmatprep.subr.mxu0 0.0
        %3077 = vmatpush1.msra.mxu0 0.0
        %3078 = vmatprep.subr.mxu0 0.0
        %3079 = vmatpush1.msra.mxu0 0.0
        %3080 = vmatprep.subr.mxu0 0.0
        %3081 = vmatpush1.msra.mxu0 0.0
        %3082 = vmatprep.subr.mxu0 0.0
        %3083 = vmatpush1.msra.mxu0 0.0
        %3084 = vmatprep.subr.mxu0 0.0
        %3085 = vmatpush1.msra.mxu0 0.0
        %3086 = vmatprep.subr.mxu0 0.0
        %3087 = vmatpush1.msra.mxu0 0.0
        %3088 = vmatprep.subr.mxu0 0.0
        %3089 = vmatpush1.msra.mxu0 0.0
        %3090 = vmatprep.mubr.f32.mxu0 0.0
        %3091 = vmatmul.mubr.f32.gmra.mrb[0].mxu0 %v3008
        %v3092 = vpop.f32.mrb[0].mxu0
        %v3093 = vadd.f32 0.0, %v3092
        %v3094 = vpop.f32.mrb[0].mxu0
        %3095 = vdwg.mxu0
        %v3096 = vadd.f32 %v3009, %v3093
        %s3097 = scalar_lea.vmem %s19, 128
        %v3098 = vld [vmem:[%s3097] sm:$0xff]
        %v3099 = vld [vmem:[%s3097 + $0x8] sm:$0xff]
        %v3100 = vld [vmem:[%s3097 + $0x10] sm:$0xff]
        %v3101 = vld [vmem:[%s3097 + $0x18] sm:$0xff]
        %v3102 = vld [vmem:[%s3097 + $0x20] sm:$0xff]
        %v3103 = vld [vmem:[%s3097 + $0x28] sm:$0xff]
        %v3104 = vld [vmem:[%s3097 + $0x30] sm:$0xff]
        %v3105 = vld [vmem:[%s3097 + $0x38] sm:$0xff]
        %v3106 = vld [vmem:[%s3097 + $0x40] sm:$0xff]
        %v3107 = vld [vmem:[%s3097 + $0x48] sm:$0xff]
        %v3108 = vld [vmem:[%s3097 + $0x50] sm:$0xff]
        %v3109 = vld [vmem:[%s3097 + $0x58] sm:$0xff]
        %v3110 = vld [vmem:[%s3097 + $0x60] sm:$0xff]
        %v3111 = vld [vmem:[%s3097 + $0x68] sm:$0xff]
        %v3112 = vld [vmem:[%s3097 + $0x70] sm:$0xff]
        %v3113 = vld [vmem:[%s3097 + $0x78] sm:$0xff]
        %v3115 = vrot.slane %v3008, 1
        %3117 = vmatprep.subr.mxu0 0.0
        %3118 = vmatpush1.msra.mxu0 %v3098
        %3119 = vmatprep.subr.mxu0 0.0
        %3120 = vmatpush1.msra.mxu0 %v3099
        %3121 = vmatprep.subr.mxu0 0.0
        %3122 = vmatpush1.msra.mxu0 %v3100
        %3123 = vmatprep.subr.mxu0 0.0
        %3124 = vmatpush1.msra.mxu0 %v3101
        %3125 = vmatprep.subr.mxu0 0.0
        %3126 = vmatpush1.msra.mxu0 %v3102
        %3127 = vmatprep.subr.mxu0 0.0
        %3128 = vmatpush1.msra.mxu0 %v3103
        %3129 = vmatprep.subr.mxu0 0.0
        %3130 = vmatpush1.msra.mxu0 %v3104
        %3131 = vmatprep.subr.mxu0 0.0
        %3132 = vmatpush1.msra.mxu0 %v3105
        %3133 = vmatprep.subr.mxu0 0.0
        %3134 = vmatpush1.msra.mxu0 %v3106
        %3135 = vmatprep.subr.mxu0 0.0
        %3136 = vmatpush1.msra.mxu0 %v3107
        %3137 = vmatprep.subr.mxu0 0.0
        %3138 = vmatpush1.msra.mxu0 %v3108
        %3139 = vmatprep.subr.mxu0 0.0
        %3140 = vmatpush1.msra.mxu0 %v3109
        %3141 = vmatprep.subr.mxu0 0.0
        %3142 = vmatpush1.msra.mxu0 %v3110
        %3143 = vmatprep.subr.mxu0 0.0
        %3144 = vmatpush1.msra.mxu0 %v3111
        %3145 = vmatprep.subr.mxu0 0.0
        %3146 = vmatpush1.msra.mxu0 %v3112
        %3147 = vmatprep.subr.mxu0 0.0
        %3148 = vmatpush1.msra.mxu0 %v3113
        %3149 = vmatprep.subr.mxu0 0.0
        %3150 = vmatpush1.msra.mxu0 0.0
        %3151 = vmatprep.subr.mxu0 0.0
        %3152 = vmatpush1.msra.mxu0 0.0
        %3153 = vmatprep.subr.mxu0 0.0
        %3154 = vmatpush1.msra.mxu0 0.0
        %3155 = vmatprep.subr.mxu0 0.0
        %3156 = vmatpush1.msra.mxu0 0.0
        %3157 = vmatprep.subr.mxu0 0.0
        %3158 = vmatpush1.msra.mxu0 0.0
        %3159 = vmatprep.subr.mxu0 0.0
        %3160 = vmatpush1.msra.mxu0 0.0
        %3161 = vmatprep.subr.mxu0 0.0
        %3162 = vmatpush1.msra.mxu0 0.0
        %3163 = vmatprep.subr.mxu0 0.0
        %3164 = vmatpush1.msra.mxu0 0.0
        %3165 = vmatprep.subr.mxu0 0.0
        %3166 = vmatpush1.msra.mxu0 0.0
        %3167 = vmatprep.subr.mxu0 0.0
        %3168 = vmatpush1.msra.mxu0 0.0
        %3169 = vmatprep.subr.mxu0 0.0
        %3170 = vmatpush1.msra.mxu0 0.0
        %3171 = vmatprep.subr.mxu0 0.0
        %3172 = vmatpush1.msra.mxu0 0.0
        %3173 = vmatprep.subr.mxu0 0.0
        %3174 = vmatpush1.msra.mxu0 0.0
        %3175 = vmatprep.subr.mxu0 0.0
        %3176 = vmatpush1.msra.mxu0 0.0
        %3177 = vmatprep.subr.mxu0 0.0
        %3178 = vmatpush1.msra.mxu0 0.0
        %3179 = vmatprep.subr.mxu0 0.0
        %3180 = vmatpush1.msra.mxu0 0.0
        %3181 = vmatprep.mubr.f32.mxu0 0.0
        %3182 = vmatmul.mubr.f32.gmra.mrb[0].mxu0 %v3115
        %v3183 = vpop.f32.mrb[0].mxu0
        %v3184 = vadd.f32 0.0, %v3183
        %v3185 = vpop.f32.mrb[0].mxu0
        %3186 = vdwg.mxu0
        %v3187 = vadd.f32 %v3096, %v3184
        %v3188 = vmul.f32 %v3187, %v3187
        %vm3189 = vcmask 8192
        %v3190 = vsel %vm3189, %v3188, 0.0
        %3191 = vadd.xlane.f32.xlu0 %v3190
        %v3192 = vpop.xlane.xlu0 %3191
        %v3193 = vadd.f32 %v3192, 1e-12
        %v3194 = vrsqrt.pop %v3193
        %v3195 = vmul.f32 %v3187, %v3194
        %3196 = vst.msk [vmem:[%s750] sm:$0x1] %vm3189, %v3195
        %s3197 = sand.u32 %s493, 1
        %s3198 = scalar_lea.sflag [#allocation7], %s3197
        %s3199 = sand.u32 %s493, 1
        %s3200 = scalar_lea.vmem [#allocation17], %s3199
        // Predicated region
        $region133: #{forward.1} parent=103 // pred_check
          %p3201 = pneg %p503
        $region134: #{forward.1} parent=103 // pred_check_branch
          %3203 = sbr.rel (%p3201) target = $region136
        $region135: #{forward.1} parent=103 // pred_region
          %s3205 = ssub.s32 16, 16
          %3206 = vsyncadd %s3198, %s3205
          %s3207 = smul.addr %s39, 16
          %s3208 = scalar_lea.hbm %s21, %s3207
          %s3210 = sshll.u32 %s3200, 4
          %s3211 = int_to_ptr.vmem [resolvable:$true] %s3210
          %3213 = dma.vmem_to_hbm [thread:$0]  %s3211, 16, %s3208, %s3198
        $region136: #{forward.1} parent=103 // pred_fallthru
          _
      $region104: #{forward.1} parent=5 // pred_fallthru
        _
      %p3214 = scmp.le.s32.totalorder 2, %s34
      // Predicated region
      $region137: #{forward.1} parent=5 // pred_check
        %p3215 = pneg %p3214
      $region138: #{forward.1} parent=5 // pred_check_branch
        %3217 = sbr.rel (%p3215) target = $region140
      $region139: #{forward.1} parent=5 // pred_region
        %s3218 = ssub.s32 %s34, 2
        // Predicated region
        $region141: #{forward.1} parent=139 // pred_check
          %p3219 = pneg %p509
        $region142: #{forward.1} parent=139 // pred_check_branch
          %3221 = sbr.rel (%p3219) target = $region144
        $region143: #{forward.1} parent=139 // pred_region
          %s3222 = sand.u32 %s494, 1
          %s3223 = scalar_lea.sflag [#allocation7], %s3222
          %s3224 = sand.u32 %s494, 1
          %s3225 = scalar_lea.vmem [#allocation17], %s3224
          %3226 = dma.done %s3223, 16
        $region144: #{forward.1} parent=139 // pred_fallthru
          _
      $region140: #{forward.1} parent=5 // pred_fallthru
        _
    $region6: #{forward.1} parent=1 // loop_footer
      %s38 = sadd.s32 1, %s34
    $region7: #{forward.1} parent=1 // loop_footer_branch
      %33 = sbr.rel target = $region3
    $region8: #{forward.1} parent=1 // loop_exit
      _
    %3227 = vsyncpa [#allocation6], 1
    %s3228 = scalar_lea.sflag [#allocation6], 1
    %3229 = vsyncpa %s3228, 1
    %3230 = vsyncpa [#allocation9], 1
    %3231 = vsyncpa [#allocation12], 1
    %3232 = vsyncpa [#allocation15], 1
    %3233 = vsyncpa [#allocation7], 1
    %s3234 = scalar_lea.sflag [#allocation7], 1
    %3235 = vsyncpa %s3234, 1

</llo_original>
